<compile_context>
chip_gen: v7x
topology: tpu7x:2x2x1
jax: 0.10.0
libtpu: 0.0.40
codegen_flags: <defaults>
</compile_context>

<pallas_src>
import functools
import math

import jax
import jax.numpy as jnp
from jax.experimental import pallas as pl
from jax.experimental.pallas import tpu as pltpu

NEG_SLOPE = 0.01            # nn.LeakyReLU() default
LANE = 128
VMEM_LIMIT = 32 * 1024 * 1024


def _leaky_relu(x):
    return jnp.where(x > 0, x, NEG_SLOPE * x)


def _round_up(n, m):
    return (n + m - 1) // m * m


# --------------------------------------------------------------------------
# Pass 1 (and generic GIN layer): out = LeakyReLU((x_i + sum_k A[i,k] @ x_k) @ W + b)
# grid = (N/TM, N/TK); K axis is the reduction.
# --------------------------------------------------------------------------
def gin_layer_kernel(adj_ref, xk_ref, xi_ref, w_ref, b_ref, out_ref, acc_ref):
    k = pl.program_id(1)

    @pl.when(k == 0)
    def _():
        acc_ref[...] = jnp.zeros_like(acc_ref)

    # A[i,k] @ x[k]   (bf16 MXU operands, f32 accumulation)
    acc_ref[...] += jnp.dot(adj_ref[...], xk_ref[...],
                            preferred_element_type=jnp.float32)

    @pl.when(k == pl.num_programs(1) - 1)
    def _():
        # (1+eps)*x_i + aggregate (eps = 0), then Linear + LeakyReLU (fused epilogue)
        h = xi_ref[...].astype(jnp.float32) + acc_ref[...]
        h = jnp.dot(h.astype(jnp.bfloat16), w_ref[...],
                    preferred_element_type=jnp.float32) + b_ref[...]
        out_ref[...] = _leaky_relu(h).astype(out_ref.dtype)


# --------------------------------------------------------------------------
# Pass 2: second GIN layer fused with sum_nodes readout and final Linear.
# hg (graph readout) lives in a VMEM scratch, accumulated across row tiles i;
# the logits are written once at the very last grid step.
# --------------------------------------------------------------------------
def gin_readout_kernel(adj_ref, hk_ref, hi_ref, w2_ref, b2_ref,
                       pool_ref, w3_ref, b3_ref, out_ref, acc_ref, hg_ref):
    i = pl.program_id(0)
    k = pl.program_id(1)
    last_i = pl.num_programs(0) - 1
    last_k = pl.num_programs(1) - 1

    @pl.when(jnp.logical_and(i == 0, k == 0))
    def _():
        hg_ref[...] = jnp.zeros_like(hg_ref)

    @pl.when(k == 0)
    def _():
        acc_ref[...] = jnp.zeros_like(acc_ref)

    acc_ref[...] += jnp.dot(adj_ref[...], hk_ref[...],
                            preferred_element_type=jnp.float32)

    @pl.when(k == last_k)
    def _():
        h2 = hi_ref[...].astype(jnp.float32) + acc_ref[...]
        h2 = jnp.dot(h2.astype(jnp.bfloat16), w2_ref[...],
                     preferred_element_type=jnp.float32) + b2_ref[...]
        h2 = _leaky_relu(h2)                                    # [TM, H]
        # dgl.sum_nodes: one-hot graph-membership reduction of this row tile.
        hg_ref[...] += jnp.dot(pool_ref[...].astype(jnp.float32), h2,
                               preferred_element_type=jnp.float32)

    @pl.when(jnp.logical_and(i == last_i, k == last_k))
    def _():
        out_ref[...] = (jnp.dot(hg_ref[...].astype(jnp.bfloat16), w3_ref[...],
                                preferred_element_type=jnp.float32)
                        + b3_ref[...])


# --------------------------------------------------------------------------
# Host wrapper: padding, dtype casts, two pallas_calls.
# --------------------------------------------------------------------------
@functools.partial(jax.jit, static_argnames=("tm", "tk"))
def gnn_forward(adj, x, w1, b1, w2, b2, pool, w3, b3, *, tm=256, tk=256):
    n = adj.shape[0]
    g = pool.shape[0]
    in_feats = x.shape[1]
    h_feats = w1.shape[1]
    num_classes = w3.shape[1]

    # Pad to TPU-friendly shapes (lane-dense features, sublane-aligned G,
    # tile-aligned node count).  Padded nodes/graphs are all-zero and cannot
    # contaminate real outputs (zero adjacency rows/cols, zero pool columns).
    n_pad = _round_up(n, math.lcm(tm, tk))
    f_pad = _round_up(in_feats, LANE)
    h_pad = _round_up(h_feats, LANE)
    c_pad = _round_up(num_classes, LANE)
    g_pad = _round_up(g, 8)

    adj_p = jnp.zeros((n_pad, n_pad), jnp.bfloat16).at[:n, :n].set(
        adj.astype(jnp.bfloat16))
    x_p = jnp.zeros((n_pad, f_pad), jnp.bfloat16).at[:n, :in_feats].set(
        x.astype(jnp.bfloat16))
    pool_p = jnp.zeros((g_pad, n_pad), jnp.bfloat16).at[:g, :n].set(
        pool.astype(jnp.bfloat16))
    w1_p = jnp.zeros((f_pad, h_pad), jnp.bfloat16).at[:in_feats, :h_feats].set(
        w1.astype(jnp.bfloat16))
    b1_p = jnp.zeros((1, h_pad), jnp.float32).at[:, :h_feats].set(b1)
    w2_p = jnp.zeros((h_pad, h_pad), jnp.bfloat16).at[:h_feats, :h_feats].set(
        w2.astype(jnp.bfloat16))
    b2_p = jnp.zeros((1, h_pad), jnp.float32).at[:, :h_feats].set(b2)
    w3_p = jnp.zeros((h_pad, c_pad), jnp.bfloat16).at[:h_feats, :num_classes].set(
        w3.astype(jnp.bfloat16))
    b3_p = jnp.zeros((1, c_pad), jnp.float32).at[:, :num_classes].set(b3)

    grid = (n_pad // tm, n_pad // tk)
    const_map = lambda i, k: (0, 0)

    # ---------------- pass 1: h1 = GINConv1(x) ----------------
    h1 = pl.pallas_call(
        gin_layer_kernel,
        out_shape=jax.ShapeDtypeStruct((n_pad, h_pad), jnp.bfloat16),
        grid=grid,
        in_specs=[
            pl.BlockSpec((tm, tk), lambda i, k: (i, k)),     # A tile (streamed)
            pl.BlockSpec((tk, f_pad), lambda i, k: (k, 0)),  # x[k] strip
            pl.BlockSpec((tm, f_pad), lambda i, k: (i, 0)),  # x[i] (self term)
            pl.BlockSpec((f_pad, h_pad), const_map),         # W1 (resident)
            pl.BlockSpec((1, h_pad), const_map),             # b1 (resident)
        ],
        out_specs=pl.BlockSpec((tm, h_pad), lambda i, k: (i, 0)),
        scratch_shapes=[pltpu.VMEM((tm, f_pad), jnp.float32)],
        compiler_params=pltpu.CompilerParams(
            dimension_semantics=("parallel", "arbitrary"),
            vmem_limit_bytes=VMEM_LIMIT),
    )(adj_p, x_p, x_p, w1_p, b1_p)

    # ------- pass 2: GINConv2 + sum_nodes readout + final Linear (fused) -------
    out_pad = pl.pallas_call(
        gin_readout_kernel,
        out_shape=jax.ShapeDtypeStruct((g_pad, c_pad), jnp.float32),
        grid=grid,
        in_specs=[
            pl.BlockSpec((tm, tk), lambda i, k: (i, k)),     # A tile (streamed)
            pl.BlockSpec((tk, h_pad), lambda i, k: (k, 0)),  # h1[k] strip
            pl.BlockSpec((tm, h_pad), lambda i, k: (i, 0)),  # h1[i] (self term)
            pl.BlockSpec((h_pad, h_pad), const_map),         # W2 (resident)
            pl.BlockSpec((1, h_pad), const_map),             # b2 (resident)
            pl.BlockSpec((g_pad, tm), lambda i, k: (0, i)),  # pool columns for tile i
            pl.BlockSpec((h_pad, c_pad), const_map),         # W3 (resident)
            pl.BlockSpec((1, c_pad), const_map),             # b3 (resident)
        ],
        out_specs=pl.BlockSpec((g_pad, c_pad), const_map),
        scratch_shapes=[pltpu.VMEM((tm, h_pad), jnp.float32),     # A@h1 accumulator
                        pltpu.VMEM((g_pad, h_pad), jnp.float32)], # hg readout accumulator
        compiler_params=pltpu.CompilerParams(
            dimension_semantics=("arbitrary", "arbitrary"),
            vmem_limit_bytes=VMEM_LIMIT),
    )(adj_p, h1, h1, w2_p, b2_p, pool_p, w3_p, b3_p)

    return out_pad[:g, :num_classes]


# --------------------------------------------------------------------------
# Pure-JAX reference mirroring the kernel's precision choices
# (bf16 MXU operands, f32 accumulation, bf16 h1 storage).
# --------------------------------------------------------------------------
def gnn_reference(adj, x, w1, b1, w2, b2, pool, w3, b3):
    bf = lambda a: a.astype(jnp.bfloat16).astype(jnp.float32)
    adj_f, x_f = bf(adj), bf(x)
    w1_f, w2_f, w3_f = bf(w1), bf(w2), bf(w3)

    pre1 = bf(x_f + adj_f @ x_f) @ w1_f + b1
    h1 = bf(_leaky_relu(pre1))
    pre2 = bf(h1 + adj_f @ h1) @ w2_f + b2
    h2 = _leaky_relu(pre2)
    hg = pool @ h2
    return bf(hg) @ w3_f + b3


if __name__ == "__main__":
    # 4 graphs of 128 nodes each -> N = 512 nodes (exercises the 2x2 tile grid).
    N, G = 512, 4
    in_feats, h_feats, num_classes = 16, 32, 4

    key = jax.random.PRNGKey(0)
    k_x, k_a, k_w1, k_b1, k_w2, k_b2, k_w3, k_b3 = jax.random.split(key, 8)

    # node features
    x = jax.random.normal(k_x, (N, in_feats), dtype=jnp.float32)

    # random sparse-ish adjacency (A[dst, src] = 1.0), no self loops
    adj = (jax.random.uniform(k_a, (N, N)) < 0.1).astype(jnp.float32)
    adj = adj * (1.0 - jnp.eye(N, dtype=jnp.float32))

    # graph membership matrix: contiguous blocks of N/G nodes per graph
    seg = jnp.repeat(jnp.arange(G, dtype=jnp.int32), N // G)
    pool = jax.nn.one_hot(seg, G, dtype=jnp.float32).T          # [G, N]

    # parameters (nn.Linear shapes, stored pre-transposed as [in, out])
    def lin_init(kw, fan_in, fan_out):
        bound = 1.0 / jnp.sqrt(fan_in)
        return jax.random.uniform(kw, (fan_in, fan_out), jnp.float32, -bound, bound)

    w1 = lin_init(k_w1, in_feats, h_feats)
    b1 = jax.random.uniform(k_b1, (1, h_feats), jnp.float32,
                            -1.0 / jnp.sqrt(in_feats), 1.0 / jnp.sqrt(in_feats))
    w2 = lin_init(k_w2, h_feats, h_feats)
    b2 = jax.random.uniform(k_b2, (1, h_feats), jnp.float32,
                            -1.0 / jnp.sqrt(h_feats), 1.0 / jnp.sqrt(h_feats))
    w3 = lin_init(k_w3, h_feats, num_classes)
    b3 = jax.random.uniform(k_b3, (1, num_classes), jnp.float32,
                            -1.0 / jnp.sqrt(h_feats), 1.0 / jnp.sqrt(h_feats))

    out = gnn_forward(adj, x, w1, b1, w2, b2, pool, w3, b3, tm=256, tk=256)
    out = jax.block_until_ready(out)

    ref = gnn_reference(adj, x, w1, b1, w2, b2, pool, w3, b3)
    assert out.shape == (G, num_classes)
    tol = 2e-2 * float(jnp.max(jnp.abs(ref))) + 1e-3
    assert jnp.allclose(out, ref, atol=tol, rtol=2e-2), "mismatch vs reference"

    print("KERNEL_OK")
</pallas_src>

<mosaic_0001>
module attributes {stable_mosaic.version = 11 : i64} {
  func.func @gin_layer_kernel(%arg0: i32, %arg1: i32, %arg2: memref<256x256xbf16, #tpu.memory_space<vmem>>, %arg3: memref<256x128xbf16, #tpu.memory_space<vmem>>, %arg4: memref<256x128xbf16, #tpu.memory_space<vmem>>, %arg5: memref<128x128xbf16, #tpu.memory_space<vmem>>, %arg6: memref<1x128xf32, #tpu.memory_space<vmem>>, %arg7: memref<256x128xbf16, #tpu.memory_space<vmem>>, %arg8: memref<256x128xf32, #tpu.memory_space<vmem>>) attributes {dimension_semantics = [#tpu.dimension_semantics<parallel>, #tpu.dimension_semantics<arbitrary>], iteration_bounds = array<i64: 2, 2>, scalar_prefetch = 0 : i64, scratch_operands = 1 : i64, tpu.core_type = #tpu.core_type<tc>, window_params = [{transform_indices = @transform_0, window_bounds = array<i64: 256, 256>}, {transform_indices = @transform_1, window_bounds = array<i64: 256, 128>}, {transform_indices = @transform_2, window_bounds = array<i64: 256, 128>}, {pipeline_mode = #tpu.pipeline_mode<synchronous>, transform_indices = @transform_3, window_bounds = array<i64: 128, 128>}, {pipeline_mode = #tpu.pipeline_mode<synchronous>, transform_indices = @transform_4, window_bounds = array<i64: 1, 128>}, {transform_indices = @transform_5, window_bounds = array<i64: 256, 128>}]} {
    %c0_i32 = arith.constant 0 : i32
    %0 = arith.cmpi eq, %arg1, %c0_i32 : i32
    %1 = arith.extui %0 : i1 to i32
    %c0_i32_0 = arith.constant 0 : i32
    %2 = arith.cmpi ne, %1, %c0_i32_0 : i32
    scf.if %2 {
      %cst_9 = arith.constant 0.000000e+00 : f32
      %12 = vector.broadcast %cst_9 : f32 to vector<256x128xf32>
      %c0_10 = arith.constant 0 : index
      %c0_11 = arith.constant 0 : index
      %13 = vector.load %arg8[%c0_10, %c0_11] : memref<256x128xf32, #tpu.memory_space<vmem>>, vector<256x128xf32>
      tpu.vector_store %arg8[%c0_10, %c0_11], %12 {strides = array<i32>} : memref<256x128xf32, #tpu.memory_space<vmem>>, vector<256x128xf32>,
    } else {
    }
    %c0 = arith.constant 0 : index
    %c0_1 = arith.constant 0 : index
    %3 = vector.load %arg8[%c0, %c0_1] : memref<256x128xf32, #tpu.memory_space<vmem>>, vector<256x128xf32>
    %c0_2 = arith.constant 0 : index
    %c0_3 = arith.constant 0 : index
    %4 = vector.load %arg2[%c0_2, %c0_3] : memref<256x256xbf16, #tpu.memory_space<vmem>>, vector<256x256xbf16>
    %c0_4 = arith.constant 0 : index
    %c0_5 = arith.constant 0 : index
    %5 = vector.load %arg3[%c0_4, %c0_5] : memref<256x128xbf16, #tpu.memory_space<vmem>>, vector<256x128xbf16>
    %cst = arith.constant dense<0.000000e+00> : vector<256x128xf32>
    %6 = tpu.matmul %4, %5, %cst {dimension_numbers = #tpu.dot_dimension_numbers<[1], [0], [0], [1], [0, 0, 1, 1], [], []>} : vector<256x256xbf16>, vector<256x128xbf16>, vector<256x128xf32> -> vector<256x128xf32>
    %7 = arith.addf %3, %6 : vector<256x128xf32>
    %c0_6 = arith.constant 0 : index
    %c0_7 = arith.constant 0 : index
    %8 = vector.load %arg8[%c0_6, %c0_7] : memref<256x128xf32, #tpu.memory_space<vmem>>, vector<256x128xf32>
    tpu.vector_store %arg8[%c0_6, %c0_7], %7 {strides = array<i32>} : memref<256x128xf32, #tpu.memory_space<vmem>>, vector<256x128xf32>,
    %c1_i32 = arith.constant 1 : i32
    %9 = arith.cmpi eq, %arg1, %c1_i32 : i32
    %10 = arith.extui %9 : i1 to i32
    %c0_i32_8 = arith.constant 0 : i32
    %11 = arith.cmpi ne, %10, %c0_i32_8 : i32
    scf.if %11 {
      %c0_9 = arith.constant 0 : index
      %c0_10 = arith.constant 0 : index
      %12 = vector.load %arg4[%c0_9, %c0_10] : memref<256x128xbf16, #tpu.memory_space<vmem>>, vector<256x128xbf16>
      %13 = arith.extf %12 : vector<256x128xbf16> to vector<256x128xf32>
      %c0_11 = arith.constant 0 : index
      %c0_12 = arith.constant 0 : index
      %14 = vector.load %arg8[%c0_11, %c0_12] : memref<256x128xf32, #tpu.memory_space<vmem>>, vector<256x128xf32>
      %15 = arith.addf %13, %14 : vector<256x128xf32>
      %16 = arith.truncf %15 : vector<256x128xf32> to vector<256x128xbf16>
      %c0_13 = arith.constant 0 : index
      %c0_14 = arith.constant 0 : index
      %17 = vector.load %arg5[%c0_13, %c0_14] : memref<128x128xbf16, #tpu.memory_space<vmem>>, vector<128x128xbf16>
      %cst_15 = arith.constant dense<0.000000e+00> : vector<256x128xf32>
      %18 = tpu.matmul %16, %17, %cst_15 {dimension_numbers = #tpu.dot_dimension_numbers<[1], [0], [0], [1], [0, 0, 1, 1], [], []>} : vector<256x128xbf16>, vector<128x128xbf16>, vector<256x128xf32> -> vector<256x128xf32>
      %c0_16 = arith.constant 0 : index
      %c0_17 = arith.constant 0 : index
      %19 = vector.load %arg6[%c0_16, %c0_17] : memref<1x128xf32, #tpu.memory_space<vmem>>, vector<1x128xf32>
      %20 = vector.broadcast %19 : vector<1x128xf32> to vector<256x128xf32>
      %21 = arith.addf %18, %20 : vector<256x128xf32>
      %cst_18 = arith.constant 0.000000e+00 : f32
      %22 = vector.broadcast %cst_18 : f32 to vector<256x128xf32>
      %23 = arith.cmpf ogt, %21, %22 : vector<256x128xf32>
      %cst_19 = arith.constant 0.00999999977 : f32
      %24 = vector.broadcast %cst_19 : f32 to vector<256x128xf32>
      %25 = arith.mulf %24, %21 : vector<256x128xf32>
      %26 = arith.select %23, %21, %25 : vector<256x128xi1>, vector<256x128xf32>
      %27 = arith.truncf %26 : vector<256x128xf32> to vector<256x128xbf16>
      %c0_20 = arith.constant 0 : index
      %c0_21 = arith.constant 0 : index
      %28 = vector.load %arg7[%c0_20, %c0_21] : memref<256x128xbf16, #tpu.memory_space<vmem>>, vector<256x128xbf16>
      tpu.vector_store %arg7[%c0_20, %c0_21], %27 {strides = array<i32>} : memref<256x128xbf16, #tpu.memory_space<vmem>>, vector<256x128xbf16>,
    } else {
    }
    return
  }
  func.func @transform_0(%arg0: i32, %arg1: i32) -> (i32, i32) {
    %c0_i32 = arith.constant 0 : i32
    return %arg0, %arg1 : i32, i32
  }
  func.func @transform_1(%arg0: i32, %arg1: i32) -> (i32, i32) {
    %c0_i32 = arith.constant 0 : i32
    %c0_i32_0 = arith.constant 0 : i32
    return %arg1, %c0_i32 : i32, i32
  }
  func.func @transform_2(%arg0: i32, %arg1: i32) -> (i32, i32) {
    %c0_i32 = arith.constant 0 : i32
    %c0_i32_0 = arith.constant 0 : i32
    return %arg0, %c0_i32 : i32, i32
  }
  func.func @transform_3(%arg0: i32, %arg1: i32) -> (i32, i32) {
    %c0_i32 = arith.constant 0 : i32
    %c0_i32_0 = arith.constant 0 : i32
    %c0_i32_1 = arith.constant 0 : i32
    return %c0_i32, %c0_i32_0 : i32, i32
  }
  func.func @transform_4(%arg0: i32, %arg1: i32) -> (i32, i32) {
    %c0_i32 = arith.constant 0 : i32
    %c0_i32_0 = arith.constant 0 : i32
    %c0_i32_1 = arith.constant 0 : i32
    return %c0_i32, %c0_i32_0 : i32, i32
  }
  func.func @transform_5(%arg0: i32, %arg1: i32) -> (i32, i32) {
    %c0_i32 = arith.constant 0 : i32
    %c0_i32_0 = arith.constant 0 : i32
    return %arg0, %c0_i32 : i32, i32
  }
}

module attributes {stable_mosaic.version = 11 : i64} {
  func.func @gin_readout_kernel(%arg0: i32, %arg1: i32, %arg2: memref<256x256xbf16, #tpu.memory_space<vmem>>, %arg3: memref<256x128xbf16, #tpu.memory_space<vmem>>, %arg4: memref<256x128xbf16, #tpu.memory_space<vmem>>, %arg5: memref<128x128xbf16, #tpu.memory_space<vmem>>, %arg6: memref<1x128xf32, #tpu.memory_space<vmem>>, %arg7: memref<8x256xbf16, #tpu.memory_space<vmem>>, %arg8: memref<128x128xbf16, #tpu.memory_space<vmem>>, %arg9: memref<1x128xf32, #tpu.memory_space<vmem>>, %arg10: memref<8x128xf32, #tpu.memory_space<vmem>>, %arg11: memref<256x128xf32, #tpu.memory_space<vmem>>, %arg12: memref<8x128xf32, #tpu.memory_space<vmem>>) attributes {dimension_semantics = [#tpu.dimension_semantics<arbitrary>, #tpu.dimension_semantics<arbitrary>], iteration_bounds = array<i64: 2, 2>, scalar_prefetch = 0 : i64, scratch_operands = 2 : i64, tpu.core_type = #tpu.core_type<tc>, window_params = [{transform_indices = @transform_0, window_bounds = array<i64: 256, 256>}, {transform_indices = @transform_1, window_bounds = array<i64: 256, 128>}, {transform_indices = @transform_2, window_bounds = array<i64: 256, 128>}, {pipeline_mode = #tpu.pipeline_mode<synchronous>, transform_indices = @transform_3, window_bounds = array<i64: 128, 128>}, {pipeline_mode = #tpu.pipeline_mode<synchronous>, transform_indices = @transform_4, window_bounds = array<i64: 1, 128>}, {transform_indices = @transform_5, window_bounds = array<i64: 8, 256>}, {pipeline_mode = #tpu.pipeline_mode<synchronous>, transform_indices = @transform_6, window_bounds = array<i64: 128, 128>}, {pipeline_mode = #tpu.pipeline_mode<synchronous>, transform_indices = @transform_7, window_bounds = array<i64: 1, 128>}, {pipeline_mode = #tpu.pipeline_mode<synchronous>, transform_indices = @transform_8, window_bounds = array<i64: 8, 128>}]} {
    %c0_i32 = arith.constant 0 : i32
    %0 = arith.cmpi eq, %arg0, %c0_i32 : i32
    %c0_i32_0 = arith.constant 0 : i32
    %1 = arith.cmpi eq, %arg1, %c0_i32_0 : i32
    %2 = arith.andi %0, %1 : i1
    %3 = arith.extui %2 : i1 to i32
    %c0_i32_1 = arith.constant 0 : i32
    %4 = arith.cmpi ne, %3, %c0_i32_1 : i32
    scf.if %4 {
      %cst_15 = arith.constant 0.000000e+00 : f32
      %22 = vector.broadcast %cst_15 : f32 to vector<8x128xf32>
      %c0_16 = arith.constant 0 : index
      %c0_17 = arith.constant 0 : index
      %23 = vector.load %arg12[%c0_16, %c0_17] : memref<8x128xf32, #tpu.memory_space<vmem>>, vector<8x128xf32>
      tpu.vector_store %arg12[%c0_16, %c0_17], %22 {strides = array<i32>} : memref<8x128xf32, #tpu.memory_space<vmem>>, vector<8x128xf32>,
    } else {
    }
    %c0_i32_2 = arith.constant 0 : i32
    %5 = arith.cmpi eq, %arg1, %c0_i32_2 : i32
    %6 = arith.extui %5 : i1 to i32
    %c0_i32_3 = arith.constant 0 : i32
    %7 = arith.cmpi ne, %6, %c0_i32_3 : i32
    scf.if %7 {
      %cst_15 = arith.constant 0.000000e+00 : f32
      %22 = vector.broadcast %cst_15 : f32 to vector<256x128xf32>
      %c0_16 = arith.constant 0 : index
      %c0_17 = arith.constant 0 : index
      %23 = vector.load %arg11[%c0_16, %c0_17] : memref<256x128xf32, #tpu.memory_space<vmem>>, vector<256x128xf32>
      tpu.vector_store %arg11[%c0_16, %c0_17], %22 {strides = array<i32>} : memref<256x128xf32, #tpu.memory_space<vmem>>, vector<256x128xf32>,
    } else {
    }
    %c0 = arith.constant 0 : index
    %c0_4 = arith.constant 0 : index
    %8 = vector.load %arg11[%c0, %c0_4] : memref<256x128xf32, #tpu.memory_space<vmem>>, vector<256x128xf32>
    %c0_5 = arith.constant 0 : index
    %c0_6 = arith.constant 0 : index
    %9 = vector.load %arg2[%c0_5, %c0_6] : memref<256x256xbf16, #tpu.memory_space<vmem>>, vector<256x256xbf16>
    %c0_7 = arith.constant 0 : index
    %c0_8 = arith.constant 0 : index
    %10 = vector.load %arg3[%c0_7, %c0_8] : memref<256x128xbf16, #tpu.memory_space<vmem>>, vector<256x128xbf16>
    %cst = arith.constant dense<0.000000e+00> : vector<256x128xf32>
    %11 = tpu.matmul %9, %10, %cst {dimension_numbers = #tpu.dot_dimension_numbers<[1], [0], [0], [1], [0, 0, 1, 1], [], []>} : vector<256x256xbf16>, vector<256x128xbf16>, vector<256x128xf32> -> vector<256x128xf32>
    %12 = arith.addf %8, %11 : vector<256x128xf32>
    %c0_9 = arith.constant 0 : index
    %c0_10 = arith.constant 0 : index
    %13 = vector.load %arg11[%c0_9, %c0_10] : memref<256x128xf32, #tpu.memory_space<vmem>>, vector<256x128xf32>
    tpu.vector_store %arg11[%c0_9, %c0_10], %12 {strides = array<i32>} : memref<256x128xf32, #tpu.memory_space<vmem>>, vector<256x128xf32>,
    %c1_i32 = arith.constant 1 : i32
    %14 = arith.cmpi eq, %arg1, %c1_i32 : i32
    %15 = arith.extui %14 : i1 to i32
    %c0_i32_11 = arith.constant 0 : i32
    %16 = arith.cmpi ne, %15, %c0_i32_11 : i32
    scf.if %16 {
      %c0_15 = arith.constant 0 : index
      %c0_16 = arith.constant 0 : index
      %22 = vector.load %arg4[%c0_15, %c0_16] : memref<256x128xbf16, #tpu.memory_space<vmem>>, vector<256x128xbf16>
      %23 = arith.extf %22 : vector<256x128xbf16> to vector<256x128xf32>
      %c0_17 = arith.constant 0 : index
      %c0_18 = arith.constant 0 : index
      %24 = vector.load %arg11[%c0_17, %c0_18] : memref<256x128xf32, #tpu.memory_space<vmem>>, vector<256x128xf32>
      %25 = arith.addf %23, %24 : vector<256x128xf32>
      %26 = arith.truncf %25 : vector<256x128xf32> to vector<256x128xbf16>
      %c0_19 = arith.constant 0 : index
      %c0_20 = arith.constant 0 : index
      %27 = vector.load %arg5[%c0_19, %c0_20] : memref<128x128xbf16, #tpu.memory_space<vmem>>, vector<128x128xbf16>
      %cst_21 = arith.constant dense<0.000000e+00> : vector<256x128xf32>
      %28 = tpu.matmul %26, %27, %cst_21 {dimension_numbers = #tpu.dot_dimension_numbers<[1], [0], [0], [1], [0, 0, 1, 1], [], []>} : vector<256x128xbf16>, vector<128x128xbf16>, vector<256x128xf32> -> vector<256x128xf32>
      %c0_22 = arith.constant 0 : index
      %c0_23 = arith.constant 0 : index
      %29 = vector.load %arg6[%c0_22, %c0_23] : memref<1x128xf32, #tpu.memory_space<vmem>>, vector<1x128xf32>
      %30 = vector.broadcast %29 : vector<1x128xf32> to vector<256x128xf32>
      %31 = arith.addf %28, %30 : vector<256x128xf32>
      %cst_24 = arith.constant 0.000000e+00 : f32
      %32 = vector.broadcast %cst_24 : f32 to vector<256x128xf32>
      %33 = arith.cmpf ogt, %31, %32 : vector<256x128xf32>
      %cst_25 = arith.constant 0.00999999977 : f32
      %34 = vector.broadcast %cst_25 : f32 to vector<256x128xf32>
      %35 = arith.mulf %34, %31 : vector<256x128xf32>
      %36 = arith.select %33, %31, %35 : vector<256x128xi1>, vector<256x128xf32>
      %c0_26 = arith.constant 0 : index
      %c0_27 = arith.constant 0 : index
      %37 = vector.load %arg12[%c0_26, %c0_27] : memref<8x128xf32, #tpu.memory_space<vmem>>, vector<8x128xf32>
      %c0_28 = arith.constant 0 : index
      %c0_29 = arith.constant 0 : index
      %38 = vector.load %arg7[%c0_28, %c0_29] : memref<8x256xbf16, #tpu.memory_space<vmem>>, vector<8x256xbf16>
      %39 = arith.extf %38 : vector<8x256xbf16> to vector<8x256xf32>
      %cst_30 = arith.constant dense<0.000000e+00> : vector<8x128xf32>
      %40 = tpu.matmul %39, %36, %cst_30 {dimension_numbers = #tpu.dot_dimension_numbers<[1], [0], [0], [1], [0, 0, 1, 1], [], []>} : vector<8x256xf32>, vector<256x128xf32>, vector<8x128xf32> -> vector<8x128xf32>
      %41 = arith.addf %37, %40 : vector<8x128xf32>
      %c0_31 = arith.constant 0 : index
      %c0_32 = arith.constant 0 : index
      %42 = vector.load %arg12[%c0_31, %c0_32] : memref<8x128xf32, #tpu.memory_space<vmem>>, vector<8x128xf32>
      tpu.vector_store %arg12[%c0_31, %c0_32], %41 {strides = array<i32>} : memref<8x128xf32, #tpu.memory_space<vmem>>, vector<8x128xf32>,
    } else {
    }
    %c1_i32_12 = arith.constant 1 : i32
    %17 = arith.cmpi eq, %arg0, %c1_i32_12 : i32
    %c1_i32_13 = arith.constant 1 : i32
    %18 = arith.cmpi eq, %arg1, %c1_i32_13 : i32
    %19 = arith.andi %17, %18 : i1
    %20 = arith.extui %19 : i1 to i32
    %c0_i32_14 = arith.constant 0 : i32
    %21 = arith.cmpi ne, %20, %c0_i32_14 : i32
    scf.if %21 {
      %c0_15 = arith.constant 0 : index
      %c0_16 = arith.constant 0 : index
      %22 = vector.load %arg12[%c0_15, %c0_16] : memref<8x128xf32, #tpu.memory_space<vmem>>, vector<8x128xf32>
      %23 = arith.truncf %22 : vector<8x128xf32> to vector<8x128xbf16>
      %c0_17 = arith.constant 0 : index
      %c0_18 = arith.constant 0 : index
      %24 = vector.load %arg8[%c0_17, %c0_18] : memref<128x128xbf16, #tpu.memory_space<vmem>>, vector<128x128xbf16>
      %cst_19 = arith.constant dense<0.000000e+00> : vector<8x128xf32>
      %25 = tpu.matmul %23, %24, %cst_19 {dimension_numbers = #tpu.dot_dimension_numbers<[1], [0], [0], [1], [0, 0, 1, 1], [], []>} : vector<8x128xbf16>, vector<128x128xbf16>, vector<8x128xf32> -> vector<8x128xf32>
      %c0_20 = arith.constant 0 : index
      %c0_21 = arith.constant 0 : index
      %26 = vector.load %arg9[%c0_20, %c0_21] : memref<1x128xf32, #tpu.memory_space<vmem>>, vector<1x128xf32>
      %27 = vector.broadcast %26 : vector<1x128xf32> to vector<8x128xf32>
      %28 = arith.addf %25, %27 : vector<8x128xf32>
      %c0_22 = arith.constant 0 : index
      %c0_23 = arith.constant 0 : index
      %29 = vector.load %arg10[%c0_22, %c0_23] : memref<8x128xf32, #tpu.memory_space<vmem>>, vector<8x128xf32>
      tpu.vector_store %arg10[%c0_22, %c0_23], %28 {strides = array<i32>} : memref<8x128xf32, #tpu.memory_space<vmem>>, vector<8x128xf32>,
    } else {
    }
    return
  }
  func.func @transform_0(%arg0: i32, %arg1: i32) -> (i32, i32) {
    %c0_i32 = arith.constant 0 : i32
    return %arg0, %arg1 : i32, i32
  }
  func.func @transform_1(%arg0: i32, %arg1: i32) -> (i32, i32) {
    %c0_i32 = arith.constant 0 : i32
    %c0_i32_0 = arith.constant 0 : i32
    return %arg1, %c0_i32 : i32, i32
  }
  func.func @transform_2(%arg0: i32, %arg1: i32) -> (i32, i32) {
    %c0_i32 = arith.constant 0 : i32
    %c0_i32_0 = arith.constant 0 : i32
    return %arg0, %c0_i32 : i32, i32
  }
  func.func @transform_3(%arg0: i32, %arg1: i32) -> (i32, i32) {
    %c0_i32 = arith.constant 0 : i32
    %c0_i32_0 = arith.constant 0 : i32
    %c0_i32_1 = arith.constant 0 : i32
    return %c0_i32, %c0_i32_0 : i32, i32
  }
  func.func @transform_4(%arg0: i32, %arg1: i32) -> (i32, i32) {
    %c0_i32 = arith.constant 0 : i32
    %c0_i32_0 = arith.constant 0 : i32
    %c0_i32_1 = arith.constant 0 : i32
    return %c0_i32, %c0_i32_0 : i32, i32
  }
  func.func @transform_5(%arg0: i32, %arg1: i32) -> (i32, i32) {
    %c0_i32 = arith.constant 0 : i32
    %c0_i32_0 = arith.constant 0 : i32
    return %c0_i32, %arg0 : i32, i32
  }
  func.func @transform_6(%arg0: i32, %arg1: i32) -> (i32, i32) {
    %c0_i32 = arith.constant 0 : i32
    %c0_i32_0 = arith.constant 0 : i32
    %c0_i32_1 = arith.constant 0 : i32
    return %c0_i32, %c0_i32_0 : i32, i32
  }
  func.func @transform_7(%arg0: i32, %arg1: i32) -> (i32, i32) {
    %c0_i32 = arith.constant 0 : i32
    %c0_i32_0 = arith.constant 0 : i32
    %c0_i32_1 = arith.constant 0 : i32
    return %c0_i32, %c0_i32_0 : i32, i32
  }
  func.func @transform_8(%arg0: i32, %arg1: i32) -> (i32, i32) {
    %c0_i32 = arith.constant 0 : i32
    %c0_i32_0 = arith.constant 0 : i32
    %c0_i32_1 = arith.constant 0 : i32
    return %c0_i32, %c0_i32_0 : i32, i32
  }
}

</mosaic_0001>

<llo_original>
// kernel: gnn_forward.2
$region0: #{gnn_forward.2}
  #allocation0 [shape = 'u32[]', space=smem, size = 0x4, offset = 0x4, fixed_abs, tag = 'smem constant byte address 0x4 - core index']
  #allocation1 [shape = 'u32[144,128]{1,0:T(1,128)}', space=vmem, size = 0x12000, scoped, tag = 'internal scratch']
  #allocation2 [shape = 'f32[256,128]{1,0:T(8,128)}', space=vmem, size = 0x20000, scoped, tag = 'scratch operand']
  %s0 = inlined_call_operand.vmem [shape: bf16[512,512], index: 0, kind: input, shape index: {}]
  %s1 = inlined_call_operand.vmem [shape: bf16[512,128], index: 1, kind: input, shape index: {}, may-alias: {1,2}]
  %s2 = inlined_call_operand.vmem [shape: bf16[512,128], index: 2, kind: input, shape index: {}, may-alias: {1,2}]
  %s3 = inlined_call_operand.vmem [shape: bf16[128,128], index: 3, kind: input, shape index: {}]
  %s4 = inlined_call_operand.vmem [shape: f32[1,128], index: 4, kind: input, shape index: {}]
  %s5 = inlined_call_operand.vmem [shape: bf16[512,128], index: 5, kind: output, shape index: {}]
  %s6 = sld [smem:[#allocation0]]
  $region99: #{gnn_forward.2} parent=0
    _
  %s8 = ssub.s32 1, %s6
  %s9 = scalar_select 0, %s8, %s6
  $region1: #{gnn_forward.2} parent=0
    #allocation3 [shape = 'u8[262144]{0}', space=vmem, size = 0x40000, scoped, tag = 'input window, operand 0']
    loop: start=0, step=1, limit=6
    $region2: #{gnn_forward.2} parent=1 // loop_pre_header
      _
    $region3: #{gnn_forward.2} parent=1 // loop_header
      %s11 = sphi 0, %s15
      %p12 = scmp.ge.s32.totalorder %s11, 6
      %s18 = sphi 0, %s30
      %s19 = sphi 0, %s26
      %s20 = sphi 0, %s18
      %s21 = sphi 0, %s19
      %s22 = sphi 0, %s20
      %s23 = sphi 0, %s21
      %s35 = sphi 0, %s37
      %s38 = sphi 0, %s35
      %s39 = sphi 0, %s38
      %s55 = sphi 0, %s39
      %s61 = sphi 0, %s63
      %s64 = sphi 0, %s61
      %s65 = sphi 0, %s64
      %s81 = sphi 0, %s65
      %s87 = sphi 0, %s89
      %s90 = sphi 0, %s87
      %s91 = sphi 0, %s90
      %s107 = sphi 0, %s91
      %s111 = sphi 0, %s111
      %s113 = sphi 0, %s111
      %s114 = sphi 0, %s113
      %s128 = sphi 0, %s114
      %s132 = sphi 0, %s132
      %s134 = sphi 0, %s132
      %s135 = sphi 0, %s134
      %s149 = sphi 0, %s135
      %s155 = sphi 0, %s157
      %s158 = sphi 0, %s155
      %s159 = sphi 0, %s158
      %s175 = sphi 0, %s159
    $region4: #{gnn_forward.2} parent=1 // loop_header_branch
      %14 = sbr.rel (%p12) target = $region8
    $region5: #{gnn_forward.2} parent=1 // loop_body
      %s16 = ssub.s32 %s11, 1
      %s17 = ssub.s32 %s11, 2
      %s24 = sadd.s32 1, %s19
      %p25 = scmp.ge.s32.totalorder %s24, 2
      %s26 = scalar_select %p25, 0, %s24
      %s27 = sadd.s32 1, %s18
      %s28 = scalar_select %p25, %s27, %s18
      %p29 = scmp.ge.s32.totalorder %s28, 2
      %s30 = scalar_select %p29, 0, %s28
      %s31 = ssub.s32 %s18, %s30
      %s32 = ssub.s32 %s19, %s26
      %s33 = sor.u32 %s31, %s32
      %p34 = scmp.eq.s32.totalorder %s33, 0
      %s36 = sadd.s32 %s35, 1
      %s37 = scalar_select %p34, %s35, %s36
      %p40 = pneg %p34
      %p41 = scmp.eq.s32.totalorder %s11, 3
      %p42 = por %p40, %p41
      %p43 = scmp.ne.s32.totalorder %s35, %s38
      %p44 = scmp.eq.s32.totalorder %s11, 0
      %p45 = por %p43, %p44
      %p46 = scmp.ne.s32.totalorder %s35, %s38
      %p47 = scmp.eq.s32.totalorder %s16, 3
      %p48 = por %p46, %p47
      %p49 = scmp.ne.s32.totalorder %s38, %s39
      %p50 = scmp.eq.s32.totalorder %s16, 0
      %p51 = por %p49, %p50
      %p52 = scmp.ne.s32.totalorder %s38, %s39
      %p53 = scmp.eq.s32.totalorder %s17, 3
      %p54 = por %p52, %p53
      %p56 = scmp.ne.s32.totalorder %s39, %s55
      %p57 = scmp.eq.s32.totalorder %s17, 0
      %p58 = por %p56, %p57
      %s59 = ssub.s32 %s19, %s26
      %p60 = scmp.eq.s32.totalorder %s59, 0
      %s62 = sadd.s32 %s61, 1
      %s63 = scalar_select %p60, %s61, %s62
      %p66 = pneg %p60
      %p67 = scmp.eq.s32.totalorder %s11, 3
      %p68 = por %p66, %p67
      %p69 = scmp.ne.s32.totalorder %s61, %s64
      %p70 = scmp.eq.s32.totalorder %s11, 0
      %p71 = por %p69, %p70
      %p72 = scmp.ne.s32.totalorder %s61, %s64
      %p73 = scmp.eq.s32.totalorder %s16, 3
      %p74 = por %p72, %p73
      %p75 = scmp.ne.s32.totalorder %s64, %s65
      %p76 = scmp.eq.s32.totalorder %s16, 0
      %p77 = por %p75, %p76
      %p78 = scmp.ne.s32.totalorder %s64, %s65
      %p79 = scmp.eq.s32.totalorder %s17, 3
      %p80 = por %p78, %p79
      %p82 = scmp.ne.s32.totalorder %s65, %s81
      %p83 = scmp.eq.s32.totalorder %s17, 0
      %p84 = por %p82, %p83
      %s85 = ssub.s32 %s18, %s30
      %p86 = scmp.eq.s32.totalorder %s85, 0
      %s88 = sadd.s32 %s87, 1
      %s89 = scalar_select %p86, %s87, %s88
      %p92 = pneg %p86
      %p93 = scmp.eq.s32.totalorder %s11, 3
      %p94 = por %p92, %p93
      %p95 = scmp.ne.s32.totalorder %s87, %s90
      %p96 = scmp.eq.s32.totalorder %s11, 0
      %p97 = por %p95, %p96
      %p98 = scmp.ne.s32.totalorder %s87, %s90
      %p99 = scmp.eq.s32.totalorder %s16, 3
      %p100 = por %p98, %p99
      %p101 = scmp.ne.s32.totalorder %s90, %s91
      %p102 = scmp.eq.s32.totalorder %s16, 0
      %p103 = por %p101, %p102
      %p104 = scmp.ne.s32.totalorder %s90, %s91
      %p105 = scmp.eq.s32.totalorder %s17, 3
      %p106 = por %p104, %p105
      %p108 = scmp.ne.s32.totalorder %s91, %s107
      %p109 = scmp.eq.s32.totalorder %s17, 0
      %p110 = por %p108, %p109
      %s112 = sadd.s32 %s111, 1
      %p115 = scmp.eq.s32.totalorder %s11, 3
      %p116 = scmp.ne.s32.totalorder %s111, %s113
      %p117 = scmp.eq.s32.totalorder %s11, 0
      %p118 = por %p116, %p117
      %p119 = scmp.ne.s32.totalorder %s111, %s113
      %p120 = scmp.eq.s32.totalorder %s16, 3
      %p121 = por %p119, %p120
      %p122 = scmp.ne.s32.totalorder %s113, %s114
      %p123 = scmp.eq.s32.totalorder %s16, 0
      %p124 = por %p122, %p123
      %p125 = scmp.ne.s32.totalorder %s113, %s114
      %p126 = scmp.eq.s32.totalorder %s17, 3
      %p127 = por %p125, %p126
      %p129 = scmp.ne.s32.totalorder %s114, %s128
      %p130 = scmp.eq.s32.totalorder %s17, 0
      %p131 = por %p129, %p130
      %s133 = sadd.s32 %s132, 1
      %p136 = scmp.eq.s32.totalorder %s11, 3
      %p137 = scmp.ne.s32.totalorder %s132, %s134
      %p138 = scmp.eq.s32.totalorder %s11, 0
      %p139 = por %p137, %p138
      %p140 = scmp.ne.s32.totalorder %s132, %s134
      %p141 = scmp.eq.s32.totalorder %s16, 3
      %p142 = por %p140, %p141
      %p143 = scmp.ne.s32.totalorder %s134, %s135
      %p144 = scmp.eq.s32.totalorder %s16, 0
      %p145 = por %p143, %p144
      %p146 = scmp.ne.s32.totalorder %s134, %s135
      %p147 = scmp.eq.s32.totalorder %s17, 3
      %p148 = por %p146, %p147
      %p150 = scmp.ne.s32.totalorder %s135, %s149
      %p151 = scmp.eq.s32.totalorder %s17, 0
      %p152 = por %p150, %p151
      %s153 = ssub.s32 %s18, %s30
      %p154 = scmp.eq.s32.totalorder %s153, 0
      %s156 = sadd.s32 %s155, 1
      %s157 = scalar_select %p154, %s155, %s156
      %p160 = pneg %p154
      %p161 = scmp.eq.s32.totalorder %s11, 3
      %p162 = por %p160, %p161
      %p163 = scmp.ne.s32.totalorder %s155, %s158
      %p164 = scmp.eq.s32.totalorder %s11, 0
      %p165 = por %p163, %p164
      %p166 = scmp.ne.s32.totalorder %s155, %s158
      %p167 = scmp.eq.s32.totalorder %s16, 3
      %p168 = por %p166, %p167
      %p169 = scmp.ne.s32.totalorder %s158, %s159
      %p170 = scmp.eq.s32.totalorder %s16, 0
      %p171 = por %p169, %p170
      %p172 = scmp.ne.s32.totalorder %s158, %s159
      %p173 = scmp.eq.s32.totalorder %s17, 3
      %p174 = por %p172, %p173
      %p176 = scmp.ne.s32.totalorder %s159, %s175
      %p177 = scmp.eq.s32.totalorder %s17, 0
      %p178 = por %p176, %p177
      %p179 = scmp.le.s32.totalorder 1, %s11
      %p180 = scmp.lt.s32.totalorder %s11, 5
      %p181 = pnand %p179, %p180
      %p182 = pneg %p181
      // Predicated region
      $region9: #{gnn_forward.2} parent=5 // pred_check
        _
      $region10: #{gnn_forward.2} parent=5 // pred_check_branch
        %184 = sbr.rel (%p181) target = $region12
      $region11: #{gnn_forward.2} parent=5 // pred_region
        %s185 = ssub.s32 %s11, 1
        // Predicated region
        $region13: #{gnn_forward.2} parent=11 // pred_check
          %p186 = pneg %p124
        $region14: #{gnn_forward.2} parent=11 // pred_check_branch
          %188 = sbr.rel (%p186) target = $region16
        $region15: #{gnn_forward.2} parent=11 // pred_region
          _
        $region16: #{gnn_forward.2} parent=11 // pred_fallthru
          _
        // Predicated region
        $region17: #{gnn_forward.2} parent=11 // pred_check
          %p189 = pneg %p145
        $region18: #{gnn_forward.2} parent=11 // pred_check_branch
          %191 = sbr.rel (%p189) target = $region20
        $region19: #{gnn_forward.2} parent=11 // pred_region
          _
        $region20: #{gnn_forward.2} parent=11 // pred_fallthru
          _
      $region12: #{gnn_forward.2} parent=5 // pred_fallthru
        _
      %p192 = scmp.lt.s32.totalorder %s11, 4
      // Predicated region
      $region21: #{gnn_forward.2} parent=5 // pred_check
        %p193 = pneg %p192
      $region22: #{gnn_forward.2} parent=5 // pred_check_branch
        %195 = sbr.rel (%p193) target = $region24
      $region23: #{gnn_forward.2} parent=5 // pred_region
        // Predicated region
        $region25: #{gnn_forward.2} parent=23 // pred_check
          %p196 = pneg %p45
        $region26: #{gnn_forward.2} parent=23 // pred_check_branch
          %198 = sbr.rel (%p196) target = $region28
        $region27: #{gnn_forward.2} parent=23 // pred_region
          %s199 = sand.u32 %s35, 1
          %s200 = sand.u32 %s35, 1
          %s201 = smul.addr %s200, 256
          %s202 = scalar_lea.vmem [#allocation3], %s201
          %s203 = smul.u32 32, %s18
          %s204 = smul.u32 2, %s19
          %s205 = smul.addr %s203, 4
          %s206 = sadd.s32 %s204, %s205
          %s207 = smul.addr %s206, 4
          %s208 = scalar_lea.vmem %s0, %s207
          // Predicated region
          $region29: #{gnn_forward.2} parent=27 // pred_check
            _
          $region30: #{gnn_forward.2} parent=27 // pred_check_branch
            %210 = sbr.rel (0) target = $region32
          $region31: #{gnn_forward.2} parent=27 // pred_region
            // Predicated region
            $region33: #{gnn_forward.2} parent=31 // pred_check
              _
            $region34: #{gnn_forward.2} parent=31 // pred_check_branch
              %212 = sbr.rel (0) target = $region36
            $region35: #{gnn_forward.2} parent=31 // pred_region
              // Predicated region
              $region48: #{gnn_forward.2} parent=35 // pred_check
                _
              $region49: #{gnn_forward.2} parent=35 // pred_check_branch
                %289 = sbr.rel (0) target = $region51
              $region50: #{gnn_forward.2} parent=35 // pred_region
                loop: start=0, step=1, limit=1
                $region52: #{gnn_forward.2} parent=50 // loop_pre_header
                  _
                $region53: #{gnn_forward.2} parent=50 // loop_header
                  %s291 = sphi 0, %s295
                  %p292 = scmp.ge.s32.totalorder %s291, 1
                  %s296 = sphi %s208, %s208
                  %s297 = sphi %s202, %s202
                $region54: #{gnn_forward.2} parent=50 // loop_header_branch
                  %294 = sbr.rel (%p292) target = $region58
                $region55: #{gnn_forward.2} parent=50 // loop_body
                  %v298 = vld [vmem:[%s296] sm:$0xff]
                  %299 = vst [vmem:[%s297] sm:$0xff] %v298
                  %v300 = vld [vmem:[%s296 + $0x10] sm:$0xff]
                  %301 = vst [vmem:[%s297 + $0x8] sm:$0xff] %v300
                  %v302 = vld [vmem:[%s296 + $0x20] sm:$0xff]
                  %303 = vst [vmem:[%s297 + $0x10] sm:$0xff] %v302
                  %v304 = vld [vmem:[%s296 + $0x30] sm:$0xff]
                  %305 = vst [vmem:[%s297 + $0x18] sm:$0xff] %v304
                  %v306 = vld [vmem:[%s296 + $0x40] sm:$0xff]
                  %307 = vst [vmem:[%s297 + $0x20] sm:$0xff] %v306
                  %v308 = vld [vmem:[%s296 + $0x50] sm:$0xff]
                  %309 = vst [vmem:[%s297 + $0x28] sm:$0xff] %v308
                  %v310 = vld [vmem:[%s296 + $0x60] sm:$0xff]
                  %311 = vst [vmem:[%s297 + $0x30] sm:$0xff] %v310
                  %v312 = vld [vmem:[%s296 + $0x70] sm:$0xff]
                  %313 = vst [vmem:[%s297 + $0x38] sm:$0xff] %v312
                  %v314 = vld [vmem:[%s296 + $0x80] sm:$0xff]
                  %315 = vst [vmem:[%s297 + $0x40] sm:$0xff] %v314
                  %v316 = vld [vmem:[%s296 + $0x90] sm:$0xff]
                  %317 = vst [vmem:[%s297 + $0x48] sm:$0xff] %v316
                  %v318 = vld [vmem:[%s296 + $0xa0] sm:$0xff]
                  %319 = vst [vmem:[%s297 + $0x50] sm:$0xff] %v318
                  %v320 = vld [vmem:[%s296 + $0xb0] sm:$0xff]
                  %321 = vst [vmem:[%s297 + $0x58] sm:$0xff] %v320
                  %v322 = vld [vmem:[%s296 + $0xc0] sm:$0xff]
                  %323 = vst [vmem:[%s297 + $0x60] sm:$0xff] %v322
                  %v324 = vld [vmem:[%s296 + $0xd0] sm:$0xff]
                  %325 = vst [vmem:[%s297 + $0x68] sm:$0xff] %v324
                  %v326 = vld [vmem:[%s296 + $0xe0] sm:$0xff]
                  %327 = vst [vmem:[%s297 + $0x70] sm:$0xff] %v326
                  %v328 = vld [vmem:[%s296 + $0xf0] sm:$0xff]
                  %329 = vst [vmem:[%s297 + $0x78] sm:$0xff] %v328
                  %v330 = vld [vmem:[%s296 + $0x100] sm:$0xff]
                  %331 = vst [vmem:[%s297 + $0x80] sm:$0xff] %v330
                  %v332 = vld [vmem:[%s296 + $0x110] sm:$0xff]
                  %333 = vst [vmem:[%s297 + $0x88] sm:$0xff] %v332
                  %v334 = vld [vmem:[%s296 + $0x120] sm:$0xff]
                  %335 = vst [vmem:[%s297 + $0x90] sm:$0xff] %v334
                  %v336 = vld [vmem:[%s296 + $0x130] sm:$0xff]
                  %337 = vst [vmem:[%s297 + $0x98] sm:$0xff] %v336
                  %v338 = vld [vmem:[%s296 + $0x140] sm:$0xff]
                  %339 = vst [vmem:[%s297 + $0xa0] sm:$0xff] %v338
                  %v340 = vld [vmem:[%s296 + $0x150] sm:$0xff]
                  %341 = vst [vmem:[%s297 + $0xa8] sm:$0xff] %v340
                  %v342 = vld [vmem:[%s296 + $0x160] sm:$0xff]
                  %343 = vst [vmem:[%s297 + $0xb0] sm:$0xff] %v342
                  %v344 = vld [vmem:[%s296 + $0x170] sm:$0xff]
                  %345 = vst [vmem:[%s297 + $0xb8] sm:$0xff] %v344
                  %v346 = vld [vmem:[%s296 + $0x180] sm:$0xff]
                  %347 = vst [vmem:[%s297 + $0xc0] sm:$0xff] %v346
                  %v348 = vld [vmem:[%s296 + $0x190] sm:$0xff]
                  %349 = vst [vmem:[%s297 + $0xc8] sm:$0xff] %v348
                  %v350 = vld [vmem:[%s296 + $0x1a0] sm:$0xff]
                  %351 = vst [vmem:[%s297 + $0xd0] sm:$0xff] %v350
                  %v352 = vld [vmem:[%s296 + $0x1b0] sm:$0xff]
                  %353 = vst [vmem:[%s297 + $0xd8] sm:$0xff] %v352
                  %v354 = vld [vmem:[%s296 + $0x1c0] sm:$0xff]
                  %355 = vst [vmem:[%s297 + $0xe0] sm:$0xff] %v354
                  %v356 = vld [vmem:[%s296 + $0x1d0] sm:$0xff]
                  %357 = vst [vmem:[%s297 + $0xe8] sm:$0xff] %v356
                  %v358 = vld [vmem:[%s296 + $0x1e0] sm:$0xff]
                  %359 = vst [vmem:[%s297 + $0xf0] sm:$0xff] %v358
                  %v360 = vld [vmem:[%s296 + $0x1f0] sm:$0xff]
                  %361 = vst [vmem:[%s297 + $0xf8] sm:$0xff] %v360
                $region56: #{gnn_forward.2} parent=50 // loop_footer
                  %s295 = sadd.s32 1, %s291
                $region57: #{gnn_forward.2} parent=50 // loop_footer_branch
                  %290 = sbr.rel target = $region53
                $region58: #{gnn_forward.2} parent=50 // loop_exit
                  _
              $region51: #{gnn_forward.2} parent=35 // pred_fallthru
                _
              // Predicated region
              $region59: #{gnn_forward.2} parent=35 // pred_check
                _
              $region60: #{gnn_forward.2} parent=35 // pred_check_branch
                %363 = sbr.rel target = $region62
              $region61: #{gnn_forward.2} parent=35 // pred_region
                _
              $region62: #{gnn_forward.2} parent=35 // pred_fallthru
                _
            $region36: #{gnn_forward.2} parent=31 // pred_fallthru
              _
            // Predicated region
            $region37: #{gnn_forward.2} parent=31 // pred_check
              _
            $region38: #{gnn_forward.2} parent=31 // pred_check_branch
              %214 = sbr.rel target = $region40
            $region39: #{gnn_forward.2} parent=31 // pred_region
              loop: start=0, step=1, limit=1
              $region41: #{gnn_forward.2} parent=39 // loop_pre_header
                _
              $region42: #{gnn_forward.2} parent=39 // loop_header
                %s217 = sphi 0, %s221
                %p218 = scmp.ge.s32.totalorder %s217, 1
                %s222 = sphi %s208, %s208
                %s223 = sphi %s202, %s202
              $region43: #{gnn_forward.2} parent=39 // loop_header_branch
                %220 = sbr.rel (%p218) target = $region47
              $region44: #{gnn_forward.2} parent=39 // loop_body
                %v224 = vld [vmem:[%s222] sm:$0xff]
                %225 = vst [vmem:[%s223] sm:$0xff] %v224
                %v226 = vld [vmem:[%s222 + $0x10] sm:$0xff]
                %227 = vst [vmem:[%s223 + $0x8] sm:$0xff] %v226
                %v228 = vld [vmem:[%s222 + $0x20] sm:$0xff]
                %229 = vst [vmem:[%s223 + $0x10] sm:$0xff] %v228
                %v230 = vld [vmem:[%s222 + $0x30] sm:$0xff]
                %231 = vst [vmem:[%s223 + $0x18] sm:$0xff] %v230
                %v232 = vld [vmem:[%s222 + $0x40] sm:$0xff]
                %233 = vst [vmem:[%s223 + $0x20] sm:$0xff] %v232
                %v234 = vld [vmem:[%s222 + $0x50] sm:$0xff]
                %235 = vst [vmem:[%s223 + $0x28] sm:$0xff] %v234
                %v236 = vld [vmem:[%s222 + $0x60] sm:$0xff]
                %237 = vst [vmem:[%s223 + $0x30] sm:$0xff] %v236
                %v238 = vld [vmem:[%s222 + $0x70] sm:$0xff]
                %239 = vst [vmem:[%s223 + $0x38] sm:$0xff] %v238
                %v240 = vld [vmem:[%s222 + $0x80] sm:$0xff]
                %241 = vst [vmem:[%s223 + $0x40] sm:$0xff] %v240
                %v242 = vld [vmem:[%s222 + $0x90] sm:$0xff]
                %243 = vst [vmem:[%s223 + $0x48] sm:$0xff] %v242
                %v244 = vld [vmem:[%s222 + $0xa0] sm:$0xff]
                %245 = vst [vmem:[%s223 + $0x50] sm:$0xff] %v244
                %v246 = vld [vmem:[%s222 + $0xb0] sm:$0xff]
                %247 = vst [vmem:[%s223 + $0x58] sm:$0xff] %v246
                %v248 = vld [vmem:[%s222 + $0xc0] sm:$0xff]
                %249 = vst [vmem:[%s223 + $0x60] sm:$0xff] %v248
                %v250 = vld [vmem:[%s222 + $0xd0] sm:$0xff]
                %251 = vst [vmem:[%s223 + $0x68] sm:$0xff] %v250
                %v252 = vld [vmem:[%s222 + $0xe0] sm:$0xff]
                %253 = vst [vmem:[%s223 + $0x70] sm:$0xff] %v252
                %v254 = vld [vmem:[%s222 + $0xf0] sm:$0xff]
                %255 = vst [vmem:[%s223 + $0x78] sm:$0xff] %v254
                %v256 = vld [vmem:[%s222 + $0x100] sm:$0xff]
                %257 = vst [vmem:[%s223 + $0x80] sm:$0xff] %v256
                %v258 = vld [vmem:[%s222 + $0x110] sm:$0xff]
                %259 = vst [vmem:[%s223 + $0x88] sm:$0xff] %v258
                %v260 = vld [vmem:[%s222 + $0x120] sm:$0xff]
                %261 = vst [vmem:[%s223 + $0x90] sm:$0xff] %v260
                %v262 = vld [vmem:[%s222 + $0x130] sm:$0xff]
                %263 = vst [vmem:[%s223 + $0x98] sm:$0xff] %v262
                %v264 = vld [vmem:[%s222 + $0x140] sm:$0xff]
                %265 = vst [vmem:[%s223 + $0xa0] sm:$0xff] %v264
                %v266 = vld [vmem:[%s222 + $0x150] sm:$0xff]
                %267 = vst [vmem:[%s223 + $0xa8] sm:$0xff] %v266
                %v268 = vld [vmem:[%s222 + $0x160] sm:$0xff]
                %269 = vst [vmem:[%s223 + $0xb0] sm:$0xff] %v268
                %v270 = vld [vmem:[%s222 + $0x170] sm:$0xff]
                %271 = vst [vmem:[%s223 + $0xb8] sm:$0xff] %v270
                %v272 = vld [vmem:[%s222 + $0x180] sm:$0xff]
                %273 = vst [vmem:[%s223 + $0xc0] sm:$0xff] %v272
                %v274 = vld [vmem:[%s222 + $0x190] sm:$0xff]
                %275 = vst [vmem:[%s223 + $0xc8] sm:$0xff] %v274
                %v276 = vld [vmem:[%s222 + $0x1a0] sm:$0xff]
                %277 = vst [vmem:[%s223 + $0xd0] sm:$0xff] %v276
                %v278 = vld [vmem:[%s222 + $0x1b0] sm:$0xff]
                %279 = vst [vmem:[%s223 + $0xd8] sm:$0xff] %v278
                %v280 = vld [vmem:[%s222 + $0x1c0] sm:$0xff]
                %281 = vst [vmem:[%s223 + $0xe0] sm:$0xff] %v280
                %v282 = vld [vmem:[%s222 + $0x1d0] sm:$0xff]
                %283 = vst [vmem:[%s223 + $0xe8] sm:$0xff] %v282
                %v284 = vld [vmem:[%s222 + $0x1e0] sm:$0xff]
                %285 = vst [vmem:[%s223 + $0xf0] sm:$0xff] %v284
                %v286 = vld [vmem:[%s222 + $0x1f0] sm:$0xff]
                %287 = vst [vmem:[%s223 + $0xf8] sm:$0xff] %v286
              $region45: #{gnn_forward.2} parent=39 // loop_footer
                %s221 = sadd.s32 1, %s217
              $region46: #{gnn_forward.2} parent=39 // loop_footer_branch
                %216 = sbr.rel target = $region42
              $region47: #{gnn_forward.2} parent=39 // loop_exit
                _
            $region40: #{gnn_forward.2} parent=31 // pred_fallthru
              _
          $region32: #{gnn_forward.2} parent=27 // pred_fallthru
            _
          %364 = vnop
        $region28: #{gnn_forward.2} parent=23 // pred_fallthru
          _
        // Predicated region
        $region63: #{gnn_forward.2} parent=23 // pred_check
          %p365 = pneg %p71
        $region64: #{gnn_forward.2} parent=23 // pred_check_branch
          %367 = sbr.rel (%p365) target = $region66
        $region65: #{gnn_forward.2} parent=23 // pred_region
          %s368 = smul.u32 32, %s19
          %p369 = scmp.lt.s32.totalorder %s368, 63
          %s370 = scalar_select %p369, %s368, 63
          %s371 = smul.addr %s370, 4
          %s372 = scalar_lea.vmem %s1, %s371
          %s373 = smul.u32 32, %s19
        $region66: #{gnn_forward.2} parent=23 // pred_fallthru
          _
        // Predicated region
        $region67: #{gnn_forward.2} parent=23 // pred_check
          %p374 = pneg %p97
        $region68: #{gnn_forward.2} parent=23 // pred_check_branch
          %376 = sbr.rel (%p374) target = $region70
        $region69: #{gnn_forward.2} parent=23 // pred_region
          %s377 = smul.u32 32, %s18
          %p378 = scmp.lt.s32.totalorder %s377, 63
          %s379 = scalar_select %p378, %s377, 63
          %s380 = smul.addr %s379, 4
          %s381 = scalar_lea.vmem %s2, %s380
          %s382 = smul.u32 32, %s18
        $region70: #{gnn_forward.2} parent=23 // pred_fallthru
          _
      $region24: #{gnn_forward.2} parent=5 // pred_fallthru
        _
      %p383 = scmp.le.s32.totalorder 1, %s11
      %p384 = scmp.lt.s32.totalorder %s11, 5
      %p385 = pnand %p383, %p384
      %p386 = pneg %p385
      // Predicated region
      $region71: #{gnn_forward.2} parent=5 // pred_check
        _
      $region72: #{gnn_forward.2} parent=5 // pred_check_branch
        %388 = sbr.rel (%p385) target = $region74
      $region73: #{gnn_forward.2} parent=5 // pred_region
        %s389 = ssub.s32 %s11, 1
        %s390 = sand.u32 %s38, 1
        %s391 = sand.u32 %s38, 1
        %s392 = smul.addr %s391, 256
        %s393 = scalar_lea.vmem [#allocation3], %s392
        // Predicated region
        $region75: #{gnn_forward.2} parent=73 // pred_check
          %p394 = pneg %p51
        $region76: #{gnn_forward.2} parent=73 // pred_check_branch
          %396 = sbr.rel (%p394) target = $region78
        $region77: #{gnn_forward.2} parent=73 // pred_region
          _
        $region78: #{gnn_forward.2} parent=73 // pred_fallthru
          _
        %s397 = sand.u32 %s38, 1
        %s398 = sand.u32 %s38, 1
        %s399 = smul.addr %s398, 256
        %s400 = scalar_lea.vmem [#allocation3], %s399
        %p401 = pneg %p51
        %p402 = pneg %p48
        %s403 = smul.u32 32, %s21
        %p404 = scmp.lt.s32.totalorder %s403, 63
        %s405 = scalar_select %p404, %s403, 63
        %s406 = smul.addr %s405, 4
        %s407 = scalar_lea.vmem %s1, %s406
        %p408 = pneg %p77
        %p409 = pneg %p74
        %s410 = smul.u32 32, %s20
        %p411 = scmp.lt.s32.totalorder %s410, 63
        %s412 = scalar_select %p411, %s410, 63
        %s413 = smul.addr %s412, 4
        %s414 = scalar_lea.vmem %s2, %s413
        %p415 = pneg %p103
        %p416 = pneg %p100
        %p417 = pneg %p124
        %p418 = pneg %p121
        %p419 = pneg %p145
        %p420 = pneg %p142
        %p421 = pneg %p171
        %p422 = pneg %p168
        %s423 = smul.u32 32, %s20
        %p424 = scmp.lt.s32.totalorder %s423, 63
        %s425 = scalar_select %p424, %s423, 63
        %s426 = smul.addr %s425, 4
        %s427 = scalar_lea.vmem %s5, %s426
        %s428 = smul.u32 32, %s20
        %s429 = smul.u32 2, %s21
        %s430 = smul.u32 32, %s21
        %p431 = scmp.lt.s32.totalorder %s430, 63
        %s432 = scalar_select %p431, %s430, 63
        %s433 = smul.addr %s432, 4
        %s434 = scalar_lea.vmem %s1, %s433
        %s435 = smul.u32 32, %s21
        %s436 = smul.u32 32, %s20
        %p437 = scmp.lt.s32.totalorder %s436, 63
        %s438 = scalar_select %p437, %s436, 63
        %s439 = smul.addr %s438, 4
        %s440 = scalar_lea.vmem %s2, %s439
        %s441 = smul.u32 32, %s20
        %s442 = smul.u32 32, %s20
        %p443 = scmp.lt.s32.totalorder %s442, 63
        %s444 = scalar_select %p443, %s442, 63
        %s445 = smul.addr %s444, 4
        %s446 = scalar_lea.vmem %s5, %s445
        %s447 = smul.u32 32, %s20
        %p449 = scmp.eq.s32.totalorder %s21, 0
        // Predicated region
        $region79: #{gnn_forward.2} parent=73 // pred_check
          %p450 = pneg %p449
        $region80: #{gnn_forward.2} parent=73 // pred_check_branch
          %452 = sbr.rel (%p450) target = $region82
        $region81: #{gnn_forward.2} parent=73 // pred_region
          %453 = vst [vmem:[#allocation2] sm:$0xff] 0.0
          %454 = vst [vmem:[#allocation2 + $0x8] sm:$0xff] 0.0
          %455 = vst [vmem:[#allocation2 + $0x10] sm:$0xff] 0.0
          %456 = vst [vmem:[#allocation2 + $0x18] sm:$0xff] 0.0
          %457 = vst [vmem:[#allocation2 + $0x20] sm:$0xff] 0.0
          %458 = vst [vmem:[#allocation2 + $0x28] sm:$0xff] 0.0
          %459 = vst [vmem:[#allocation2 + $0x30] sm:$0xff] 0.0
          %460 = vst [vmem:[#allocation2 + $0x38] sm:$0xff] 0.0
          %461 = vst [vmem:[#allocation2 + $0x40] sm:$0xff] 0.0
          %462 = vst [vmem:[#allocation2 + $0x48] sm:$0xff] 0.0
          %463 = vst [vmem:[#allocation2 + $0x50] sm:$0xff] 0.0
          %464 = vst [vmem:[#allocation2 + $0x58] sm:$0xff] 0.0
          %465 = vst [vmem:[#allocation2 + $0x60] sm:$0xff] 0.0
          %466 = vst [vmem:[#allocation2 + $0x68] sm:$0xff] 0.0
          %467 = vst [vmem:[#allocation2 + $0x70] sm:$0xff] 0.0
          %468 = vst [vmem:[#allocation2 + $0x78] sm:$0xff] 0.0
          %469 = vst [vmem:[#allocation2 + $0x80] sm:$0xff] 0.0
          %470 = vst [vmem:[#allocation2 + $0x88] sm:$0xff] 0.0
          %471 = vst [vmem:[#allocation2 + $0x90] sm:$0xff] 0.0
          %472 = vst [vmem:[#allocation2 + $0x98] sm:$0xff] 0.0
          %473 = vst [vmem:[#allocation2 + $0xa0] sm:$0xff] 0.0
          %474 = vst [vmem:[#allocation2 + $0xa8] sm:$0xff] 0.0
          %475 = vst [vmem:[#allocation2 + $0xb0] sm:$0xff] 0.0
          %476 = vst [vmem:[#allocation2 + $0xb8] sm:$0xff] 0.0
          %477 = vst [vmem:[#allocation2 + $0xc0] sm:$0xff] 0.0
          %478 = vst [vmem:[#allocation2 + $0xc8] sm:$0xff] 0.0
          %479 = vst [vmem:[#allocation2 + $0xd0] sm:$0xff] 0.0
          %480 = vst [vmem:[#allocation2 + $0xd8] sm:$0xff] 0.0
          %481 = vst [vmem:[#allocation2 + $0xe0] sm:$0xff] 0.0
          %482 = vst [vmem:[#allocation2 + $0xe8] sm:$0xff] 0.0
          %483 = vst [vmem:[#allocation2 + $0xf0] sm:$0xff] 0.0
          %484 = vst [vmem:[#allocation2 + $0xf8] sm:$0xff] 0.0
        $region82: #{gnn_forward.2} parent=73 // pred_fallthru
          _
        %v485 = vld [vmem:[#allocation2] sm:$0xff]
        %v486 = vld [vmem:[#allocation2 + $0x8] sm:$0xff]
        %v487 = vld [vmem:[#allocation2 + $0x10] sm:$0xff]
        %v488 = vld [vmem:[#allocation2 + $0x18] sm:$0xff]
        %v489 = vld [vmem:[#allocation2 + $0x20] sm:$0xff]
        %v490 = vld [vmem:[#allocation2 + $0x28] sm:$0xff]
        %v491 = vld [vmem:[#allocation2 + $0x30] sm:$0xff]
        %v492 = vld [vmem:[#allocation2 + $0x38] sm:$0xff]
        %v493 = vld [vmem:[#allocation2 + $0x40] sm:$0xff]
        %v494 = vld [vmem:[#allocation2 + $0x48] sm:$0xff]
        %v495 = vld [vmem:[#allocation2 + $0x50] sm:$0xff]
        %v496 = vld [vmem:[#allocation2 + $0x58] sm:$0xff]
        %v497 = vld [vmem:[#allocation2 + $0x60] sm:$0xff]
        %v498 = vld [vmem:[#allocation2 + $0x68] sm:$0xff]
        %v499 = vld [vmem:[#allocation2 + $0x70] sm:$0xff]
        %v500 = vld [vmem:[#allocation2 + $0x78] sm:$0xff]
        %v501 = vld [vmem:[#allocation2 + $0x80] sm:$0xff]
        %v502 = vld [vmem:[#allocation2 + $0x88] sm:$0xff]
        %v503 = vld [vmem:[#allocation2 + $0x90] sm:$0xff]
        %v504 = vld [vmem:[#allocation2 + $0x98] sm:$0xff]
        %v505 = vld [vmem:[#allocation2 + $0xa0] sm:$0xff]
        %v506 = vld [vmem:[#allocation2 + $0xa8] sm:$0xff]
        %v507 = vld [vmem:[#allocation2 + $0xb0] sm:$0xff]
        %v508 = vld [vmem:[#allocation2 + $0xb8] sm:$0xff]
        %v509 = vld [vmem:[#allocation2 + $0xc0] sm:$0xff]
        %v510 = vld [vmem:[#allocation2 + $0xc8] sm:$0xff]
        %v511 = vld [vmem:[#allocation2 + $0xd0] sm:$0xff]
        %v512 = vld [vmem:[#allocation2 + $0xd8] sm:$0xff]
        %v513 = vld [vmem:[#allocation2 + $0xe0] sm:$0xff]
        %v514 = vld [vmem:[#allocation2 + $0xe8] sm:$0xff]
        %v515 = vld [vmem:[#allocation2 + $0xf0] sm:$0xff]
        %v516 = vld [vmem:[#allocation2 + $0xf8] sm:$0xff]
        %v517 = vld [vmem:[%s393] sm:$0xff]
        %v518 = vld [vmem:[%s393 + $0x8] sm:$0xff]
        %v519 = vld [vmem:[%s393 + $0x10] sm:$0xff]
        %v520 = vld [vmem:[%s393 + $0x18] sm:$0xff]
        %v521 = vld [vmem:[%s393 + $0x20] sm:$0xff]
        %v522 = vld [vmem:[%s393 + $0x28] sm:$0xff]
        %v523 = vld [vmem:[%s393 + $0x30] sm:$0xff]
        %v524 = vld [vmem:[%s393 + $0x38] sm:$0xff]
        %v525 = vld [vmem:[%s393 + $0x40] sm:$0xff]
        %v526 = vld [vmem:[%s393 + $0x48] sm:$0xff]
        %v527 = vld [vmem:[%s393 + $0x50] sm:$0xff]
        %v528 = vld [vmem:[%s393 + $0x58] sm:$0xff]
        %v529 = vld [vmem:[%s393 + $0x60] sm:$0xff]
        %v530 = vld [vmem:[%s393 + $0x68] sm:$0xff]
        %v531 = vld [vmem:[%s393 + $0x70] sm:$0xff]
        %v532 = vld [vmem:[%s393 + $0x78] sm:$0xff]
        %v533 = vld [vmem:[%s393 + $0x80] sm:$0xff]
        %v534 = vld [vmem:[%s393 + $0x88] sm:$0xff]
        %v535 = vld [vmem:[%s393 + $0x90] sm:$0xff]
        %v536 = vld [vmem:[%s393 + $0x98] sm:$0xff]
        %v537 = vld [vmem:[%s393 + $0xa0] sm:$0xff]
        %v538 = vld [vmem:[%s393 + $0xa8] sm:$0xff]
        %v539 = vld [vmem:[%s393 + $0xb0] sm:$0xff]
        %v540 = vld [vmem:[%s393 + $0xb8] sm:$0xff]
        %v541 = vld [vmem:[%s393 + $0xc0] sm:$0xff]
        %v542 = vld [vmem:[%s393 + $0xc8] sm:$0xff]
        %v543 = vld [vmem:[%s393 + $0xd0] sm:$0xff]
        %v544 = vld [vmem:[%s393 + $0xd8] sm:$0xff]
        %v545 = vld [vmem:[%s393 + $0xe0] sm:$0xff]
        %v546 = vld [vmem:[%s393 + $0xe8] sm:$0xff]
        %v547 = vld [vmem:[%s393 + $0xf0] sm:$0xff]
        %v548 = vld [vmem:[%s393 + $0xf8] sm:$0xff]
        %v549 = vld [vmem:[%s434] sm:$0xf]
        %v550 = vld [vmem:[%s434 + $0x4] sm:$0xf]
        %v551 = vld [vmem:[%s434 + $0x8] sm:$0xf]
        %v552 = vld [vmem:[%s434 + $0xc] sm:$0xf]
        %v553 = vld [vmem:[%s434 + $0x10] sm:$0xf]
        %v554 = vld [vmem:[%s434 + $0x14] sm:$0xf]
        %v555 = vld [vmem:[%s434 + $0x18] sm:$0xf]
        %v556 = vld [vmem:[%s434 + $0x1c] sm:$0xf]
        %v557 = vld [vmem:[%s434 + $0x20] sm:$0xf]
        %v558 = vld [vmem:[%s434 + $0x24] sm:$0xf]
        %v559 = vld [vmem:[%s434 + $0x28] sm:$0xf]
        %v560 = vld [vmem:[%s434 + $0x2c] sm:$0xf]
        %v561 = vld [vmem:[%s434 + $0x30] sm:$0xf]
        %v562 = vld [vmem:[%s434 + $0x34] sm:$0xf]
        %v563 = vld [vmem:[%s434 + $0x38] sm:$0xf]
        %v564 = vld [vmem:[%s434 + $0x3c] sm:$0xf]
        %v565 = vld [vmem:[%s434 + $0x40] sm:$0xf]
        %v566 = vld [vmem:[%s434 + $0x44] sm:$0xf]
        %v567 = vld [vmem:[%s434 + $0x48] sm:$0xf]
        %v568 = vld [vmem:[%s434 + $0x4c] sm:$0xf]
        %v569 = vld [vmem:[%s434 + $0x50] sm:$0xf]
        %v570 = vld [vmem:[%s434 + $0x54] sm:$0xf]
        %v571 = vld [vmem:[%s434 + $0x58] sm:$0xf]
        %v572 = vld [vmem:[%s434 + $0x5c] sm:$0xf]
        %v573 = vld [vmem:[%s434 + $0x60] sm:$0xf]
        %v574 = vld [vmem:[%s434 + $0x64] sm:$0xf]
        %v575 = vld [vmem:[%s434 + $0x68] sm:$0xf]
        %v576 = vld [vmem:[%s434 + $0x6c] sm:$0xf]
        %v577 = vld [vmem:[%s434 + $0x70] sm:$0xf]
        %v578 = vld [vmem:[%s434 + $0x74] sm:$0xf]
        %v579 = vld [vmem:[%s434 + $0x78] sm:$0xf]
        %v580 = vld [vmem:[%s434 + $0x7c] sm:$0xf]
        %v613 = vunpack.c.l.b16 %v517
        %v614 = vunpack.c.h.b16 %v517
        %v615 = vunpack.c.l.b16 %v518
        %v616 = vunpack.c.h.b16 %v518
        %v617 = vunpack.c.l.b16 %v519
        %v618 = vunpack.c.h.b16 %v519
        %v619 = vunpack.c.l.b16 %v520
        %v620 = vunpack.c.h.b16 %v520
        %v621 = vunpack.c.l.b16 %v521
        %v622 = vunpack.c.h.b16 %v521
        %v623 = vunpack.c.l.b16 %v522
        %v624 = vunpack.c.h.b16 %v522
        %v625 = vunpack.c.l.b16 %v523
        %v626 = vunpack.c.h.b16 %v523
        %v627 = vunpack.c.l.b16 %v524
        %v628 = vunpack.c.h.b16 %v524
        %v629 = vunpack.c.l.b16 %v525
        %v630 = vunpack.c.h.b16 %v525
        %v631 = vunpack.c.l.b16 %v526
        %v632 = vunpack.c.h.b16 %v526
        %v633 = vunpack.c.l.b16 %v527
        %v634 = vunpack.c.h.b16 %v527
        %v635 = vunpack.c.l.b16 %v528
        %v636 = vunpack.c.h.b16 %v528
        %v637 = vunpack.c.l.b16 %v529
        %v638 = vunpack.c.h.b16 %v529
        %v639 = vunpack.c.l.b16 %v530
        %v640 = vunpack.c.h.b16 %v530
        %v641 = vunpack.c.l.b16 %v531
        %v642 = vunpack.c.h.b16 %v531
        %v643 = vunpack.c.l.b16 %v532
        %v644 = vunpack.c.h.b16 %v532
        %v645 = vunpack.c.l.b16 %v533
        %v646 = vunpack.c.h.b16 %v533
        %v647 = vunpack.c.l.b16 %v534
        %v648 = vunpack.c.h.b16 %v534
        %v649 = vunpack.c.l.b16 %v535
        %v650 = vunpack.c.h.b16 %v535
        %v651 = vunpack.c.l.b16 %v536
        %v652 = vunpack.c.h.b16 %v536
        %v653 = vunpack.c.l.b16 %v537
        %v654 = vunpack.c.h.b16 %v537
        %v655 = vunpack.c.l.b16 %v538
        %v656 = vunpack.c.h.b16 %v538
        %v657 = vunpack.c.l.b16 %v539
        %v658 = vunpack.c.h.b16 %v539
        %v659 = vunpack.c.l.b16 %v540
        %v660 = vunpack.c.h.b16 %v540
        %v661 = vunpack.c.l.b16 %v541
        %v662 = vunpack.c.h.b16 %v541
        %v663 = vunpack.c.l.b16 %v542
        %v664 = vunpack.c.h.b16 %v542
        %v665 = vunpack.c.l.b16 %v543
        %v666 = vunpack.c.h.b16 %v543
        %v667 = vunpack.c.l.b16 %v544
        %v668 = vunpack.c.h.b16 %v544
        %v669 = vunpack.c.l.b16 %v545
        %v670 = vunpack.c.h.b16 %v545
        %v671 = vunpack.c.l.b16 %v546
        %v672 = vunpack.c.h.b16 %v546
        %v673 = vunpack.c.l.b16 %v547
        %v674 = vunpack.c.h.b16 %v547
        %v675 = vunpack.c.l.b16 %v548
        %v676 = vunpack.c.h.b16 %v548
        %v677 = vpack.c.b16 %v615, %v613
        %v678 = vpack.c.b16 %v616, %v614
        %v679 = vpack.c.b16 %v619, %v617
        %v680 = vpack.c.b16 %v620, %v618
        %v681 = vpack.c.b16 %v623, %v621
        %v682 = vpack.c.b16 %v624, %v622
        %v683 = vpack.c.b16 %v627, %v625
        %v684 = vpack.c.b16 %v628, %v626
        %v685 = vpack.c.b16 %v631, %v629
        %v686 = vpack.c.b16 %v632, %v630
        %v687 = vpack.c.b16 %v635, %v633
        %v688 = vpack.c.b16 %v636, %v634
        %v689 = vpack.c.b16 %v639, %v637
        %v690 = vpack.c.b16 %v640, %v638
        %v691 = vpack.c.b16 %v643, %v641
        %v692 = vpack.c.b16 %v644, %v642
        %v693 = vpack.c.b16 %v647, %v645
        %v694 = vpack.c.b16 %v648, %v646
        %v695 = vpack.c.b16 %v651, %v649
        %v696 = vpack.c.b16 %v652, %v650
        %v697 = vpack.c.b16 %v655, %v653
        %v698 = vpack.c.b16 %v656, %v654
        %v699 = vpack.c.b16 %v659, %v657
        %v700 = vpack.c.b16 %v660, %v658
        %v701 = vpack.c.b16 %v663, %v661
        %v702 = vpack.c.b16 %v664, %v662
        %v703 = vpack.c.b16 %v667, %v665
        %v704 = vpack.c.b16 %v668, %v666
        %v705 = vpack.c.b16 %v671, %v669
        %v706 = vpack.c.b16 %v672, %v670
        %v707 = vpack.c.b16 %v675, %v673
        %v708 = vpack.c.b16 %v676, %v674
        %v773 = vunpack.c.l.b16 %v549
        %v774 = vunpack.c.l.b16 %v550
        %v775 = vunpack.c.l.b16 %v551
        %v776 = vunpack.c.l.b16 %v552
        %v777 = vunpack.c.l.b16 %v553
        %v778 = vunpack.c.l.b16 %v554
        %v779 = vunpack.c.l.b16 %v555
        %v780 = vunpack.c.l.b16 %v556
        %v781 = vunpack.c.l.b16 %v557
        %v782 = vunpack.c.l.b16 %v558
        %v783 = vunpack.c.l.b16 %v559
        %v784 = vunpack.c.l.b16 %v560
        %v785 = vunpack.c.l.b16 %v561
        %v786 = vunpack.c.l.b16 %v562
        %v787 = vunpack.c.l.b16 %v563
        %v788 = vunpack.c.l.b16 %v564
        %v789 = vunpack.c.l.b16 %v565
        %v790 = vunpack.c.l.b16 %v566
        %v791 = vunpack.c.l.b16 %v567
        %v792 = vunpack.c.l.b16 %v568
        %v793 = vunpack.c.l.b16 %v569
        %v794 = vunpack.c.l.b16 %v570
        %v795 = vunpack.c.l.b16 %v571
        %v796 = vunpack.c.l.b16 %v572
        %v797 = vunpack.c.l.b16 %v573
        %v798 = vunpack.c.l.b16 %v574
        %v799 = vunpack.c.l.b16 %v575
        %v800 = vunpack.c.l.b16 %v576
        %v801 = vunpack.c.l.b16 %v577
        %v802 = vunpack.c.l.b16 %v578
        %v803 = vunpack.c.l.b16 %v579
        %v804 = vunpack.c.l.b16 %v580
        %v805 = vpack.c.b16 %v774, %v773
        %v806 = vpack.c.b16 %v776, %v775
        %v807 = vpack.c.b16 %v778, %v777
        %v808 = vpack.c.b16 %v780, %v779
        %v809 = vpack.c.b16 %v782, %v781
        %v810 = vpack.c.b16 %v784, %v783
        %v811 = vpack.c.b16 %v786, %v785
        %v812 = vpack.c.b16 %v788, %v787
        %v813 = vpack.c.b16 %v790, %v789
        %v814 = vpack.c.b16 %v792, %v791
        %v815 = vpack.c.b16 %v794, %v793
        %v816 = vpack.c.b16 %v796, %v795
        %v817 = vpack.c.b16 %v798, %v797
        %v818 = vpack.c.b16 %v800, %v799
        %v819 = vpack.c.b16 %v802, %v801
        %v820 = vpack.c.b16 %v804, %v803
        %837 = vmatprep.subr.bf16.mxu0 0
        %838 = vmatpush1.bf16.msra.mxu0 %v805
        %839 = vmatprep.subr.bf16.mxu0 0
        %840 = vmatpush1.bf16.msra.mxu0 %v806
        %841 = vmatprep.subr.bf16.mxu0 0
        %842 = vmatpush1.bf16.msra.mxu0 %v807
        %843 = vmatprep.subr.bf16.mxu0 0
        %844 = vmatpush1.bf16.msra.mxu0 %v808
        %845 = vmatprep.subr.bf16.mxu0 0
        %846 = vmatpush1.bf16.msra.mxu0 %v809
        %847 = vmatprep.subr.bf16.mxu0 0
        %848 = vmatpush1.bf16.msra.mxu0 %v810
        %849 = vmatprep.subr.bf16.mxu0 0
        %850 = vmatpush1.bf16.msra.mxu0 %v811
        %851 = vmatprep.subr.bf16.mxu0 0
        %852 = vmatpush1.bf16.msra.mxu0 %v812
        %853 = vmatprep.subr.bf16.mxu0 0
        %854 = vmatpush1.bf16.msra.mxu0 %v813
        %855 = vmatprep.subr.bf16.mxu0 0
        %856 = vmatpush1.bf16.msra.mxu0 %v814
        %857 = vmatprep.subr.bf16.mxu0 0
        %858 = vmatpush1.bf16.msra.mxu0 %v815
        %859 = vmatprep.subr.bf16.mxu0 0
        %860 = vmatpush1.bf16.msra.mxu0 %v816
        %861 = vmatprep.subr.bf16.mxu0 0
        %862 = vmatpush1.bf16.msra.mxu0 %v817
        %863 = vmatprep.subr.bf16.mxu0 0
        %864 = vmatpush1.bf16.msra.mxu0 %v818
        %865 = vmatprep.subr.bf16.mxu0 0
        %866 = vmatpush1.bf16.msra.mxu0 %v819
        %867 = vmatprep.subr.bf16.mxu0 0
        %868 = vmatpush1.bf16.msra.mxu0 %v820
        %869 = vmatprep.mubr.bf16.mxu0 %v678
        %870 = vmatmul.mubr.bf16.gmra.mrb[0].mxu0 %v677
        %v871 = vpop.f32.mrb[0].mxu0
        %v872 = vadd.f32 0.0, %v871
        %v873 = vpop.f32.mrb[0].mxu0
        %v874 = vpop.f32.mrb[0].mxu0
        %v875 = vadd.f32 0.0, %v874
        %v876 = vpop.f32.mrb[0].mxu0
        %877 = vmatprep.mubr.bf16.mxu0 %v680
        %878 = vmatmul.mubr.bf16.gmra.mrb[0].mxu0 %v679
        %v879 = vpop.f32.mrb[0].mxu0
        %v880 = vadd.f32 0.0, %v879
        %v881 = vpop.f32.mrb[0].mxu0
        %v882 = vpop.f32.mrb[0].mxu0
        %v883 = vadd.f32 0.0, %v882
        %v884 = vpop.f32.mrb[0].mxu0
        %885 = vmatprep.mubr.bf16.mxu0 %v682
        %886 = vmatmul.mubr.bf16.gmra.mrb[0].mxu0 %v681
        %v887 = vpop.f32.mrb[0].mxu0
        %v888 = vadd.f32 0.0, %v887
        %v889 = vpop.f32.mrb[0].mxu0
        %v890 = vpop.f32.mrb[0].mxu0
        %v891 = vadd.f32 0.0, %v890
        %v892 = vpop.f32.mrb[0].mxu0
        %893 = vmatprep.mubr.bf16.mxu0 %v684
        %894 = vmatmul.mubr.bf16.gmra.mrb[0].mxu0 %v683
        %v895 = vpop.f32.mrb[0].mxu0
        %v896 = vadd.f32 0.0, %v895
        %v897 = vpop.f32.mrb[0].mxu0
        %v898 = vpop.f32.mrb[0].mxu0
        %v899 = vadd.f32 0.0, %v898
        %v900 = vpop.f32.mrb[0].mxu0
        %901 = vmatprep.mubr.bf16.mxu0 %v686
        %902 = vmatmul.mubr.bf16.gmra.mrb[0].mxu0 %v685
        %v903 = vpop.f32.mrb[0].mxu0
        %v904 = vadd.f32 0.0, %v903
        %v905 = vpop.f32.mrb[0].mxu0
        %v906 = vpop.f32.mrb[0].mxu0
        %v907 = vadd.f32 0.0, %v906
        %v908 = vpop.f32.mrb[0].mxu0
        %909 = vmatprep.mubr.bf16.mxu0 %v688
        %910 = vmatmul.mubr.bf16.gmra.mrb[0].mxu0 %v687
        %v911 = vpop.f32.mrb[0].mxu0
        %v912 = vadd.f32 0.0, %v911
        %v913 = vpop.f32.mrb[0].mxu0
        %v914 = vpop.f32.mrb[0].mxu0
        %v915 = vadd.f32 0.0, %v914
        %v916 = vpop.f32.mrb[0].mxu0
        %917 = vmatprep.mubr.bf16.mxu0 %v690
        %918 = vmatmul.mubr.bf16.gmra.mrb[0].mxu0 %v689
        %v919 = vpop.f32.mrb[0].mxu0
        %v920 = vadd.f32 0.0, %v919
        %v921 = vpop.f32.mrb[0].mxu0
        %v922 = vpop.f32.mrb[0].mxu0
        %v923 = vadd.f32 0.0, %v922
        %v924 = vpop.f32.mrb[0].mxu0
        %925 = vmatprep.mubr.bf16.mxu0 %v692
        %926 = vmatmul.mubr.bf16.gmra.mrb[0].mxu0 %v691
        %v927 = vpop.f32.mrb[0].mxu0
        %v928 = vadd.f32 0.0, %v927
        %v929 = vpop.f32.mrb[0].mxu0
        %v930 = vpop.f32.mrb[0].mxu0
        %v931 = vadd.f32 0.0, %v930
        %v932 = vpop.f32.mrb[0].mxu0
        %933 = vmatprep.mubr.bf16.mxu0 %v694
        %934 = vmatmul.mubr.bf16.gmra.mrb[0].mxu0 %v693
        %v935 = vpop.f32.mrb[0].mxu0
        %v936 = vadd.f32 0.0, %v935
        %v937 = vpop.f32.mrb[0].mxu0
        %v938 = vpop.f32.mrb[0].mxu0
        %v939 = vadd.f32 0.0, %v938
        %v940 = vpop.f32.mrb[0].mxu0
        %941 = vmatprep.mubr.bf16.mxu0 %v696
        %942 = vmatmul.mubr.bf16.gmra.mrb[0].mxu0 %v695
        %v943 = vpop.f32.mrb[0].mxu0
        %v944 = vadd.f32 0.0, %v943
        %v945 = vpop.f32.mrb[0].mxu0
        %v946 = vpop.f32.mrb[0].mxu0
        %v947 = vadd.f32 0.0, %v946
        %v948 = vpop.f32.mrb[0].mxu0
        %949 = vmatprep.mubr.bf16.mxu0 %v698
        %950 = vmatmul.mubr.bf16.gmra.mrb[0].mxu0 %v697
        %v951 = vpop.f32.mrb[0].mxu0
        %v952 = vadd.f32 0.0, %v951
        %v953 = vpop.f32.mrb[0].mxu0
        %v954 = vpop.f32.mrb[0].mxu0
        %v955 = vadd.f32 0.0, %v954
        %v956 = vpop.f32.mrb[0].mxu0
        %957 = vmatprep.mubr.bf16.mxu0 %v700
        %958 = vmatmul.mubr.bf16.gmra.mrb[0].mxu0 %v699
        %v959 = vpop.f32.mrb[0].mxu0
        %v960 = vadd.f32 0.0, %v959
        %v961 = vpop.f32.mrb[0].mxu0
        %v962 = vpop.f32.mrb[0].mxu0
        %v963 = vadd.f32 0.0, %v962
        %v964 = vpop.f32.mrb[0].mxu0
        %965 = vmatprep.mubr.bf16.mxu0 %v702
        %966 = vmatmul.mubr.bf16.gmra.mrb[0].mxu0 %v701
        %v967 = vpop.f32.mrb[0].mxu0
        %v968 = vadd.f32 0.0, %v967
        %v969 = vpop.f32.mrb[0].mxu0
        %v970 = vpop.f32.mrb[0].mxu0
        %v971 = vadd.f32 0.0, %v970
        %v972 = vpop.f32.mrb[0].mxu0
        %973 = vmatprep.mubr.bf16.mxu0 %v704
        %974 = vmatmul.mubr.bf16.gmra.mrb[0].mxu0 %v703
        %v975 = vpop.f32.mrb[0].mxu0
        %v976 = vadd.f32 0.0, %v975
        %v977 = vpop.f32.mrb[0].mxu0
        %v978 = vpop.f32.mrb[0].mxu0
        %v979 = vadd.f32 0.0, %v978
        %v980 = vpop.f32.mrb[0].mxu0
        %981 = vmatprep.mubr.bf16.mxu0 %v706
        %982 = vmatmul.mubr.bf16.gmra.mrb[0].mxu0 %v705
        %v983 = vpop.f32.mrb[0].mxu0
        %v984 = vadd.f32 0.0, %v983
        %v985 = vpop.f32.mrb[0].mxu0
        %v986 = vpop.f32.mrb[0].mxu0
        %v987 = vadd.f32 0.0, %v986
        %v988 = vpop.f32.mrb[0].mxu0
        %989 = vmatprep.mubr.bf16.mxu0 %v708
        %990 = vmatmul.mubr.bf16.gmra.mrb[0].mxu0 %v707
        %v991 = vpop.f32.mrb[0].mxu0
        %v992 = vadd.f32 0.0, %v991
        %v993 = vpop.f32.mrb[0].mxu0
        %v994 = vpop.f32.mrb[0].mxu0
        %v995 = vadd.f32 0.0, %v994
        %v996 = vpop.f32.mrb[0].mxu0
        %997 = vdwg.mxu0
        %v998 = vadd.f32 %v485, %v872
        %v999 = vadd.f32 %v486, %v875
        %v1000 = vadd.f32 %v487, %v880
        %v1001 = vadd.f32 %v488, %v883
        %v1002 = vadd.f32 %v489, %v888
        %v1003 = vadd.f32 %v490, %v891
        %v1004 = vadd.f32 %v491, %v896
        %v1005 = vadd.f32 %v492, %v899
        %v1006 = vadd.f32 %v493, %v904
        %v1007 = vadd.f32 %v494, %v907
        %v1008 = vadd.f32 %v495, %v912
        %v1009 = vadd.f32 %v496, %v915
        %v1010 = vadd.f32 %v497, %v920
        %v1011 = vadd.f32 %v498, %v923
        %v1012 = vadd.f32 %v499, %v928
        %v1013 = vadd.f32 %v500, %v931
        %v1014 = vadd.f32 %v501, %v936
        %v1015 = vadd.f32 %v502, %v939
        %v1016 = vadd.f32 %v503, %v944
        %v1017 = vadd.f32 %v504, %v947
        %v1018 = vadd.f32 %v505, %v952
        %v1019 = vadd.f32 %v506, %v955
        %v1020 = vadd.f32 %v507, %v960
        %v1021 = vadd.f32 %v508, %v963
        %v1022 = vadd.f32 %v509, %v968
        %v1023 = vadd.f32 %v510, %v971
        %v1024 = vadd.f32 %v511, %v976
        %v1025 = vadd.f32 %v512, %v979
        %v1026 = vadd.f32 %v513, %v984
        %v1027 = vadd.f32 %v514, %v987
        %v1028 = vadd.f32 %v515, %v992
        %v1029 = vadd.f32 %v516, %v995
        %1030 = vst [vmem:[#allocation2] sm:$0xff] %v998
        %1031 = vst [vmem:[#allocation2 + $0x8] sm:$0xff] %v999
        %1032 = vst [vmem:[#allocation2 + $0x10] sm:$0xff] %v1000
        %1033 = vst [vmem:[#allocation2 + $0x18] sm:$0xff] %v1001
        %1034 = vst [vmem:[#allocation2 + $0x20] sm:$0xff] %v1002
        %1035 = vst [vmem:[#allocation2 + $0x28] sm:$0xff] %v1003
        %1036 = vst [vmem:[#allocation2 + $0x30] sm:$0xff] %v1004
        %1037 = vst [vmem:[#allocation2 + $0x38] sm:$0xff] %v1005
        %1038 = vst [vmem:[#allocation2 + $0x40] sm:$0xff] %v1006
        %1039 = vst [vmem:[#allocation2 + $0x48] sm:$0xff] %v1007
        %1040 = vst [vmem:[#allocation2 + $0x50] sm:$0xff] %v1008
        %1041 = vst [vmem:[#allocation2 + $0x58] sm:$0xff] %v1009
        %1042 = vst [vmem:[#allocation2 + $0x60] sm:$0xff] %v1010
        %1043 = vst [vmem:[#allocation2 + $0x68] sm:$0xff] %v1011
        %1044 = vst [vmem:[#allocation2 + $0x70] sm:$0xff] %v1012
        %1045 = vst [vmem:[#allocation2 + $0x78] sm:$0xff] %v1013
        %1046 = vst [vmem:[#allocation2 + $0x80] sm:$0xff] %v1014
        %1047 = vst [vmem:[#allocation2 + $0x88] sm:$0xff] %v1015
        %1048 = vst [vmem:[#allocation2 + $0x90] sm:$0xff] %v1016
        %1049 = vst [vmem:[#allocation2 + $0x98] sm:$0xff] %v1017
        %1050 = vst [vmem:[#allocation2 + $0xa0] sm:$0xff] %v1018
        %1051 = vst [vmem:[#allocation2 + $0xa8] sm:$0xff] %v1019
        %1052 = vst [vmem:[#allocation2 + $0xb0] sm:$0xff] %v1020
        %1053 = vst [vmem:[#allocation2 + $0xb8] sm:$0xff] %v1021
        %1054 = vst [vmem:[#allocation2 + $0xc0] sm:$0xff] %v1022
        %1055 = vst [vmem:[#allocation2 + $0xc8] sm:$0xff] %v1023
        %1056 = vst [vmem:[#allocation2 + $0xd0] sm:$0xff] %v1024
        %1057 = vst [vmem:[#allocation2 + $0xd8] sm:$0xff] %v1025
        %1058 = vst [vmem:[#allocation2 + $0xe0] sm:$0xff] %v1026
        %1059 = vst [vmem:[#allocation2 + $0xe8] sm:$0xff] %v1027
        %1060 = vst [vmem:[#allocation2 + $0xf0] sm:$0xff] %v1028
        %1061 = vst [vmem:[#allocation2 + $0xf8] sm:$0xff] %v1029
        %p1062 = scmp.eq.s32.totalorder %s21, 1
        // Predicated region
        $region83: #{gnn_forward.2} parent=73 // pred_check
          %p1063 = pneg %p1062
        $region84: #{gnn_forward.2} parent=73 // pred_check_branch
          %1065 = sbr.rel (%p1063) target = $region86
        $region85: #{gnn_forward.2} parent=73 // pred_region
          %v1066 = vld [vmem:[%s440] sm:$0xf]
          %v1067 = vld [vmem:[%s440 + $0x4] sm:$0xf]
          %v1068 = vld [vmem:[%s440 + $0x8] sm:$0xf]
          %v1069 = vld [vmem:[%s440 + $0xc] sm:$0xf]
          %v1070 = vld [vmem:[%s440 + $0x10] sm:$0xf]
          %v1071 = vld [vmem:[%s440 + $0x14] sm:$0xf]
          %v1072 = vld [vmem:[%s440 + $0x18] sm:$0xf]
          %v1073 = vld [vmem:[%s440 + $0x1c] sm:$0xf]
          %v1074 = vld [vmem:[%s440 + $0x20] sm:$0xf]
          %v1075 = vld [vmem:[%s440 + $0x24] sm:$0xf]
          %v1076 = vld [vmem:[%s440 + $0x28] sm:$0xf]
          %v1077 = vld [vmem:[%s440 + $0x2c] sm:$0xf]
          %v1078 = vld [vmem:[%s440 + $0x30] sm:$0xf]
          %v1079 = vld [vmem:[%s440 + $0x34] sm:$0xf]
          %v1080 = vld [vmem:[%s440 + $0x38] sm:$0xf]
          %v1081 = vld [vmem:[%s440 + $0x3c] sm:$0xf]
          %v1082 = vld [vmem:[%s440 + $0x40] sm:$0xf]
          %v1083 = vld [vmem:[%s440 + $0x44] sm:$0xf]
          %v1084 = vld [vmem:[%s440 + $0x48] sm:$0xf]
          %v1085 = vld [vmem:[%s440 + $0x4c] sm:$0xf]
          %v1086 = vld [vmem:[%s440 + $0x50] sm:$0xf]
          %v1087 = vld [vmem:[%s440 + $0x54] sm:$0xf]
          %v1088 = vld [vmem:[%s440 + $0x58] sm:$0xf]
          %v1089 = vld [vmem:[%s440 + $0x5c] sm:$0xf]
          %v1090 = vld [vmem:[%s440 + $0x60] sm:$0xf]
          %v1091 = vld [vmem:[%s440 + $0x64] sm:$0xf]
          %v1092 = vld [vmem:[%s440 + $0x68] sm:$0xf]
          %v1093 = vld [vmem:[%s440 + $0x6c] sm:$0xf]
          %v1094 = vld [vmem:[%s440 + $0x70] sm:$0xf]
          %v1095 = vld [vmem:[%s440 + $0x74] sm:$0xf]
          %v1096 = vld [vmem:[%s440 + $0x78] sm:$0xf]
          %v1097 = vld [vmem:[%s440 + $0x7c] sm:$0xf]
          %v1098 = vunpack.c.l.bf16 %v1066
          %v1099 = vunpack.c.l.bf16 %v1067
          %v1100 = vunpack.c.l.bf16 %v1068
          %v1101 = vunpack.c.l.bf16 %v1069
          %v1102 = vunpack.c.l.bf16 %v1070
          %v1103 = vunpack.c.l.bf16 %v1071
          %v1104 = vunpack.c.l.bf16 %v1072
          %v1105 = vunpack.c.l.bf16 %v1073
          %v1106 = vunpack.c.l.bf16 %v1074
          %v1107 = vunpack.c.l.bf16 %v1075
          %v1108 = vunpack.c.l.bf16 %v1076
          %v1109 = vunpack.c.l.bf16 %v1077
          %v1110 = vunpack.c.l.bf16 %v1078
          %v1111 = vunpack.c.l.bf16 %v1079
          %v1112 = vunpack.c.l.bf16 %v1080
          %v1113 = vunpack.c.l.bf16 %v1081
          %v1114 = vunpack.c.l.bf16 %v1082
          %v1115 = vunpack.c.l.bf16 %v1083
          %v1116 = vunpack.c.l.bf16 %v1084
          %v1117 = vunpack.c.l.bf16 %v1085
          %v1118 = vunpack.c.l.bf16 %v1086
          %v1119 = vunpack.c.l.bf16 %v1087
          %v1120 = vunpack.c.l.bf16 %v1088
          %v1121 = vunpack.c.l.bf16 %v1089
          %v1122 = vunpack.c.l.bf16 %v1090
          %v1123 = vunpack.c.l.bf16 %v1091
          %v1124 = vunpack.c.l.bf16 %v1092
          %v1125 = vunpack.c.l.bf16 %v1093
          %v1126 = vunpack.c.l.bf16 %v1094
          %v1127 = vunpack.c.l.bf16 %v1095
          %v1128 = vunpack.c.l.bf16 %v1096
          %v1129 = vunpack.c.l.bf16 %v1097
          %v1130 = vld [vmem:[#allocation2] sm:$0xff]
          %v1131 = vld [vmem:[#allocation2 + $0x8] sm:$0xff]
          %v1132 = vld [vmem:[#allocation2 + $0x10] sm:$0xff]
          %v1133 = vld [vmem:[#allocation2 + $0x18] sm:$0xff]
          %v1134 = vld [vmem:[#allocation2 + $0x20] sm:$0xff]
          %v1135 = vld [vmem:[#allocation2 + $0x28] sm:$0xff]
          %v1136 = vld [vmem:[#allocation2 + $0x30] sm:$0xff]
          %v1137 = vld [vmem:[#allocation2 + $0x38] sm:$0xff]
          %v1138 = vld [vmem:[#allocation2 + $0x40] sm:$0xff]
          %v1139 = vld [vmem:[#allocation2 + $0x48] sm:$0xff]
          %v1140 = vld [vmem:[#allocation2 + $0x50] sm:$0xff]
          %v1141 = vld [vmem:[#allocation2 + $0x58] sm:$0xff]
          %v1142 = vld [vmem:[#allocation2 + $0x60] sm:$0xff]
          %v1143 = vld [vmem:[#allocation2 + $0x68] sm:$0xff]
          %v1144 = vld [vmem:[#allocation2 + $0x70] sm:$0xff]
          %v1145 = vld [vmem:[#allocation2 + $0x78] sm:$0xff]
          %v1146 = vld [vmem:[#allocation2 + $0x80] sm:$0xff]
          %v1147 = vld [vmem:[#allocation2 + $0x88] sm:$0xff]
          %v1148 = vld [vmem:[#allocation2 + $0x90] sm:$0xff]
          %v1149 = vld [vmem:[#allocation2 + $0x98] sm:$0xff]
          %v1150 = vld [vmem:[#allocation2 + $0xa0] sm:$0xff]
          %v1151 = vld [vmem:[#allocation2 + $0xa8] sm:$0xff]
          %v1152 = vld [vmem:[#allocation2 + $0xb0] sm:$0xff]
          %v1153 = vld [vmem:[#allocation2 + $0xb8] sm:$0xff]
          %v1154 = vld [vmem:[#allocation2 + $0xc0] sm:$0xff]
          %v1155 = vld [vmem:[#allocation2 + $0xc8] sm:$0xff]
          %v1156 = vld [vmem:[#allocation2 + $0xd0] sm:$0xff]
          %v1157 = vld [vmem:[#allocation2 + $0xd8] sm:$0xff]
          %v1158 = vld [vmem:[#allocation2 + $0xe0] sm:$0xff]
          %v1159 = vld [vmem:[#allocation2 + $0xe8] sm:$0xff]
          %v1160 = vld [vmem:[#allocation2 + $0xf0] sm:$0xff]
          %v1161 = vld [vmem:[#allocation2 + $0xf8] sm:$0xff]
          %v1162 = vadd.f32 %v1098, %v1130
          %v1163 = vadd.f32 %v1099, %v1131
          %v1164 = vadd.f32 %v1100, %v1132
          %v1165 = vadd.f32 %v1101, %v1133
          %v1166 = vadd.f32 %v1102, %v1134
          %v1167 = vadd.f32 %v1103, %v1135
          %v1168 = vadd.f32 %v1104, %v1136
          %v1169 = vadd.f32 %v1105, %v1137
          %v1170 = vadd.f32 %v1106, %v1138
          %v1171 = vadd.f32 %v1107, %v1139
          %v1172 = vadd.f32 %v1108, %v1140
          %v1173 = vadd.f32 %v1109, %v1141
          %v1174 = vadd.f32 %v1110, %v1142
          %v1175 = vadd.f32 %v1111, %v1143
          %v1176 = vadd.f32 %v1112, %v1144
          %v1177 = vadd.f32 %v1113, %v1145
          %v1178 = vadd.f32 %v1114, %v1146
          %v1179 = vadd.f32 %v1115, %v1147
          %v1180 = vadd.f32 %v1116, %v1148
          %v1181 = vadd.f32 %v1117, %v1149
          %v1182 = vadd.f32 %v1118, %v1150
          %v1183 = vadd.f32 %v1119, %v1151
          %v1184 = vadd.f32 %v1120, %v1152
          %v1185 = vadd.f32 %v1121, %v1153
          %v1186 = vadd.f32 %v1122, %v1154
          %v1187 = vadd.f32 %v1123, %v1155
          %v1188 = vadd.f32 %v1124, %v1156
          %v1189 = vadd.f32 %v1125, %v1157
          %v1190 = vadd.f32 %v1126, %v1158
          %v1191 = vadd.f32 %v1127, %v1159
          %v1192 = vadd.f32 %v1128, %v1160
          %v1193 = vadd.f32 %v1129, %v1161
          %v1194 = vpack.c.bf16 %v1163, %v1162
          %v1195 = vpack.c.bf16 %v1165, %v1164
          %v1196 = vpack.c.bf16 %v1167, %v1166
          %v1197 = vpack.c.bf16 %v1169, %v1168
          %v1198 = vpack.c.bf16 %v1171, %v1170
          %v1199 = vpack.c.bf16 %v1173, %v1172
          %v1200 = vpack.c.bf16 %v1175, %v1174
          %v1201 = vpack.c.bf16 %v1177, %v1176
          %v1202 = vpack.c.bf16 %v1179, %v1178
          %v1203 = vpack.c.bf16 %v1181, %v1180
          %v1204 = vpack.c.bf16 %v1183, %v1182
          %v1205 = vpack.c.bf16 %v1185, %v1184
          %v1206 = vpack.c.bf16 %v1187, %v1186
          %v1207 = vpack.c.bf16 %v1189, %v1188
          %v1208 = vpack.c.bf16 %v1191, %v1190
          %v1209 = vpack.c.bf16 %v1193, %v1192
          %v1210 = vld [vmem:[%s3] sm:$0xf]
          %v1211 = vld [vmem:[%s3 + $0x4] sm:$0xf]
          %v1212 = vld [vmem:[%s3 + $0x8] sm:$0xf]
          %v1213 = vld [vmem:[%s3 + $0xc] sm:$0xf]
          %v1214 = vld [vmem:[%s3 + $0x10] sm:$0xf]
          %v1215 = vld [vmem:[%s3 + $0x14] sm:$0xf]
          %v1216 = vld [vmem:[%s3 + $0x18] sm:$0xf]
          %v1217 = vld [vmem:[%s3 + $0x1c] sm:$0xf]
          %v1218 = vld [vmem:[%s3 + $0x20] sm:$0xf]
          %v1219 = vld [vmem:[%s3 + $0x24] sm:$0xf]
          %v1220 = vld [vmem:[%s3 + $0x28] sm:$0xf]
          %v1221 = vld [vmem:[%s3 + $0x2c] sm:$0xf]
          %v1222 = vld [vmem:[%s3 + $0x30] sm:$0xf]
          %v1223 = vld [vmem:[%s3 + $0x34] sm:$0xf]
          %v1224 = vld [vmem:[%s3 + $0x38] sm:$0xf]
          %v1225 = vld [vmem:[%s3 + $0x3c] sm:$0xf]
          %v1226 = vld [vmem:[%s4] sm:$0x1]
          %v1228 = vlaneseq
          %v1229 = vshrl.u32 %v1228, 7
          %v1230 = vsub.s32 0, %v1229
          %v1231 = vrot.slane %v1226, %v1230
          %v1249 = vunpack.c.l.b16 %v1210
          %v1250 = vunpack.c.l.b16 %v1211
          %v1251 = vunpack.c.l.b16 %v1212
          %v1252 = vunpack.c.l.b16 %v1213
          %v1253 = vunpack.c.l.b16 %v1214
          %v1254 = vunpack.c.l.b16 %v1215
          %v1255 = vunpack.c.l.b16 %v1216
          %v1256 = vunpack.c.l.b16 %v1217
          %v1257 = vunpack.c.l.b16 %v1218
          %v1258 = vunpack.c.l.b16 %v1219
          %v1259 = vunpack.c.l.b16 %v1220
          %v1260 = vunpack.c.l.b16 %v1221
          %v1261 = vunpack.c.l.b16 %v1222
          %v1262 = vunpack.c.l.b16 %v1223
          %v1263 = vunpack.c.l.b16 %v1224
          %v1264 = vunpack.c.l.b16 %v1225
          %v1265 = vpack.c.b16 %v1250, %v1249
          %v1266 = vpack.c.b16 %v1252, %v1251
          %v1267 = vpack.c.b16 %v1254, %v1253
          %v1268 = vpack.c.b16 %v1256, %v1255
          %v1269 = vpack.c.b16 %v1258, %v1257
          %v1270 = vpack.c.b16 %v1260, %v1259
          %v1271 = vpack.c.b16 %v1262, %v1261
          %v1272 = vpack.c.b16 %v1264, %v1263
          %1281 = vmatprep.subr.bf16.mxu0 0
          %1282 = vmatpush1.bf16.msra.mxu0 %v1265
          %1283 = vmatprep.subr.bf16.mxu0 0
          %1284 = vmatpush1.bf16.msra.mxu0 %v1266
          %1285 = vmatprep.subr.bf16.mxu0 0
          %1286 = vmatpush1.bf16.msra.mxu0 %v1267
          %1287 = vmatprep.subr.bf16.mxu0 0
          %1288 = vmatpush1.bf16.msra.mxu0 %v1268
          %1289 = vmatprep.subr.bf16.mxu0 0
          %1290 = vmatpush1.bf16.msra.mxu0 %v1269
          %1291 = vmatprep.subr.bf16.mxu0 0
          %1292 = vmatpush1.bf16.msra.mxu0 %v1270
          %1293 = vmatprep.subr.bf16.mxu0 0
          %1294 = vmatpush1.bf16.msra.mxu0 %v1271
          %1295 = vmatprep.subr.bf16.mxu0 0
          %1296 = vmatpush1.bf16.msra.mxu0 %v1272
          %1297 = vmatprep.subr.bf16.mxu0 0
          %1298 = vmatpush1.bf16.msra.mxu0 0
          %1299 = vmatprep.subr.bf16.mxu0 0
          %1300 = vmatpush1.bf16.msra.mxu0 0
          %1301 = vmatprep.subr.bf16.mxu0 0
          %1302 = vmatpush1.bf16.msra.mxu0 0
          %1303 = vmatprep.subr.bf16.mxu0 0
          %1304 = vmatpush1.bf16.msra.mxu0 0
          %1305 = vmatprep.subr.bf16.mxu0 0
          %1306 = vmatpush1.bf16.msra.mxu0 0
          %1307 = vmatprep.subr.bf16.mxu0 0
          %1308 = vmatpush1.bf16.msra.mxu0 0
          %1309 = vmatprep.subr.bf16.mxu0 0
          %1310 = vmatpush1.bf16.msra.mxu0 0
          %1311 = vmatprep.subr.bf16.mxu0 0
          %1312 = vmatpush1.bf16.msra.mxu0 0
          %1313 = vmatprep.mubr.bf16.mxu0 0
          %1314 = vmatmul.mubr.bf16.gmra.mrb[0].mxu0 %v1194
          %v1315 = vpop.f32.mrb[0].mxu0
          %v1316 = vadd.f32 %v1231, %v1315
          %v1317 = vpop.f32.mrb[0].mxu0
          %v1318 = vpop.f32.mrb[0].mxu0
          %v1319 = vadd.f32 %v1231, %v1318
          %v1320 = vpop.f32.mrb[0].mxu0
          %1321 = vmatprep.mubr.bf16.mxu0 0
          %1322 = vmatmul.mubr.bf16.gmra.mrb[0].mxu0 %v1195
          %v1323 = vpop.f32.mrb[0].mxu0
          %v1324 = vadd.f32 %v1231, %v1323
          %v1325 = vpop.f32.mrb[0].mxu0
          %v1326 = vpop.f32.mrb[0].mxu0
          %v1327 = vadd.f32 %v1231, %v1326
          %v1328 = vpop.f32.mrb[0].mxu0
          %1329 = vmatprep.mubr.bf16.mxu0 0
          %1330 = vmatmul.mubr.bf16.gmra.mrb[0].mxu0 %v1196
          %v1331 = vpop.f32.mrb[0].mxu0
          %v1332 = vadd.f32 %v1231, %v1331
          %v1333 = vpop.f32.mrb[0].mxu0
          %v1334 = vpop.f32.mrb[0].mxu0
          %v1335 = vadd.f32 %v1231, %v1334
          %v1336 = vpop.f32.mrb[0].mxu0
          %1337 = vmatprep.mubr.bf16.mxu0 0
          %1338 = vmatmul.mubr.bf16.gmra.mrb[0].mxu0 %v1197
          %v1339 = vpop.f32.mrb[0].mxu0
          %v1340 = vadd.f32 %v1231, %v1339
          %v1341 = vpop.f32.mrb[0].mxu0
          %v1342 = vpop.f32.mrb[0].mxu0
          %v1343 = vadd.f32 %v1231, %v1342
          %v1344 = vpop.f32.mrb[0].mxu0
          %1345 = vmatprep.mubr.bf16.mxu0 0
          %1346 = vmatmul.mubr.bf16.gmra.mrb[0].mxu0 %v1198
          %v1347 = vpop.f32.mrb[0].mxu0
          %v1348 = vadd.f32 %v1231, %v1347
          %v1349 = vpop.f32.mrb[0].mxu0
          %v1350 = vpop.f32.mrb[0].mxu0
          %v1351 = vadd.f32 %v1231, %v1350
          %v1352 = vpop.f32.mrb[0].mxu0
          %1353 = vmatprep.mubr.bf16.mxu0 0
          %1354 = vmatmul.mubr.bf16.gmra.mrb[0].mxu0 %v1199
          %v1355 = vpop.f32.mrb[0].mxu0
          %v1356 = vadd.f32 %v1231, %v1355
          %v1357 = vpop.f32.mrb[0].mxu0
          %v1358 = vpop.f32.mrb[0].mxu0
          %v1359 = vadd.f32 %v1231, %v1358
          %v1360 = vpop.f32.mrb[0].mxu0
          %1361 = vmatprep.mubr.bf16.mxu0 0
          %1362 = vmatmul.mubr.bf16.gmra.mrb[0].mxu0 %v1200
          %v1363 = vpop.f32.mrb[0].mxu0
          %v1364 = vadd.f32 %v1231, %v1363
          %v1365 = vpop.f32.mrb[0].mxu0
          %v1366 = vpop.f32.mrb[0].mxu0
          %v1367 = vadd.f32 %v1231, %v1366
          %v1368 = vpop.f32.mrb[0].mxu0
          %1369 = vmatprep.mubr.bf16.mxu0 0
          %1370 = vmatmul.mubr.bf16.gmra.mrb[0].mxu0 %v1201
          %v1371 = vpop.f32.mrb[0].mxu0
          %v1372 = vadd.f32 %v1231, %v1371
          %v1373 = vpop.f32.mrb[0].mxu0
          %v1374 = vpop.f32.mrb[0].mxu0
          %v1375 = vadd.f32 %v1231, %v1374
          %v1376 = vpop.f32.mrb[0].mxu0
          %1377 = vmatprep.mubr.bf16.mxu0 0
          %1378 = vmatmul.mubr.bf16.gmra.mrb[0].mxu0 %v1202
          %v1379 = vpop.f32.mrb[0].mxu0
          %v1380 = vadd.f32 %v1231, %v1379
          %v1381 = vpop.f32.mrb[0].mxu0
          %v1382 = vpop.f32.mrb[0].mxu0
          %v1383 = vadd.f32 %v1231, %v1382
          %v1384 = vpop.f32.mrb[0].mxu0
          %1385 = vmatprep.mubr.bf16.mxu0 0
          %1386 = vmatmul.mubr.bf16.gmra.mrb[0].mxu0 %v1203
          %v1387 = vpop.f32.mrb[0].mxu0
          %v1388 = vadd.f32 %v1231, %v1387
          %v1389 = vpop.f32.mrb[0].mxu0
          %v1390 = vpop.f32.mrb[0].mxu0
          %v1391 = vadd.f32 %v1231, %v1390
          %v1392 = vpop.f32.mrb[0].mxu0
          %1393 = vmatprep.mubr.bf16.mxu0 0
          %1394 = vmatmul.mubr.bf16.gmra.mrb[0].mxu0 %v1204
          %v1395 = vpop.f32.mrb[0].mxu0
          %v1396 = vadd.f32 %v1231, %v1395
          %v1397 = vpop.f32.mrb[0].mxu0
          %v1398 = vpop.f32.mrb[0].mxu0
          %v1399 = vadd.f32 %v1231, %v1398
          %v1400 = vpop.f32.mrb[0].mxu0
          %1401 = vmatprep.mubr.bf16.mxu0 0
          %1402 = vmatmul.mubr.bf16.gmra.mrb[0].mxu0 %v1205
          %v1403 = vpop.f32.mrb[0].mxu0
          %v1404 = vadd.f32 %v1231, %v1403
          %v1405 = vpop.f32.mrb[0].mxu0
          %v1406 = vpop.f32.mrb[0].mxu0
          %v1407 = vadd.f32 %v1231, %v1406
          %v1408 = vpop.f32.mrb[0].mxu0
          %1409 = vmatprep.mubr.bf16.mxu0 0
          %1410 = vmatmul.mubr.bf16.gmra.mrb[0].mxu0 %v1206
          %v1411 = vpop.f32.mrb[0].mxu0
          %v1412 = vadd.f32 %v1231, %v1411
          %v1413 = vpop.f32.mrb[0].mxu0
          %v1414 = vpop.f32.mrb[0].mxu0
          %v1415 = vadd.f32 %v1231, %v1414
          %v1416 = vpop.f32.mrb[0].mxu0
          %1417 = vmatprep.mubr.bf16.mxu0 0
          %1418 = vmatmul.mubr.bf16.gmra.mrb[0].mxu0 %v1207
          %v1419 = vpop.f32.mrb[0].mxu0
          %v1420 = vadd.f32 %v1231, %v1419
          %v1421 = vpop.f32.mrb[0].mxu0
          %v1422 = vpop.f32.mrb[0].mxu0
          %v1423 = vadd.f32 %v1231, %v1422
          %v1424 = vpop.f32.mrb[0].mxu0
          %1425 = vmatprep.mubr.bf16.mxu0 0
          %1426 = vmatmul.mubr.bf16.gmra.mrb[0].mxu0 %v1208
          %v1427 = vpop.f32.mrb[0].mxu0
          %v1428 = vadd.f32 %v1231, %v1427
          %v1429 = vpop.f32.mrb[0].mxu0
          %v1430 = vpop.f32.mrb[0].mxu0
          %v1431 = vadd.f32 %v1231, %v1430
          %v1432 = vpop.f32.mrb[0].mxu0
          %1433 = vmatprep.mubr.bf16.mxu0 0
          %1434 = vmatmul.mubr.bf16.gmra.mrb[0].mxu0 %v1209
          %v1435 = vpop.f32.mrb[0].mxu0
          %v1436 = vadd.f32 %v1231, %v1435
          %v1437 = vpop.f32.mrb[0].mxu0
          %v1438 = vpop.f32.mrb[0].mxu0
          %v1439 = vadd.f32 %v1231, %v1438
          %v1440 = vpop.f32.mrb[0].mxu0
          %1441 = vdwg.mxu0
          %vm1442 = vcmp.gt.f32.partialorder %v1316, 0.0
          %vm1443 = vcmp.gt.f32.partialorder %v1319, 0.0
          %vm1444 = vcmp.gt.f32.partialorder %v1324, 0.0
          %vm1445 = vcmp.gt.f32.partialorder %v1327, 0.0
          %vm1446 = vcmp.gt.f32.partialorder %v1332, 0.0
          %vm1447 = vcmp.gt.f32.partialorder %v1335, 0.0
          %vm1448 = vcmp.gt.f32.partialorder %v1340, 0.0
          %vm1449 = vcmp.gt.f32.partialorder %v1343, 0.0
          %vm1450 = vcmp.gt.f32.partialorder %v1348, 0.0
          %vm1451 = vcmp.gt.f32.partialorder %v1351, 0.0
          %vm1452 = vcmp.gt.f32.partialorder %v1356, 0.0
          %vm1453 = vcmp.gt.f32.partialorder %v1359, 0.0
          %vm1454 = vcmp.gt.f32.partialorder %v1364, 0.0
          %vm1455 = vcmp.gt.f32.partialorder %v1367, 0.0
          %vm1456 = vcmp.gt.f32.partialorder %v1372, 0.0
          %vm1457 = vcmp.gt.f32.partialorder %v1375, 0.0
          %vm1458 = vcmp.gt.f32.partialorder %v1380, 0.0
          %vm1459 = vcmp.gt.f32.partialorder %v1383, 0.0
          %vm1460 = vcmp.gt.f32.partialorder %v1388, 0.0
          %vm1461 = vcmp.gt.f32.partialorder %v1391, 0.0
          %vm1462 = vcmp.gt.f32.partialorder %v1396, 0.0
          %vm1463 = vcmp.gt.f32.partialorder %v1399, 0.0
          %vm1464 = vcmp.gt.f32.partialorder %v1404, 0.0
          %vm1465 = vcmp.gt.f32.partialorder %v1407, 0.0
          %vm1466 = vcmp.gt.f32.partialorder %v1412, 0.0
          %vm1467 = vcmp.gt.f32.partialorder %v1415, 0.0
          %vm1468 = vcmp.gt.f32.partialorder %v1420, 0.0
          %vm1469 = vcmp.gt.f32.partialorder %v1423, 0.0
          %vm1470 = vcmp.gt.f32.partialorder %v1428, 0.0
          %vm1471 = vcmp.gt.f32.partialorder %v1431, 0.0
          %vm1472 = vcmp.gt.f32.partialorder %v1436, 0.0
          %vm1473 = vcmp.gt.f32.partialorder %v1439, 0.0
          %v1474 = vmul.f32 %v1316, 0.01
          %v1475 = vmul.f32 %v1319, 0.01
          %v1476 = vmul.f32 %v1324, 0.01
          %v1477 = vmul.f32 %v1327, 0.01
          %v1478 = vmul.f32 %v1332, 0.01
          %v1479 = vmul.f32 %v1335, 0.01
          %v1480 = vmul.f32 %v1340, 0.01
          %v1481 = vmul.f32 %v1343, 0.01
          %v1482 = vmul.f32 %v1348, 0.01
          %v1483 = vmul.f32 %v1351, 0.01
          %v1484 = vmul.f32 %v1356, 0.01
          %v1485 = vmul.f32 %v1359, 0.01
          %v1486 = vmul.f32 %v1364, 0.01
          %v1487 = vmul.f32 %v1367, 0.01
          %v1488 = vmul.f32 %v1372, 0.01
          %v1489 = vmul.f32 %v1375, 0.01
          %v1490 = vmul.f32 %v1380, 0.01
          %v1491 = vmul.f32 %v1383, 0.01
          %v1492 = vmul.f32 %v1388, 0.01
          %v1493 = vmul.f32 %v1391, 0.01
          %v1494 = vmul.f32 %v1396, 0.01
          %v1495 = vmul.f32 %v1399, 0.01
          %v1496 = vmul.f32 %v1404, 0.01
          %v1497 = vmul.f32 %v1407, 0.01
          %v1498 = vmul.f32 %v1412, 0.01
          %v1499 = vmul.f32 %v1415, 0.01
          %v1500 = vmul.f32 %v1420, 0.01
          %v1501 = vmul.f32 %v1423, 0.01
          %v1502 = vmul.f32 %v1428, 0.01
          %v1503 = vmul.f32 %v1431, 0.01
          %v1504 = vmul.f32 %v1436, 0.01
          %v1505 = vmul.f32 %v1439, 0.01
          %v1506 = vsel %vm1442, %v1316, %v1474
          %v1507 = vsel %vm1443, %v1319, %v1475
          %v1508 = vsel %vm1444, %v1324, %v1476
          %v1509 = vsel %vm1445, %v1327, %v1477
          %v1510 = vsel %vm1446, %v1332, %v1478
          %v1511 = vsel %vm1447, %v1335, %v1479
          %v1512 = vsel %vm1448, %v1340, %v1480
          %v1513 = vsel %vm1449, %v1343, %v1481
          %v1514 = vsel %vm1450, %v1348, %v1482
          %v1515 = vsel %vm1451, %v1351, %v1483
          %v1516 = vsel %vm1452, %v1356, %v1484
          %v1517 = vsel %vm1453, %v1359, %v1485
          %v1518 = vsel %vm1454, %v1364, %v1486
          %v1519 = vsel %vm1455, %v1367, %v1487
          %v1520 = vsel %vm1456, %v1372, %v1488
          %v1521 = vsel %vm1457, %v1375, %v1489
          %v1522 = vsel %vm1458, %v1380, %v1490
          %v1523 = vsel %vm1459, %v1383, %v1491
          %v1524 = vsel %vm1460, %v1388, %v1492
          %v1525 = vsel %vm1461, %v1391, %v1493
          %v1526 = vsel %vm1462, %v1396, %v1494
          %v1527 = vsel %vm1463, %v1399, %v1495
          %v1528 = vsel %vm1464, %v1404, %v1496
          %v1529 = vsel %vm1465, %v1407, %v1497
          %v1530 = vsel %vm1466, %v1412, %v1498
          %v1531 = vsel %vm1467, %v1415, %v1499
          %v1532 = vsel %vm1468, %v1420, %v1500
          %v1533 = vsel %vm1469, %v1423, %v1501
          %v1534 = vsel %vm1470, %v1428, %v1502
          %v1535 = vsel %vm1471, %v1431, %v1503
          %v1536 = vsel %vm1472, %v1436, %v1504
          %v1537 = vsel %vm1473, %v1439, %v1505
          %v1538 = vpack.c.bf16 %v1507, %v1506
          %v1539 = vpack.c.bf16 %v1509, %v1508
          %v1540 = vpack.c.bf16 %v1511, %v1510
          %v1541 = vpack.c.bf16 %v1513, %v1512
          %v1542 = vpack.c.bf16 %v1515, %v1514
          %v1543 = vpack.c.bf16 %v1517, %v1516
          %v1544 = vpack.c.bf16 %v1519, %v1518
          %v1545 = vpack.c.bf16 %v1521, %v1520
          %v1546 = vpack.c.bf16 %v1523, %v1522
          %v1547 = vpack.c.bf16 %v1525, %v1524
          %v1548 = vpack.c.bf16 %v1527, %v1526
          %v1549 = vpack.c.bf16 %v1529, %v1528
          %v1550 = vpack.c.bf16 %v1531, %v1530
          %v1551 = vpack.c.bf16 %v1533, %v1532
          %v1552 = vpack.c.bf16 %v1535, %v1534
          %v1553 = vpack.c.bf16 %v1537, %v1536
          %v1570 = vunpack.c.l.b16 %v1538
          %v1571 = vunpack.c.h.b16 %v1538
          %v1572 = vunpack.c.l.b16 %v1539
          %v1573 = vunpack.c.h.b16 %v1539
          %v1574 = vunpack.c.l.b16 %v1540
          %v1575 = vunpack.c.h.b16 %v1540
          %v1576 = vunpack.c.l.b16 %v1541
          %v1577 = vunpack.c.h.b16 %v1541
          %v1578 = vunpack.c.l.b16 %v1542
          %v1579 = vunpack.c.h.b16 %v1542
          %v1580 = vunpack.c.l.b16 %v1543
          %v1581 = vunpack.c.h.b16 %v1543
          %v1582 = vunpack.c.l.b16 %v1544
          %v1583 = vunpack.c.h.b16 %v1544
          %v1584 = vunpack.c.l.b16 %v1545
          %v1585 = vunpack.c.h.b16 %v1545
          %v1586 = vunpack.c.l.b16 %v1546
          %v1587 = vunpack.c.h.b16 %v1546
          %v1588 = vunpack.c.l.b16 %v1547
          %v1589 = vunpack.c.h.b16 %v1547
          %v1590 = vunpack.c.l.b16 %v1548
          %v1591 = vunpack.c.h.b16 %v1548
          %v1592 = vunpack.c.l.b16 %v1549
          %v1593 = vunpack.c.h.b16 %v1549
          %v1594 = vunpack.c.l.b16 %v1550
          %v1595 = vunpack.c.h.b16 %v1550
          %v1596 = vunpack.c.l.b16 %v1551
          %v1597 = vunpack.c.h.b16 %v1551
          %v1598 = vunpack.c.l.b16 %v1552
          %v1599 = vunpack.c.h.b16 %v1552
          %v1600 = vunpack.c.l.b16 %v1553
          %v1601 = vunpack.c.h.b16 %v1553
          %v1602 = vpack.c.b16 %v1570, %v1570
          %v1603 = vpack.c.b16 %v1571, %v1571
          %v1604 = vpack.c.b16 %v1572, %v1572
          %v1605 = vpack.c.b16 %v1573, %v1573
          %v1606 = vpack.c.b16 %v1574, %v1574
          %v1607 = vpack.c.b16 %v1575, %v1575
          %v1608 = vpack.c.b16 %v1576, %v1576
          %v1609 = vpack.c.b16 %v1577, %v1577
          %v1610 = vpack.c.b16 %v1578, %v1578
          %v1611 = vpack.c.b16 %v1579, %v1579
          %v1612 = vpack.c.b16 %v1580, %v1580
          %v1613 = vpack.c.b16 %v1581, %v1581
          %v1614 = vpack.c.b16 %v1582, %v1582
          %v1615 = vpack.c.b16 %v1583, %v1583
          %v1616 = vpack.c.b16 %v1584, %v1584
          %v1617 = vpack.c.b16 %v1585, %v1585
          %v1618 = vpack.c.b16 %v1586, %v1586
          %v1619 = vpack.c.b16 %v1587, %v1587
          %v1620 = vpack.c.b16 %v1588, %v1588
          %v1621 = vpack.c.b16 %v1589, %v1589
          %v1622 = vpack.c.b16 %v1590, %v1590
          %v1623 = vpack.c.b16 %v1591, %v1591
          %v1624 = vpack.c.b16 %v1592, %v1592
          %v1625 = vpack.c.b16 %v1593, %v1593
          %v1626 = vpack.c.b16 %v1594, %v1594
          %v1627 = vpack.c.b16 %v1595, %v1595
          %v1628 = vpack.c.b16 %v1596, %v1596
          %v1629 = vpack.c.b16 %v1597, %v1597
          %v1630 = vpack.c.b16 %v1598, %v1598
          %v1631 = vpack.c.b16 %v1599, %v1599
          %v1632 = vpack.c.b16 %v1600, %v1600
          %v1633 = vpack.c.b16 %v1601, %v1601
          %1666 = vst [vmem:[%s446] sm:$0xf] %v1602
          %1667 = vst [vmem:[%s446 + $0x4] sm:$0xf] %v1603
          %1668 = vst [vmem:[%s446 + $0x8] sm:$0xf] %v1604
          %1669 = vst [vmem:[%s446 + $0xc] sm:$0xf] %v1605
          %1670 = vst [vmem:[%s446 + $0x10] sm:$0xf] %v1606
          %1671 = vst [vmem:[%s446 + $0x14] sm:$0xf] %v1607
          %1672 = vst [vmem:[%s446 + $0x18] sm:$0xf] %v1608
          %1673 = vst [vmem:[%s446 + $0x1c] sm:$0xf] %v1609
          %1674 = vst [vmem:[%s446 + $0x20] sm:$0xf] %v1610
          %1675 = vst [vmem:[%s446 + $0x24] sm:$0xf] %v1611
          %1676 = vst [vmem:[%s446 + $0x28] sm:$0xf] %v1612
          %1677 = vst [vmem:[%s446 + $0x2c] sm:$0xf] %v1613
          %1678 = vst [vmem:[%s446 + $0x30] sm:$0xf] %v1614
          %1679 = vst [vmem:[%s446 + $0x34] sm:$0xf] %v1615
          %1680 = vst [vmem:[%s446 + $0x38] sm:$0xf] %v1616
          %1681 = vst [vmem:[%s446 + $0x3c] sm:$0xf] %v1617
          %1682 = vst [vmem:[%s446 + $0x40] sm:$0xf] %v1618
          %1683 = vst [vmem:[%s446 + $0x44] sm:$0xf] %v1619
          %1684 = vst [vmem:[%s446 + $0x48] sm:$0xf] %v1620
          %1685 = vst [vmem:[%s446 + $0x4c] sm:$0xf] %v1621
          %1686 = vst [vmem:[%s446 + $0x50] sm:$0xf] %v1622
          %1687 = vst [vmem:[%s446 + $0x54] sm:$0xf] %v1623
          %1688 = vst [vmem:[%s446 + $0x58] sm:$0xf] %v1624
          %1689 = vst [vmem:[%s446 + $0x5c] sm:$0xf] %v1625
          %1690 = vst [vmem:[%s446 + $0x60] sm:$0xf] %v1626
          %1691 = vst [vmem:[%s446 + $0x64] sm:$0xf] %v1627
          %1692 = vst [vmem:[%s446 + $0x68] sm:$0xf] %v1628
          %1693 = vst [vmem:[%s446 + $0x6c] sm:$0xf] %v1629
          %1694 = vst [vmem:[%s446 + $0x70] sm:$0xf] %v1630
          %1695 = vst [vmem:[%s446 + $0x74] sm:$0xf] %v1631
          %1696 = vst [vmem:[%s446 + $0x78] sm:$0xf] %v1632
          %1697 = vst [vmem:[%s446 + $0x7c] sm:$0xf] %v1633
        $region86: #{gnn_forward.2} parent=73 // pred_fallthru
          _
        %s1698 = smul.u32 32, %s20
        %p1699 = scmp.lt.s32.totalorder %s1698, 63
        %s1700 = scalar_select %p1699, %s1698, 63
        %s1701 = smul.addr %s1700, 4
        %s1702 = scalar_lea.vmem %s5, %s1701
        // Predicated region
        $region87: #{gnn_forward.2} parent=73 // pred_check
          %p1703 = pneg %p168
        $region88: #{gnn_forward.2} parent=73 // pred_check_branch
          %1705 = sbr.rel (%p1703) target = $region90
        $region89: #{gnn_forward.2} parent=73 // pred_region
          %s1706 = smul.u32 32, %s20
        $region90: #{gnn_forward.2} parent=73 // pred_fallthru
          _
      $region74: #{gnn_forward.2} parent=5 // pred_fallthru
        _
      %p1707 = scmp.le.s32.totalorder 2, %s11
      // Predicated region
      $region91: #{gnn_forward.2} parent=5 // pred_check
        %p1708 = pneg %p1707
      $region92: #{gnn_forward.2} parent=5 // pred_check_branch
        %1710 = sbr.rel (%p1708) target = $region94
      $region93: #{gnn_forward.2} parent=5 // pred_region
        %s1711 = ssub.s32 %s11, 2
        // Predicated region
        $region95: #{gnn_forward.2} parent=93 // pred_check
          %p1712 = pneg %p174
        $region96: #{gnn_forward.2} parent=93 // pred_check_branch
          %1714 = sbr.rel (%p1712) target = $region98
        $region97: #{gnn_forward.2} parent=93 // pred_region
          %s1715 = smul.u32 32, %s22
          %p1716 = scmp.lt.s32.totalorder %s1715, 63
          %s1717 = scalar_select %p1716, %s1715, 63
          %s1718 = smul.addr %s1717, 4
          %s1719 = scalar_lea.vmem %s5, %s1718
        $region98: #{gnn_forward.2} parent=93 // pred_fallthru
          _
      $region94: #{gnn_forward.2} parent=5 // pred_fallthru
        _
    $region6: #{gnn_forward.2} parent=1 // loop_footer
      %s15 = sadd.s32 1, %s11
    $region7: #{gnn_forward.2} parent=1 // loop_footer_branch
      %10 = sbr.rel target = $region3
    $region8: #{gnn_forward.2} parent=1 // loop_exit
      _

// kernel: gnn_forward.3
$region0: #{gnn_forward.3}
  #allocation0 [shape = 'u32[]', space=smem, size = 0x4, offset = 0x4, fixed_abs, tag = 'smem constant byte address 0x4 - core index']
  #allocation1 [shape = 'u32[144,128]{1,0:T(1,128)}', space=vmem, size = 0x12000, scoped, tag = 'internal scratch']
  #allocation2 [shape = 'f32[256,128]{1,0:T(8,128)}', space=vmem, size = 0x20000, scoped, tag = 'scratch operand']
  #allocation3 [shape = 'f32[8,128]{1,0:T(8,128)}', space=vmem, size = 0x1000, scoped, tag = 'scratch operand']
  %s0 = inlined_call_operand.vmem [shape: bf16[512,512], index: 0, kind: input, shape index: {}]
  %s1 = inlined_call_operand.vmem [shape: bf16[512,128], index: 1, kind: input, shape index: {}, may-alias: {1,2}]
  %s2 = inlined_call_operand.vmem [shape: bf16[512,128], index: 2, kind: input, shape index: {}, may-alias: {1,2}]
  %s3 = inlined_call_operand.vmem [shape: bf16[128,128], index: 3, kind: input, shape index: {}]
  %s4 = inlined_call_operand.vmem [shape: f32[1,128], index: 4, kind: input, shape index: {}]
  %s5 = inlined_call_operand.vmem [shape: bf16[8,512], index: 5, kind: input, shape index: {}]
  %s6 = inlined_call_operand.vmem [shape: bf16[128,128], index: 6, kind: input, shape index: {}]
  %s7 = inlined_call_operand.vmem [shape: f32[1,128], index: 7, kind: input, shape index: {}]
  %s8 = inlined_call_operand.vmem [shape: f32[8,128], index: 8, kind: output, shape index: {}]
  %s9 = sld [smem:[#allocation0]]
  $region119: #{gnn_forward.3} parent=0
    _
  %s11 = ssub.s32 1, %s9
  %s12 = scalar_select 0, %s11, %s9
  $region1: #{gnn_forward.3} parent=0
    #allocation4 [shape = 'u8[262144]{0}', space=vmem, size = 0x40000, scoped, tag = 'input window, operand 0']
    loop: start=0, step=1, limit=6
    $region2: #{gnn_forward.3} parent=1 // loop_pre_header
      _
    $region3: #{gnn_forward.3} parent=1 // loop_header
      %s14 = sphi 0, %s18
      %p15 = scmp.ge.s32.totalorder %s14, 6
      %s21 = sphi 0, %s33
      %s22 = sphi 0, %s29
      %s23 = sphi 0, %s21
      %s24 = sphi 0, %s22
      %s25 = sphi 0, %s23
      %s26 = sphi 0, %s24
      %s38 = sphi 0, %s40
      %s41 = sphi 0, %s38
      %s42 = sphi 0, %s41
      %s58 = sphi 0, %s42
      %s64 = sphi 0, %s66
      %s67 = sphi 0, %s64
      %s68 = sphi 0, %s67
      %s84 = sphi 0, %s68
      %s90 = sphi 0, %s92
      %s93 = sphi 0, %s90
      %s94 = sphi 0, %s93
      %s110 = sphi 0, %s94
      %s114 = sphi 0, %s114
      %s116 = sphi 0, %s114
      %s117 = sphi 0, %s116
      %s131 = sphi 0, %s117
      %s135 = sphi 0, %s135
      %s137 = sphi 0, %s135
      %s138 = sphi 0, %s137
      %s152 = sphi 0, %s138
      %s158 = sphi 0, %s160
      %s161 = sphi 0, %s158
      %s162 = sphi 0, %s161
      %s178 = sphi 0, %s162
      %s182 = sphi 0, %s182
      %s184 = sphi 0, %s182
      %s185 = sphi 0, %s184
      %s199 = sphi 0, %s185
      %s203 = sphi 0, %s203
      %s205 = sphi 0, %s203
      %s206 = sphi 0, %s205
      %s220 = sphi 0, %s206
      %s224 = sphi 0, %s224
      %s226 = sphi 0, %s224
      %s227 = sphi 0, %s226
      %s241 = sphi 0, %s227
    $region4: #{gnn_forward.3} parent=1 // loop_header_branch
      %17 = sbr.rel (%p15) target = $region8
    $region5: #{gnn_forward.3} parent=1 // loop_body
      %s19 = ssub.s32 %s14, 1
      %s20 = ssub.s32 %s14, 2
      %s27 = sadd.s32 1, %s22
      %p28 = scmp.ge.s32.totalorder %s27, 2
      %s29 = scalar_select %p28, 0, %s27
      %s30 = sadd.s32 1, %s21
      %s31 = scalar_select %p28, %s30, %s21
      %p32 = scmp.ge.s32.totalorder %s31, 2
      %s33 = scalar_select %p32, 0, %s31
      %s34 = ssub.s32 %s21, %s33
      %s35 = ssub.s32 %s22, %s29
      %s36 = sor.u32 %s34, %s35
      %p37 = scmp.eq.s32.totalorder %s36, 0
      %s39 = sadd.s32 %s38, 1
      %s40 = scalar_select %p37, %s38, %s39
      %p43 = pneg %p37
      %p44 = scmp.eq.s32.totalorder %s14, 3
      %p45 = por %p43, %p44
      %p46 = scmp.ne.s32.totalorder %s38, %s41
      %p47 = scmp.eq.s32.totalorder %s14, 0
      %p48 = por %p46, %p47
      %p49 = scmp.ne.s32.totalorder %s38, %s41
      %p50 = scmp.eq.s32.totalorder %s19, 3
      %p51 = por %p49, %p50
      %p52 = scmp.ne.s32.totalorder %s41, %s42
      %p53 = scmp.eq.s32.totalorder %s19, 0
      %p54 = por %p52, %p53
      %p55 = scmp.ne.s32.totalorder %s41, %s42
      %p56 = scmp.eq.s32.totalorder %s20, 3
      %p57 = por %p55, %p56
      %p59 = scmp.ne.s32.totalorder %s42, %s58
      %p60 = scmp.eq.s32.totalorder %s20, 0
      %p61 = por %p59, %p60
      %s62 = ssub.s32 %s22, %s29
      %p63 = scmp.eq.s32.totalorder %s62, 0
      %s65 = sadd.s32 %s64, 1
      %s66 = scalar_select %p63, %s64, %s65
      %p69 = pneg %p63
      %p70 = scmp.eq.s32.totalorder %s14, 3
      %p71 = por %p69, %p70
      %p72 = scmp.ne.s32.totalorder %s64, %s67
      %p73 = scmp.eq.s32.totalorder %s14, 0
      %p74 = por %p72, %p73
      %p75 = scmp.ne.s32.totalorder %s64, %s67
      %p76 = scmp.eq.s32.totalorder %s19, 3
      %p77 = por %p75, %p76
      %p78 = scmp.ne.s32.totalorder %s67, %s68
      %p79 = scmp.eq.s32.totalorder %s19, 0
      %p80 = por %p78, %p79
      %p81 = scmp.ne.s32.totalorder %s67, %s68
      %p82 = scmp.eq.s32.totalorder %s20, 3
      %p83 = por %p81, %p82
      %p85 = scmp.ne.s32.totalorder %s68, %s84
      %p86 = scmp.eq.s32.totalorder %s20, 0
      %p87 = por %p85, %p86
      %s88 = ssub.s32 %s21, %s33
      %p89 = scmp.eq.s32.totalorder %s88, 0
      %s91 = sadd.s32 %s90, 1
      %s92 = scalar_select %p89, %s90, %s91
      %p95 = pneg %p89
      %p96 = scmp.eq.s32.totalorder %s14, 3
      %p97 = por %p95, %p96
      %p98 = scmp.ne.s32.totalorder %s90, %s93
      %p99 = scmp.eq.s32.totalorder %s14, 0
      %p100 = por %p98, %p99
      %p101 = scmp.ne.s32.totalorder %s90, %s93
      %p102 = scmp.eq.s32.totalorder %s19, 3
      %p103 = por %p101, %p102
      %p104 = scmp.ne.s32.totalorder %s93, %s94
      %p105 = scmp.eq.s32.totalorder %s19, 0
      %p106 = por %p104, %p105
      %p107 = scmp.ne.s32.totalorder %s93, %s94
      %p108 = scmp.eq.s32.totalorder %s20, 3
      %p109 = por %p107, %p108
      %p111 = scmp.ne.s32.totalorder %s94, %s110
      %p112 = scmp.eq.s32.totalorder %s20, 0
      %p113 = por %p111, %p112
      %s115 = sadd.s32 %s114, 1
      %p118 = scmp.eq.s32.totalorder %s14, 3
      %p119 = scmp.ne.s32.totalorder %s114, %s116
      %p120 = scmp.eq.s32.totalorder %s14, 0
      %p121 = por %p119, %p120
      %p122 = scmp.ne.s32.totalorder %s114, %s116
      %p123 = scmp.eq.s32.totalorder %s19, 3
      %p124 = por %p122, %p123
      %p125 = scmp.ne.s32.totalorder %s116, %s117
      %p126 = scmp.eq.s32.totalorder %s19, 0
      %p127 = por %p125, %p126
      %p128 = scmp.ne.s32.totalorder %s116, %s117
      %p129 = scmp.eq.s32.totalorder %s20, 3
      %p130 = por %p128, %p129
      %p132 = scmp.ne.s32.totalorder %s117, %s131
      %p133 = scmp.eq.s32.totalorder %s20, 0
      %p134 = por %p132, %p133
      %s136 = sadd.s32 %s135, 1
      %p139 = scmp.eq.s32.totalorder %s14, 3
      %p140 = scmp.ne.s32.totalorder %s135, %s137
      %p141 = scmp.eq.s32.totalorder %s14, 0
      %p142 = por %p140, %p141
      %p143 = scmp.ne.s32.totalorder %s135, %s137
      %p144 = scmp.eq.s32.totalorder %s19, 3
      %p145 = por %p143, %p144
      %p146 = scmp.ne.s32.totalorder %s137, %s138
      %p147 = scmp.eq.s32.totalorder %s19, 0
      %p148 = por %p146, %p147
      %p149 = scmp.ne.s32.totalorder %s137, %s138
      %p150 = scmp.eq.s32.totalorder %s20, 3
      %p151 = por %p149, %p150
      %p153 = scmp.ne.s32.totalorder %s138, %s152
      %p154 = scmp.eq.s32.totalorder %s20, 0
      %p155 = por %p153, %p154
      %s156 = ssub.s32 %s21, %s33
      %p157 = scmp.eq.s32.totalorder %s156, 0
      %s159 = sadd.s32 %s158, 1
      %s160 = scalar_select %p157, %s158, %s159
      %p163 = pneg %p157
      %p164 = scmp.eq.s32.totalorder %s14, 3
      %p165 = por %p163, %p164
      %p166 = scmp.ne.s32.totalorder %s158, %s161
      %p167 = scmp.eq.s32.totalorder %s14, 0
      %p168 = por %p166, %p167
      %p169 = scmp.ne.s32.totalorder %s158, %s161
      %p170 = scmp.eq.s32.totalorder %s19, 3
      %p171 = por %p169, %p170
      %p172 = scmp.ne.s32.totalorder %s161, %s162
      %p173 = scmp.eq.s32.totalorder %s19, 0
      %p174 = por %p172, %p173
      %p175 = scmp.ne.s32.totalorder %s161, %s162
      %p176 = scmp.eq.s32.totalorder %s20, 3
      %p177 = por %p175, %p176
      %p179 = scmp.ne.s32.totalorder %s162, %s178
      %p180 = scmp.eq.s32.totalorder %s20, 0
      %p181 = por %p179, %p180
      %s183 = sadd.s32 %s182, 1
      %p186 = scmp.eq.s32.totalorder %s14, 3
      %p187 = scmp.ne.s32.totalorder %s182, %s184
      %p188 = scmp.eq.s32.totalorder %s14, 0
      %p189 = por %p187, %p188
      %p190 = scmp.ne.s32.totalorder %s182, %s184
      %p191 = scmp.eq.s32.totalorder %s19, 3
      %p192 = por %p190, %p191
      %p193 = scmp.ne.s32.totalorder %s184, %s185
      %p194 = scmp.eq.s32.totalorder %s19, 0
      %p195 = por %p193, %p194
      %p196 = scmp.ne.s32.totalorder %s184, %s185
      %p197 = scmp.eq.s32.totalorder %s20, 3
      %p198 = por %p196, %p197
      %p200 = scmp.ne.s32.totalorder %s185, %s199
      %p201 = scmp.eq.s32.totalorder %s20, 0
      %p202 = por %p200, %p201
      %s204 = sadd.s32 %s203, 1
      %p207 = scmp.eq.s32.totalorder %s14, 3
      %p208 = scmp.ne.s32.totalorder %s203, %s205
      %p209 = scmp.eq.s32.totalorder %s14, 0
      %p210 = por %p208, %p209
      %p211 = scmp.ne.s32.totalorder %s203, %s205
      %p212 = scmp.eq.s32.totalorder %s19, 3
      %p213 = por %p211, %p212
      %p214 = scmp.ne.s32.totalorder %s205, %s206
      %p215 = scmp.eq.s32.totalorder %s19, 0
      %p216 = por %p214, %p215
      %p217 = scmp.ne.s32.totalorder %s205, %s206
      %p218 = scmp.eq.s32.totalorder %s20, 3
      %p219 = por %p217, %p218
      %p221 = scmp.ne.s32.totalorder %s206, %s220
      %p222 = scmp.eq.s32.totalorder %s20, 0
      %p223 = por %p221, %p222
      %s225 = sadd.s32 %s224, 1
      %p228 = scmp.eq.s32.totalorder %s14, 3
      %p229 = scmp.ne.s32.totalorder %s224, %s226
      %p230 = scmp.eq.s32.totalorder %s14, 0
      %p231 = por %p229, %p230
      %p232 = scmp.ne.s32.totalorder %s224, %s226
      %p233 = scmp.eq.s32.totalorder %s19, 3
      %p234 = por %p232, %p233
      %p235 = scmp.ne.s32.totalorder %s226, %s227
      %p236 = scmp.eq.s32.totalorder %s19, 0
      %p237 = por %p235, %p236
      %p238 = scmp.ne.s32.totalorder %s226, %s227
      %p239 = scmp.eq.s32.totalorder %s20, 3
      %p240 = por %p238, %p239
      %p242 = scmp.ne.s32.totalorder %s227, %s241
      %p243 = scmp.eq.s32.totalorder %s20, 0
      %p244 = por %p242, %p243
      %p245 = scmp.le.s32.totalorder 1, %s14
      %p246 = scmp.lt.s32.totalorder %s14, 5
      %p247 = pnand %p245, %p246
      %p248 = pneg %p247
      // Predicated region
      $region9: #{gnn_forward.3} parent=5 // pred_check
        _
      $region10: #{gnn_forward.3} parent=5 // pred_check_branch
        %250 = sbr.rel (%p247) target = $region12
      $region11: #{gnn_forward.3} parent=5 // pred_region
        %s251 = ssub.s32 %s14, 1
        // Predicated region
        $region13: #{gnn_forward.3} parent=11 // pred_check
          %p252 = pneg %p127
        $region14: #{gnn_forward.3} parent=11 // pred_check_branch
          %254 = sbr.rel (%p252) target = $region16
        $region15: #{gnn_forward.3} parent=11 // pred_region
          _
        $region16: #{gnn_forward.3} parent=11 // pred_fallthru
          _
        // Predicated region
        $region17: #{gnn_forward.3} parent=11 // pred_check
          %p255 = pneg %p148
        $region18: #{gnn_forward.3} parent=11 // pred_check_branch
          %257 = sbr.rel (%p255) target = $region20
        $region19: #{gnn_forward.3} parent=11 // pred_region
          _
        $region20: #{gnn_forward.3} parent=11 // pred_fallthru
          _
        // Predicated region
        $region21: #{gnn_forward.3} parent=11 // pred_check
          %p258 = pneg %p195
        $region22: #{gnn_forward.3} parent=11 // pred_check_branch
          %260 = sbr.rel (%p258) target = $region24
        $region23: #{gnn_forward.3} parent=11 // pred_region
          _
        $region24: #{gnn_forward.3} parent=11 // pred_fallthru
          _
        // Predicated region
        $region25: #{gnn_forward.3} parent=11 // pred_check
          %p261 = pneg %p216
        $region26: #{gnn_forward.3} parent=11 // pred_check_branch
          %263 = sbr.rel (%p261) target = $region28
        $region27: #{gnn_forward.3} parent=11 // pred_region
          _
        $region28: #{gnn_forward.3} parent=11 // pred_fallthru
          _
      $region12: #{gnn_forward.3} parent=5 // pred_fallthru
        _
      %p264 = scmp.lt.s32.totalorder %s14, 4
      // Predicated region
      $region29: #{gnn_forward.3} parent=5 // pred_check
        %p265 = pneg %p264
      $region30: #{gnn_forward.3} parent=5 // pred_check_branch
        %267 = sbr.rel (%p265) target = $region32
      $region31: #{gnn_forward.3} parent=5 // pred_region
        // Predicated region
        $region33: #{gnn_forward.3} parent=31 // pred_check
          %p268 = pneg %p48
        $region34: #{gnn_forward.3} parent=31 // pred_check_branch
          %270 = sbr.rel (%p268) target = $region36
        $region35: #{gnn_forward.3} parent=31 // pred_region
          %s271 = sand.u32 %s38, 1
          %s272 = sand.u32 %s38, 1
          %s273 = smul.addr %s272, 256
          %s274 = scalar_lea.vmem [#allocation4], %s273
          %s275 = smul.u32 32, %s21
          %s276 = smul.u32 2, %s22
          %s277 = smul.addr %s275, 4
          %s278 = sadd.s32 %s276, %s277
          %s279 = smul.addr %s278, 4
          %s280 = scalar_lea.vmem %s0, %s279
          // Predicated region
          $region37: #{gnn_forward.3} parent=35 // pred_check
            _
          $region38: #{gnn_forward.3} parent=35 // pred_check_branch
            %282 = sbr.rel (0) target = $region40
          $region39: #{gnn_forward.3} parent=35 // pred_region
            // Predicated region
            $region41: #{gnn_forward.3} parent=39 // pred_check
              _
            $region42: #{gnn_forward.3} parent=39 // pred_check_branch
              %284 = sbr.rel (0) target = $region44
            $region43: #{gnn_forward.3} parent=39 // pred_region
              // Predicated region
              $region56: #{gnn_forward.3} parent=43 // pred_check
                _
              $region57: #{gnn_forward.3} parent=43 // pred_check_branch
                %361 = sbr.rel (0) target = $region59
              $region58: #{gnn_forward.3} parent=43 // pred_region
                loop: start=0, step=1, limit=1
                $region60: #{gnn_forward.3} parent=58 // loop_pre_header
                  _
                $region61: #{gnn_forward.3} parent=58 // loop_header
                  %s363 = sphi 0, %s367
                  %p364 = scmp.ge.s32.totalorder %s363, 1
                  %s368 = sphi %s280, %s280
                  %s369 = sphi %s274, %s274
                $region62: #{gnn_forward.3} parent=58 // loop_header_branch
                  %366 = sbr.rel (%p364) target = $region66
                $region63: #{gnn_forward.3} parent=58 // loop_body
                  %v370 = vld [vmem:[%s368] sm:$0xff]
                  %371 = vst [vmem:[%s369] sm:$0xff] %v370
                  %v372 = vld [vmem:[%s368 + $0x10] sm:$0xff]
                  %373 = vst [vmem:[%s369 + $0x8] sm:$0xff] %v372
                  %v374 = vld [vmem:[%s368 + $0x20] sm:$0xff]
                  %375 = vst [vmem:[%s369 + $0x10] sm:$0xff] %v374
                  %v376 = vld [vmem:[%s368 + $0x30] sm:$0xff]
                  %377 = vst [vmem:[%s369 + $0x18] sm:$0xff] %v376
                  %v378 = vld [vmem:[%s368 + $0x40] sm:$0xff]
                  %379 = vst [vmem:[%s369 + $0x20] sm:$0xff] %v378
                  %v380 = vld [vmem:[%s368 + $0x50] sm:$0xff]
                  %381 = vst [vmem:[%s369 + $0x28] sm:$0xff] %v380
                  %v382 = vld [vmem:[%s368 + $0x60] sm:$0xff]
                  %383 = vst [vmem:[%s369 + $0x30] sm:$0xff] %v382
                  %v384 = vld [vmem:[%s368 + $0x70] sm:$0xff]
                  %385 = vst [vmem:[%s369 + $0x38] sm:$0xff] %v384
                  %v386 = vld [vmem:[%s368 + $0x80] sm:$0xff]
                  %387 = vst [vmem:[%s369 + $0x40] sm:$0xff] %v386
                  %v388 = vld [vmem:[%s368 + $0x90] sm:$0xff]
                  %389 = vst [vmem:[%s369 + $0x48] sm:$0xff] %v388
                  %v390 = vld [vmem:[%s368 + $0xa0] sm:$0xff]
                  %391 = vst [vmem:[%s369 + $0x50] sm:$0xff] %v390
                  %v392 = vld [vmem:[%s368 + $0xb0] sm:$0xff]
                  %393 = vst [vmem:[%s369 + $0x58] sm:$0xff] %v392
                  %v394 = vld [vmem:[%s368 + $0xc0] sm:$0xff]
                  %395 = vst [vmem:[%s369 + $0x60] sm:$0xff] %v394
                  %v396 = vld [vmem:[%s368 + $0xd0] sm:$0xff]
                  %397 = vst [vmem:[%s369 + $0x68] sm:$0xff] %v396
                  %v398 = vld [vmem:[%s368 + $0xe0] sm:$0xff]
                  %399 = vst [vmem:[%s369 + $0x70] sm:$0xff] %v398
                  %v400 = vld [vmem:[%s368 + $0xf0] sm:$0xff]
                  %401 = vst [vmem:[%s369 + $0x78] sm:$0xff] %v400
                  %v402 = vld [vmem:[%s368 + $0x100] sm:$0xff]
                  %403 = vst [vmem:[%s369 + $0x80] sm:$0xff] %v402
                  %v404 = vld [vmem:[%s368 + $0x110] sm:$0xff]
                  %405 = vst [vmem:[%s369 + $0x88] sm:$0xff] %v404
                  %v406 = vld [vmem:[%s368 + $0x120] sm:$0xff]
                  %407 = vst [vmem:[%s369 + $0x90] sm:$0xff] %v406
                  %v408 = vld [vmem:[%s368 + $0x130] sm:$0xff]
                  %409 = vst [vmem:[%s369 + $0x98] sm:$0xff] %v408
                  %v410 = vld [vmem:[%s368 + $0x140] sm:$0xff]
                  %411 = vst [vmem:[%s369 + $0xa0] sm:$0xff] %v410
                  %v412 = vld [vmem:[%s368 + $0x150] sm:$0xff]
                  %413 = vst [vmem:[%s369 + $0xa8] sm:$0xff] %v412
                  %v414 = vld [vmem:[%s368 + $0x160] sm:$0xff]
                  %415 = vst [vmem:[%s369 + $0xb0] sm:$0xff] %v414
                  %v416 = vld [vmem:[%s368 + $0x170] sm:$0xff]
                  %417 = vst [vmem:[%s369 + $0xb8] sm:$0xff] %v416
                  %v418 = vld [vmem:[%s368 + $0x180] sm:$0xff]
                  %419 = vst [vmem:[%s369 + $0xc0] sm:$0xff] %v418
                  %v420 = vld [vmem:[%s368 + $0x190] sm:$0xff]
                  %421 = vst [vmem:[%s369 + $0xc8] sm:$0xff] %v420
                  %v422 = vld [vmem:[%s368 + $0x1a0] sm:$0xff]
                  %423 = vst [vmem:[%s369 + $0xd0] sm:$0xff] %v422
                  %v424 = vld [vmem:[%s368 + $0x1b0] sm:$0xff]
                  %425 = vst [vmem:[%s369 + $0xd8] sm:$0xff] %v424
                  %v426 = vld [vmem:[%s368 + $0x1c0] sm:$0xff]
                  %427 = vst [vmem:[%s369 + $0xe0] sm:$0xff] %v426
                  %v428 = vld [vmem:[%s368 + $0x1d0] sm:$0xff]
                  %429 = vst [vmem:[%s369 + $0xe8] sm:$0xff] %v428
                  %v430 = vld [vmem:[%s368 + $0x1e0] sm:$0xff]
                  %431 = vst [vmem:[%s369 + $0xf0] sm:$0xff] %v430
                  %v432 = vld [vmem:[%s368 + $0x1f0] sm:$0xff]
                  %433 = vst [vmem:[%s369 + $0xf8] sm:$0xff] %v432
                $region64: #{gnn_forward.3} parent=58 // loop_footer
                  %s367 = sadd.s32 1, %s363
                $region65: #{gnn_forward.3} parent=58 // loop_footer_branch
                  %362 = sbr.rel target = $region61
                $region66: #{gnn_forward.3} parent=58 // loop_exit
                  _
              $region59: #{gnn_forward.3} parent=43 // pred_fallthru
                _
              // Predicated region
              $region67: #{gnn_forward.3} parent=43 // pred_check
                _
              $region68: #{gnn_forward.3} parent=43 // pred_check_branch
                %435 = sbr.rel target = $region70
              $region69: #{gnn_forward.3} parent=43 // pred_region
                _
              $region70: #{gnn_forward.3} parent=43 // pred_fallthru
                _
            $region44: #{gnn_forward.3} parent=39 // pred_fallthru
              _
            // Predicated region
            $region45: #{gnn_forward.3} parent=39 // pred_check
              _
            $region46: #{gnn_forward.3} parent=39 // pred_check_branch
              %286 = sbr.rel target = $region48
            $region47: #{gnn_forward.3} parent=39 // pred_region
              loop: start=0, step=1, limit=1
              $region49: #{gnn_forward.3} parent=47 // loop_pre_header
                _
              $region50: #{gnn_forward.3} parent=47 // loop_header
                %s289 = sphi 0, %s293
                %p290 = scmp.ge.s32.totalorder %s289, 1
                %s294 = sphi %s280, %s280
                %s295 = sphi %s274, %s274
              $region51: #{gnn_forward.3} parent=47 // loop_header_branch
                %292 = sbr.rel (%p290) target = $region55
              $region52: #{gnn_forward.3} parent=47 // loop_body
                %v296 = vld [vmem:[%s294] sm:$0xff]
                %297 = vst [vmem:[%s295] sm:$0xff] %v296
                %v298 = vld [vmem:[%s294 + $0x10] sm:$0xff]
                %299 = vst [vmem:[%s295 + $0x8] sm:$0xff] %v298
                %v300 = vld [vmem:[%s294 + $0x20] sm:$0xff]
                %301 = vst [vmem:[%s295 + $0x10] sm:$0xff] %v300
                %v302 = vld [vmem:[%s294 + $0x30] sm:$0xff]
                %303 = vst [vmem:[%s295 + $0x18] sm:$0xff] %v302
                %v304 = vld [vmem:[%s294 + $0x40] sm:$0xff]
                %305 = vst [vmem:[%s295 + $0x20] sm:$0xff] %v304
                %v306 = vld [vmem:[%s294 + $0x50] sm:$0xff]
                %307 = vst [vmem:[%s295 + $0x28] sm:$0xff] %v306
                %v308 = vld [vmem:[%s294 + $0x60] sm:$0xff]
                %309 = vst [vmem:[%s295 + $0x30] sm:$0xff] %v308
                %v310 = vld [vmem:[%s294 + $0x70] sm:$0xff]
                %311 = vst [vmem:[%s295 + $0x38] sm:$0xff] %v310
                %v312 = vld [vmem:[%s294 + $0x80] sm:$0xff]
                %313 = vst [vmem:[%s295 + $0x40] sm:$0xff] %v312
                %v314 = vld [vmem:[%s294 + $0x90] sm:$0xff]
                %315 = vst [vmem:[%s295 + $0x48] sm:$0xff] %v314
                %v316 = vld [vmem:[%s294 + $0xa0] sm:$0xff]
                %317 = vst [vmem:[%s295 + $0x50] sm:$0xff] %v316
                %v318 = vld [vmem:[%s294 + $0xb0] sm:$0xff]
                %319 = vst [vmem:[%s295 + $0x58] sm:$0xff] %v318
                %v320 = vld [vmem:[%s294 + $0xc0] sm:$0xff]
                %321 = vst [vmem:[%s295 + $0x60] sm:$0xff] %v320
                %v322 = vld [vmem:[%s294 + $0xd0] sm:$0xff]
                %323 = vst [vmem:[%s295 + $0x68] sm:$0xff] %v322
                %v324 = vld [vmem:[%s294 + $0xe0] sm:$0xff]
                %325 = vst [vmem:[%s295 + $0x70] sm:$0xff] %v324
                %v326 = vld [vmem:[%s294 + $0xf0] sm:$0xff]
                %327 = vst [vmem:[%s295 + $0x78] sm:$0xff] %v326
                %v328 = vld [vmem:[%s294 + $0x100] sm:$0xff]
                %329 = vst [vmem:[%s295 + $0x80] sm:$0xff] %v328
                %v330 = vld [vmem:[%s294 + $0x110] sm:$0xff]
                %331 = vst [vmem:[%s295 + $0x88] sm:$0xff] %v330
                %v332 = vld [vmem:[%s294 + $0x120] sm:$0xff]
                %333 = vst [vmem:[%s295 + $0x90] sm:$0xff] %v332
                %v334 = vld [vmem:[%s294 + $0x130] sm:$0xff]
                %335 = vst [vmem:[%s295 + $0x98] sm:$0xff] %v334
                %v336 = vld [vmem:[%s294 + $0x140] sm:$0xff]
                %337 = vst [vmem:[%s295 + $0xa0] sm:$0xff] %v336
                %v338 = vld [vmem:[%s294 + $0x150] sm:$0xff]
                %339 = vst [vmem:[%s295 + $0xa8] sm:$0xff] %v338
                %v340 = vld [vmem:[%s294 + $0x160] sm:$0xff]
                %341 = vst [vmem:[%s295 + $0xb0] sm:$0xff] %v340
                %v342 = vld [vmem:[%s294 + $0x170] sm:$0xff]
                %343 = vst [vmem:[%s295 + $0xb8] sm:$0xff] %v342
                %v344 = vld [vmem:[%s294 + $0x180] sm:$0xff]
                %345 = vst [vmem:[%s295 + $0xc0] sm:$0xff] %v344
                %v346 = vld [vmem:[%s294 + $0x190] sm:$0xff]
                %347 = vst [vmem:[%s295 + $0xc8] sm:$0xff] %v346
                %v348 = vld [vmem:[%s294 + $0x1a0] sm:$0xff]
                %349 = vst [vmem:[%s295 + $0xd0] sm:$0xff] %v348
                %v350 = vld [vmem:[%s294 + $0x1b0] sm:$0xff]
                %351 = vst [vmem:[%s295 + $0xd8] sm:$0xff] %v350
                %v352 = vld [vmem:[%s294 + $0x1c0] sm:$0xff]
                %353 = vst [vmem:[%s295 + $0xe0] sm:$0xff] %v352
                %v354 = vld [vmem:[%s294 + $0x1d0] sm:$0xff]
                %355 = vst [vmem:[%s295 + $0xe8] sm:$0xff] %v354
                %v356 = vld [vmem:[%s294 + $0x1e0] sm:$0xff]
                %357 = vst [vmem:[%s295 + $0xf0] sm:$0xff] %v356
                %v358 = vld [vmem:[%s294 + $0x1f0] sm:$0xff]
                %359 = vst [vmem:[%s295 + $0xf8] sm:$0xff] %v358
              $region53: #{gnn_forward.3} parent=47 // loop_footer
                %s293 = sadd.s32 1, %s289
              $region54: #{gnn_forward.3} parent=47 // loop_footer_branch
                %288 = sbr.rel target = $region50
              $region55: #{gnn_forward.3} parent=47 // loop_exit
                _
            $region48: #{gnn_forward.3} parent=39 // pred_fallthru
              _
          $region40: #{gnn_forward.3} parent=35 // pred_fallthru
            _
          %436 = vnop
        $region36: #{gnn_forward.3} parent=31 // pred_fallthru
          _
        // Predicated region
        $region71: #{gnn_forward.3} parent=31 // pred_check
          %p437 = pneg %p74
        $region72: #{gnn_forward.3} parent=31 // pred_check_branch
          %439 = sbr.rel (%p437) target = $region74
        $region73: #{gnn_forward.3} parent=31 // pred_region
          %s440 = smul.u32 32, %s22
          %p441 = scmp.lt.s32.totalorder %s440, 63
          %s442 = scalar_select %p441, %s440, 63
          %s443 = smul.addr %s442, 4
          %s444 = scalar_lea.vmem %s1, %s443
          %s445 = smul.u32 32, %s22
        $region74: #{gnn_forward.3} parent=31 // pred_fallthru
          _
        // Predicated region
        $region75: #{gnn_forward.3} parent=31 // pred_check
          %p446 = pneg %p100
        $region76: #{gnn_forward.3} parent=31 // pred_check_branch
          %448 = sbr.rel (%p446) target = $region78
        $region77: #{gnn_forward.3} parent=31 // pred_region
          %s449 = smul.u32 32, %s21
          %p450 = scmp.lt.s32.totalorder %s449, 63
          %s451 = scalar_select %p450, %s449, 63
          %s452 = smul.addr %s451, 4
          %s453 = scalar_lea.vmem %s2, %s452
          %s454 = smul.u32 32, %s21
        $region78: #{gnn_forward.3} parent=31 // pred_fallthru
          _
        // Predicated region
        $region79: #{gnn_forward.3} parent=31 // pred_check
          %p455 = pneg %p168
        $region80: #{gnn_forward.3} parent=31 // pred_check_branch
          %457 = sbr.rel (%p455) target = $region82
        $region81: #{gnn_forward.3} parent=31 // pred_region
          %s458 = smul.u32 2, %s21
          %p459 = scmp.lt.s32.totalorder %s458, 3
          %s460 = scalar_select %p459, %s458, 3
          %s461 = smul.addr %s460, 4
          %s462 = scalar_lea.vmem %s5, %s461
          %s463 = smul.u32 2, %s21
        $region82: #{gnn_forward.3} parent=31 // pred_fallthru
          _
      $region32: #{gnn_forward.3} parent=5 // pred_fallthru
        _
      %p464 = scmp.le.s32.totalorder 1, %s14
      %p465 = scmp.lt.s32.totalorder %s14, 5
      %p466 = pnand %p464, %p465
      %p467 = pneg %p466
      // Predicated region
      $region83: #{gnn_forward.3} parent=5 // pred_check
        _
      $region84: #{gnn_forward.3} parent=5 // pred_check_branch
        %469 = sbr.rel (%p466) target = $region86
      $region85: #{gnn_forward.3} parent=5 // pred_region
        %s470 = ssub.s32 %s14, 1
        %s471 = sand.u32 %s41, 1
        %s472 = sand.u32 %s41, 1
        %s473 = smul.addr %s472, 256
        %s474 = scalar_lea.vmem [#allocation4], %s473
        // Predicated region
        $region87: #{gnn_forward.3} parent=85 // pred_check
          %p475 = pneg %p54
        $region88: #{gnn_forward.3} parent=85 // pred_check_branch
          %477 = sbr.rel (%p475) target = $region90
        $region89: #{gnn_forward.3} parent=85 // pred_region
          _
        $region90: #{gnn_forward.3} parent=85 // pred_fallthru
          _
        %s478 = sand.u32 %s41, 1
        %s479 = sand.u32 %s41, 1
        %s480 = smul.addr %s479, 256
        %s481 = scalar_lea.vmem [#allocation4], %s480
        %p482 = pneg %p54
        %p483 = pneg %p51
        %s484 = smul.u32 32, %s24
        %p485 = scmp.lt.s32.totalorder %s484, 63
        %s486 = scalar_select %p485, %s484, 63
        %s487 = smul.addr %s486, 4
        %s488 = scalar_lea.vmem %s1, %s487
        %p489 = pneg %p80
        %p490 = pneg %p77
        %s491 = smul.u32 32, %s23
        %p492 = scmp.lt.s32.totalorder %s491, 63
        %s493 = scalar_select %p492, %s491, 63
        %s494 = smul.addr %s493, 4
        %s495 = scalar_lea.vmem %s2, %s494
        %p496 = pneg %p106
        %p497 = pneg %p103
        %p498 = pneg %p127
        %p499 = pneg %p124
        %p500 = pneg %p148
        %p501 = pneg %p145
        %s502 = smul.u32 2, %s23
        %p503 = scmp.lt.s32.totalorder %s502, 3
        %s504 = scalar_select %p503, %s502, 3
        %s505 = smul.addr %s504, 4
        %s506 = scalar_lea.vmem %s5, %s505
        %p507 = pneg %p174
        %p508 = pneg %p171
        %p509 = pneg %p195
        %p510 = pneg %p192
        %p511 = pneg %p216
        %p512 = pneg %p213
        %p513 = pneg %p237
        %p514 = pneg %p234
        %s515 = smul.u32 32, %s23
        %s516 = smul.u32 2, %s24
        %s517 = smul.u32 32, %s24
        %p518 = scmp.lt.s32.totalorder %s517, 63
        %s519 = scalar_select %p518, %s517, 63
        %s520 = smul.addr %s519, 4
        %s521 = scalar_lea.vmem %s1, %s520
        %s522 = smul.u32 32, %s24
        %s523 = smul.u32 32, %s23
        %p524 = scmp.lt.s32.totalorder %s523, 63
        %s525 = scalar_select %p524, %s523, 63
        %s526 = smul.addr %s525, 4
        %s527 = scalar_lea.vmem %s2, %s526
        %s528 = smul.u32 32, %s23
        %s529 = smul.u32 2, %s23
        %p530 = scmp.lt.s32.totalorder %s529, 3
        %s531 = scalar_select %p530, %s529, 3
        %s532 = smul.addr %s531, 4
        %s533 = scalar_lea.vmem %s5, %s532
        %s534 = smul.u32 2, %s23
        %p536 = scmp.eq.s32.totalorder %s23, 0
        %p537 = scmp.eq.s32.totalorder %s24, 0
        %p538 = pnand %p536, %p537
        %p539 = pneg %p538
        // Predicated region
        $region91: #{gnn_forward.3} parent=85 // pred_check
          _
        $region92: #{gnn_forward.3} parent=85 // pred_check_branch
          %541 = sbr.rel (%p538) target = $region94
        $region93: #{gnn_forward.3} parent=85 // pred_region
          %542 = vst [vmem:[#allocation3] sm:$0xff] 0.0
        $region94: #{gnn_forward.3} parent=85 // pred_fallthru
          _
        // Predicated region
        $region95: #{gnn_forward.3} parent=85 // pred_check
          %p543 = pneg %p537
        $region96: #{gnn_forward.3} parent=85 // pred_check_branch
          %545 = sbr.rel (%p543) target = $region98
        $region97: #{gnn_forward.3} parent=85 // pred_region
          %546 = vst [vmem:[#allocation2] sm:$0xff] 0.0
          %547 = vst [vmem:[#allocation2 + $0x8] sm:$0xff] 0.0
          %548 = vst [vmem:[#allocation2 + $0x10] sm:$0xff] 0.0
          %549 = vst [vmem:[#allocation2 + $0x18] sm:$0xff] 0.0
          %550 = vst [vmem:[#allocation2 + $0x20] sm:$0xff] 0.0
          %551 = vst [vmem:[#allocation2 + $0x28] sm:$0xff] 0.0
          %552 = vst [vmem:[#allocation2 + $0x30] sm:$0xff] 0.0
          %553 = vst [vmem:[#allocation2 + $0x38] sm:$0xff] 0.0
          %554 = vst [vmem:[#allocation2 + $0x40] sm:$0xff] 0.0
          %555 = vst [vmem:[#allocation2 + $0x48] sm:$0xff] 0.0
          %556 = vst [vmem:[#allocation2 + $0x50] sm:$0xff] 0.0
          %557 = vst [vmem:[#allocation2 + $0x58] sm:$0xff] 0.0
          %558 = vst [vmem:[#allocation2 + $0x60] sm:$0xff] 0.0
          %559 = vst [vmem:[#allocation2 + $0x68] sm:$0xff] 0.0
          %560 = vst [vmem:[#allocation2 + $0x70] sm:$0xff] 0.0
          %561 = vst [vmem:[#allocation2 + $0x78] sm:$0xff] 0.0
          %562 = vst [vmem:[#allocation2 + $0x80] sm:$0xff] 0.0
          %563 = vst [vmem:[#allocation2 + $0x88] sm:$0xff] 0.0
          %564 = vst [vmem:[#allocation2 + $0x90] sm:$0xff] 0.0
          %565 = vst [vmem:[#allocation2 + $0x98] sm:$0xff] 0.0
          %566 = vst [vmem:[#allocation2 + $0xa0] sm:$0xff] 0.0
          %567 = vst [vmem:[#allocation2 + $0xa8] sm:$0xff] 0.0
          %568 = vst [vmem:[#allocation2 + $0xb0] sm:$0xff] 0.0
          %569 = vst [vmem:[#allocation2 + $0xb8] sm:$0xff] 0.0
          %570 = vst [vmem:[#allocation2 + $0xc0] sm:$0xff] 0.0
          %571 = vst [vmem:[#allocation2 + $0xc8] sm:$0xff] 0.0
          %572 = vst [vmem:[#allocation2 + $0xd0] sm:$0xff] 0.0
          %573 = vst [vmem:[#allocation2 + $0xd8] sm:$0xff] 0.0
          %574 = vst [vmem:[#allocation2 + $0xe0] sm:$0xff] 0.0
          %575 = vst [vmem:[#allocation2 + $0xe8] sm:$0xff] 0.0
          %576 = vst [vmem:[#allocation2 + $0xf0] sm:$0xff] 0.0
          %577 = vst [vmem:[#allocation2 + $0xf8] sm:$0xff] 0.0
        $region98: #{gnn_forward.3} parent=85 // pred_fallthru
          _
        %v578 = vld [vmem:[#allocation2] sm:$0xff]
        %v579 = vld [vmem:[#allocation2 + $0x8] sm:$0xff]
        %v580 = vld [vmem:[#allocation2 + $0x10] sm:$0xff]
        %v581 = vld [vmem:[#allocation2 + $0x18] sm:$0xff]
        %v582 = vld [vmem:[#allocation2 + $0x20] sm:$0xff]
        %v583 = vld [vmem:[#allocation2 + $0x28] sm:$0xff]
        %v584 = vld [vmem:[#allocation2 + $0x30] sm:$0xff]
        %v585 = vld [vmem:[#allocation2 + $0x38] sm:$0xff]
        %v586 = vld [vmem:[#allocation2 + $0x40] sm:$0xff]
        %v587 = vld [vmem:[#allocation2 + $0x48] sm:$0xff]
        %v588 = vld [vmem:[#allocation2 + $0x50] sm:$0xff]
        %v589 = vld [vmem:[#allocation2 + $0x58] sm:$0xff]
        %v590 = vld [vmem:[#allocation2 + $0x60] sm:$0xff]
        %v591 = vld [vmem:[#allocation2 + $0x68] sm:$0xff]
        %v592 = vld [vmem:[#allocation2 + $0x70] sm:$0xff]
        %v593 = vld [vmem:[#allocation2 + $0x78] sm:$0xff]
        %v594 = vld [vmem:[#allocation2 + $0x80] sm:$0xff]
        %v595 = vld [vmem:[#allocation2 + $0x88] sm:$0xff]
        %v596 = vld [vmem:[#allocation2 + $0x90] sm:$0xff]
        %v597 = vld [vmem:[#allocation2 + $0x98] sm:$0xff]
        %v598 = vld [vmem:[#allocation2 + $0xa0] sm:$0xff]
        %v599 = vld [vmem:[#allocation2 + $0xa8] sm:$0xff]
        %v600 = vld [vmem:[#allocation2 + $0xb0] sm:$0xff]
        %v601 = vld [vmem:[#allocation2 + $0xb8] sm:$0xff]
        %v602 = vld [vmem:[#allocation2 + $0xc0] sm:$0xff]
        %v603 = vld [vmem:[#allocation2 + $0xc8] sm:$0xff]
        %v604 = vld [vmem:[#allocation2 + $0xd0] sm:$0xff]
        %v605 = vld [vmem:[#allocation2 + $0xd8] sm:$0xff]
        %v606 = vld [vmem:[#allocation2 + $0xe0] sm:$0xff]
        %v607 = vld [vmem:[#allocation2 + $0xe8] sm:$0xff]
        %v608 = vld [vmem:[#allocation2 + $0xf0] sm:$0xff]
        %v609 = vld [vmem:[#allocation2 + $0xf8] sm:$0xff]
        %v610 = vld [vmem:[%s474] sm:$0xff]
        %v611 = vld [vmem:[%s474 + $0x8] sm:$0xff]
        %v612 = vld [vmem:[%s474 + $0x10] sm:$0xff]
        %v613 = vld [vmem:[%s474 + $0x18] sm:$0xff]
        %v614 = vld [vmem:[%s474 + $0x20] sm:$0xff]
        %v615 = vld [vmem:[%s474 + $0x28] sm:$0xff]
        %v616 = vld [vmem:[%s474 + $0x30] sm:$0xff]
        %v617 = vld [vmem:[%s474 + $0x38] sm:$0xff]
        %v618 = vld [vmem:[%s474 + $0x40] sm:$0xff]
        %v619 = vld [vmem:[%s474 + $0x48] sm:$0xff]
        %v620 = vld [vmem:[%s474 + $0x50] sm:$0xff]
        %v621 = vld [vmem:[%s474 + $0x58] sm:$0xff]
        %v622 = vld [vmem:[%s474 + $0x60] sm:$0xff]
        %v623 = vld [vmem:[%s474 + $0x68] sm:$0xff]
        %v624 = vld [vmem:[%s474 + $0x70] sm:$0xff]
        %v625 = vld [vmem:[%s474 + $0x78] sm:$0xff]
        %v626 = vld [vmem:[%s474 + $0x80] sm:$0xff]
        %v627 = vld [vmem:[%s474 + $0x88] sm:$0xff]
        %v628 = vld [vmem:[%s474 + $0x90] sm:$0xff]
        %v629 = vld [vmem:[%s474 + $0x98] sm:$0xff]
        %v630 = vld [vmem:[%s474 + $0xa0] sm:$0xff]
        %v631 = vld [vmem:[%s474 + $0xa8] sm:$0xff]
        %v632 = vld [vmem:[%s474 + $0xb0] sm:$0xff]
        %v633 = vld [vmem:[%s474 + $0xb8] sm:$0xff]
        %v634 = vld [vmem:[%s474 + $0xc0] sm:$0xff]
        %v635 = vld [vmem:[%s474 + $0xc8] sm:$0xff]
        %v636 = vld [vmem:[%s474 + $0xd0] sm:$0xff]
        %v637 = vld [vmem:[%s474 + $0xd8] sm:$0xff]
        %v638 = vld [vmem:[%s474 + $0xe0] sm:$0xff]
        %v639 = vld [vmem:[%s474 + $0xe8] sm:$0xff]
        %v640 = vld [vmem:[%s474 + $0xf0] sm:$0xff]
        %v641 = vld [vmem:[%s474 + $0xf8] sm:$0xff]
        %v642 = vld [vmem:[%s521] sm:$0xf]
        %v643 = vld [vmem:[%s521 + $0x4] sm:$0xf]
        %v644 = vld [vmem:[%s521 + $0x8] sm:$0xf]
        %v645 = vld [vmem:[%s521 + $0xc] sm:$0xf]
        %v646 = vld [vmem:[%s521 + $0x10] sm:$0xf]
        %v647 = vld [vmem:[%s521 + $0x14] sm:$0xf]
        %v648 = vld [vmem:[%s521 + $0x18] sm:$0xf]
        %v649 = vld [vmem:[%s521 + $0x1c] sm:$0xf]
        %v650 = vld [vmem:[%s521 + $0x20] sm:$0xf]
        %v651 = vld [vmem:[%s521 + $0x24] sm:$0xf]
        %v652 = vld [vmem:[%s521 + $0x28] sm:$0xf]
        %v653 = vld [vmem:[%s521 + $0x2c] sm:$0xf]
        %v654 = vld [vmem:[%s521 + $0x30] sm:$0xf]
        %v655 = vld [vmem:[%s521 + $0x34] sm:$0xf]
        %v656 = vld [vmem:[%s521 + $0x38] sm:$0xf]
        %v657 = vld [vmem:[%s521 + $0x3c] sm:$0xf]
        %v658 = vld [vmem:[%s521 + $0x40] sm:$0xf]
        %v659 = vld [vmem:[%s521 + $0x44] sm:$0xf]
        %v660 = vld [vmem:[%s521 + $0x48] sm:$0xf]
        %v661 = vld [vmem:[%s521 + $0x4c] sm:$0xf]
        %v662 = vld [vmem:[%s521 + $0x50] sm:$0xf]
        %v663 = vld [vmem:[%s521 + $0x54] sm:$0xf]
        %v664 = vld [vmem:[%s521 + $0x58] sm:$0xf]
        %v665 = vld [vmem:[%s521 + $0x5c] sm:$0xf]
        %v666 = vld [vmem:[%s521 + $0x60] sm:$0xf]
        %v667 = vld [vmem:[%s521 + $0x64] sm:$0xf]
        %v668 = vld [vmem:[%s521 + $0x68] sm:$0xf]
        %v669 = vld [vmem:[%s521 + $0x6c] sm:$0xf]
        %v670 = vld [vmem:[%s521 + $0x70] sm:$0xf]
        %v671 = vld [vmem:[%s521 + $0x74] sm:$0xf]
        %v672 = vld [vmem:[%s521 + $0x78] sm:$0xf]
        %v673 = vld [vmem:[%s521 + $0x7c] sm:$0xf]
        %v706 = vunpack.c.l.b16 %v610
        %v707 = vunpack.c.h.b16 %v610
        %v708 = vunpack.c.l.b16 %v611
        %v709 = vunpack.c.h.b16 %v611
        %v710 = vunpack.c.l.b16 %v612
        %v711 = vunpack.c.h.b16 %v612
        %v712 = vunpack.c.l.b16 %v613
        %v713 = vunpack.c.h.b16 %v613
        %v714 = vunpack.c.l.b16 %v614
        %v715 = vunpack.c.h.b16 %v614
        %v716 = vunpack.c.l.b16 %v615
        %v717 = vunpack.c.h.b16 %v615
        %v718 = vunpack.c.l.b16 %v616
        %v719 = vunpack.c.h.b16 %v616
        %v720 = vunpack.c.l.b16 %v617
        %v721 = vunpack.c.h.b16 %v617
        %v722 = vunpack.c.l.b16 %v618
        %v723 = vunpack.c.h.b16 %v618
        %v724 = vunpack.c.l.b16 %v619
        %v725 = vunpack.c.h.b16 %v619
        %v726 = vunpack.c.l.b16 %v620
        %v727 = vunpack.c.h.b16 %v620
        %v728 = vunpack.c.l.b16 %v621
        %v729 = vunpack.c.h.b16 %v621
        %v730 = vunpack.c.l.b16 %v622
        %v731 = vunpack.c.h.b16 %v622
        %v732 = vunpack.c.l.b16 %v623
        %v733 = vunpack.c.h.b16 %v623
        %v734 = vunpack.c.l.b16 %v624
        %v735 = vunpack.c.h.b16 %v624
        %v736 = vunpack.c.l.b16 %v625
        %v737 = vunpack.c.h.b16 %v625
        %v738 = vunpack.c.l.b16 %v626
        %v739 = vunpack.c.h.b16 %v626
        %v740 = vunpack.c.l.b16 %v627
        %v741 = vunpack.c.h.b16 %v627
        %v742 = vunpack.c.l.b16 %v628
        %v743 = vunpack.c.h.b16 %v628
        %v744 = vunpack.c.l.b16 %v629
        %v745 = vunpack.c.h.b16 %v629
        %v746 = vunpack.c.l.b16 %v630
        %v747 = vunpack.c.h.b16 %v630
        %v748 = vunpack.c.l.b16 %v631
        %v749 = vunpack.c.h.b16 %v631
        %v750 = vunpack.c.l.b16 %v632
        %v751 = vunpack.c.h.b16 %v632
        %v752 = vunpack.c.l.b16 %v633
        %v753 = vunpack.c.h.b16 %v633
        %v754 = vunpack.c.l.b16 %v634
        %v755 = vunpack.c.h.b16 %v634
        %v756 = vunpack.c.l.b16 %v635
        %v757 = vunpack.c.h.b16 %v635
        %v758 = vunpack.c.l.b16 %v636
        %v759 = vunpack.c.h.b16 %v636
        %v760 = vunpack.c.l.b16 %v637
        %v761 = vunpack.c.h.b16 %v637
        %v762 = vunpack.c.l.b16 %v638
        %v763 = vunpack.c.h.b16 %v638
        %v764 = vunpack.c.l.b16 %v639
        %v765 = vunpack.c.h.b16 %v639
        %v766 = vunpack.c.l.b16 %v640
        %v767 = vunpack.c.h.b16 %v640
        %v768 = vunpack.c.l.b16 %v641
        %v769 = vunpack.c.h.b16 %v641
        %v770 = vpack.c.b16 %v708, %v706
        %v771 = vpack.c.b16 %v709, %v707
        %v772 = vpack.c.b16 %v712, %v710
        %v773 = vpack.c.b16 %v713, %v711
        %v774 = vpack.c.b16 %v716, %v714
        %v775 = vpack.c.b16 %v717, %v715
        %v776 = vpack.c.b16 %v720, %v718
        %v777 = vpack.c.b16 %v721, %v719
        %v778 = vpack.c.b16 %v724, %v722
        %v779 = vpack.c.b16 %v725, %v723
        %v780 = vpack.c.b16 %v728, %v726
        %v781 = vpack.c.b16 %v729, %v727
        %v782 = vpack.c.b16 %v732, %v730
        %v783 = vpack.c.b16 %v733, %v731
        %v784 = vpack.c.b16 %v736, %v734
        %v785 = vpack.c.b16 %v737, %v735
        %v786 = vpack.c.b16 %v740, %v738
        %v787 = vpack.c.b16 %v741, %v739
        %v788 = vpack.c.b16 %v744, %v742
        %v789 = vpack.c.b16 %v745, %v743
        %v790 = vpack.c.b16 %v748, %v746
        %v791 = vpack.c.b16 %v749, %v747
        %v792 = vpack.c.b16 %v752, %v750
        %v793 = vpack.c.b16 %v753, %v751
        %v794 = vpack.c.b16 %v756, %v754
        %v795 = vpack.c.b16 %v757, %v755
        %v796 = vpack.c.b16 %v760, %v758
        %v797 = vpack.c.b16 %v761, %v759
        %v798 = vpack.c.b16 %v764, %v762
        %v799 = vpack.c.b16 %v765, %v763
        %v800 = vpack.c.b16 %v768, %v766
        %v801 = vpack.c.b16 %v769, %v767
        %v866 = vunpack.c.l.b16 %v642
        %v867 = vunpack.c.l.b16 %v643
        %v868 = vunpack.c.l.b16 %v644
        %v869 = vunpack.c.l.b16 %v645
        %v870 = vunpack.c.l.b16 %v646
        %v871 = vunpack.c.l.b16 %v647
        %v872 = vunpack.c.l.b16 %v648
        %v873 = vunpack.c.l.b16 %v649
        %v874 = vunpack.c.l.b16 %v650
        %v875 = vunpack.c.l.b16 %v651
        %v876 = vunpack.c.l.b16 %v652
        %v877 = vunpack.c.l.b16 %v653
        %v878 = vunpack.c.l.b16 %v654
        %v879 = vunpack.c.l.b16 %v655
        %v880 = vunpack.c.l.b16 %v656
        %v881 = vunpack.c.l.b16 %v657
        %v882 = vunpack.c.l.b16 %v658
        %v883 = vunpack.c.l.b16 %v659
        %v884 = vunpack.c.l.b16 %v660
        %v885 = vunpack.c.l.b16 %v661
        %v886 = vunpack.c.l.b16 %v662
        %v887 = vunpack.c.l.b16 %v663
        %v888 = vunpack.c.l.b16 %v664
        %v889 = vunpack.c.l.b16 %v665
        %v890 = vunpack.c.l.b16 %v666
        %v891 = vunpack.c.l.b16 %v667
        %v892 = vunpack.c.l.b16 %v668
        %v893 = vunpack.c.l.b16 %v669
        %v894 = vunpack.c.l.b16 %v670
        %v895 = vunpack.c.l.b16 %v671
        %v896 = vunpack.c.l.b16 %v672
        %v897 = vunpack.c.l.b16 %v673
        %v898 = vpack.c.b16 %v867, %v866
        %v899 = vpack.c.b16 %v869, %v868
        %v900 = vpack.c.b16 %v871, %v870
        %v901 = vpack.c.b16 %v873, %v872
        %v902 = vpack.c.b16 %v875, %v874
        %v903 = vpack.c.b16 %v877, %v876
        %v904 = vpack.c.b16 %v879, %v878
        %v905 = vpack.c.b16 %v881, %v880
        %v906 = vpack.c.b16 %v883, %v882
        %v907 = vpack.c.b16 %v885, %v884
        %v908 = vpack.c.b16 %v887, %v886
        %v909 = vpack.c.b16 %v889, %v888
        %v910 = vpack.c.b16 %v891, %v890
        %v911 = vpack.c.b16 %v893, %v892
        %v912 = vpack.c.b16 %v895, %v894
        %v913 = vpack.c.b16 %v897, %v896
        %930 = vmatprep.subr.bf16.mxu0 0
        %931 = vmatpush1.bf16.msra.mxu0 %v898
        %932 = vmatprep.subr.bf16.mxu0 0
        %933 = vmatpush1.bf16.msra.mxu0 %v899
        %934 = vmatprep.subr.bf16.mxu0 0
        %935 = vmatpush1.bf16.msra.mxu0 %v900
        %936 = vmatprep.subr.bf16.mxu0 0
        %937 = vmatpush1.bf16.msra.mxu0 %v901
        %938 = vmatprep.subr.bf16.mxu0 0
        %939 = vmatpush1.bf16.msra.mxu0 %v902
        %940 = vmatprep.subr.bf16.mxu0 0
        %941 = vmatpush1.bf16.msra.mxu0 %v903
        %942 = vmatprep.subr.bf16.mxu0 0
        %943 = vmatpush1.bf16.msra.mxu0 %v904
        %944 = vmatprep.subr.bf16.mxu0 0
        %945 = vmatpush1.bf16.msra.mxu0 %v905
        %946 = vmatprep.subr.bf16.mxu0 0
        %947 = vmatpush1.bf16.msra.mxu0 %v906
        %948 = vmatprep.subr.bf16.mxu0 0
        %949 = vmatpush1.bf16.msra.mxu0 %v907
        %950 = vmatprep.subr.bf16.mxu0 0
        %951 = vmatpush1.bf16.msra.mxu0 %v908
        %952 = vmatprep.subr.bf16.mxu0 0
        %953 = vmatpush1.bf16.msra.mxu0 %v909
        %954 = vmatprep.subr.bf16.mxu0 0
        %955 = vmatpush1.bf16.msra.mxu0 %v910
        %956 = vmatprep.subr.bf16.mxu0 0
        %957 = vmatpush1.bf16.msra.mxu0 %v911
        %958 = vmatprep.subr.bf16.mxu0 0
        %959 = vmatpush1.bf16.msra.mxu0 %v912
        %960 = vmatprep.subr.bf16.mxu0 0
        %961 = vmatpush1.bf16.msra.mxu0 %v913
        %962 = vmatprep.mubr.bf16.mxu0 %v771
        %963 = vmatmul.mubr.bf16.gmra.mrb[0].mxu0 %v770
        %v964 = vpop.f32.mrb[0].mxu0
        %v965 = vadd.f32 0.0, %v964
        %v966 = vpop.f32.mrb[0].mxu0
        %v967 = vpop.f32.mrb[0].mxu0
        %v968 = vadd.f32 0.0, %v967
        %v969 = vpop.f32.mrb[0].mxu0
        %970 = vmatprep.mubr.bf16.mxu0 %v773
        %971 = vmatmul.mubr.bf16.gmra.mrb[0].mxu0 %v772
        %v972 = vpop.f32.mrb[0].mxu0
        %v973 = vadd.f32 0.0, %v972
        %v974 = vpop.f32.mrb[0].mxu0
        %v975 = vpop.f32.mrb[0].mxu0
        %v976 = vadd.f32 0.0, %v975
        %v977 = vpop.f32.mrb[0].mxu0
        %978 = vmatprep.mubr.bf16.mxu0 %v775
        %979 = vmatmul.mubr.bf16.gmra.mrb[0].mxu0 %v774
        %v980 = vpop.f32.mrb[0].mxu0
        %v981 = vadd.f32 0.0, %v980
        %v982 = vpop.f32.mrb[0].mxu0
        %v983 = vpop.f32.mrb[0].mxu0
        %v984 = vadd.f32 0.0, %v983
        %v985 = vpop.f32.mrb[0].mxu0
        %986 = vmatprep.mubr.bf16.mxu0 %v777
        %987 = vmatmul.mubr.bf16.gmra.mrb[0].mxu0 %v776
        %v988 = vpop.f32.mrb[0].mxu0
        %v989 = vadd.f32 0.0, %v988
        %v990 = vpop.f32.mrb[0].mxu0
        %v991 = vpop.f32.mrb[0].mxu0
        %v992 = vadd.f32 0.0, %v991
        %v993 = vpop.f32.mrb[0].mxu0
        %994 = vmatprep.mubr.bf16.mxu0 %v779
        %995 = vmatmul.mubr.bf16.gmra.mrb[0].mxu0 %v778
        %v996 = vpop.f32.mrb[0].mxu0
        %v997 = vadd.f32 0.0, %v996
        %v998 = vpop.f32.mrb[0].mxu0
        %v999 = vpop.f32.mrb[0].mxu0
        %v1000 = vadd.f32 0.0, %v999
        %v1001 = vpop.f32.mrb[0].mxu0
        %1002 = vmatprep.mubr.bf16.mxu0 %v781
        %1003 = vmatmul.mubr.bf16.gmra.mrb[0].mxu0 %v780
        %v1004 = vpop.f32.mrb[0].mxu0
        %v1005 = vadd.f32 0.0, %v1004
        %v1006 = vpop.f32.mrb[0].mxu0
        %v1007 = vpop.f32.mrb[0].mxu0
        %v1008 = vadd.f32 0.0, %v1007
        %v1009 = vpop.f32.mrb[0].mxu0
        %1010 = vmatprep.mubr.bf16.mxu0 %v783
        %1011 = vmatmul.mubr.bf16.gmra.mrb[0].mxu0 %v782
        %v1012 = vpop.f32.mrb[0].mxu0
        %v1013 = vadd.f32 0.0, %v1012
        %v1014 = vpop.f32.mrb[0].mxu0
        %v1015 = vpop.f32.mrb[0].mxu0
        %v1016 = vadd.f32 0.0, %v1015
        %v1017 = vpop.f32.mrb[0].mxu0
        %1018 = vmatprep.mubr.bf16.mxu0 %v785
        %1019 = vmatmul.mubr.bf16.gmra.mrb[0].mxu0 %v784
        %v1020 = vpop.f32.mrb[0].mxu0
        %v1021 = vadd.f32 0.0, %v1020
        %v1022 = vpop.f32.mrb[0].mxu0
        %v1023 = vpop.f32.mrb[0].mxu0
        %v1024 = vadd.f32 0.0, %v1023
        %v1025 = vpop.f32.mrb[0].mxu0
        %1026 = vmatprep.mubr.bf16.mxu0 %v787
        %1027 = vmatmul.mubr.bf16.gmra.mrb[0].mxu0 %v786
        %v1028 = vpop.f32.mrb[0].mxu0
        %v1029 = vadd.f32 0.0, %v1028
        %v1030 = vpop.f32.mrb[0].mxu0
        %v1031 = vpop.f32.mrb[0].mxu0
        %v1032 = vadd.f32 0.0, %v1031
        %v1033 = vpop.f32.mrb[0].mxu0
        %1034 = vmatprep.mubr.bf16.mxu0 %v789
        %1035 = vmatmul.mubr.bf16.gmra.mrb[0].mxu0 %v788
        %v1036 = vpop.f32.mrb[0].mxu0
        %v1037 = vadd.f32 0.0, %v1036
        %v1038 = vpop.f32.mrb[0].mxu0
        %v1039 = vpop.f32.mrb[0].mxu0
        %v1040 = vadd.f32 0.0, %v1039
        %v1041 = vpop.f32.mrb[0].mxu0
        %1042 = vmatprep.mubr.bf16.mxu0 %v791
        %1043 = vmatmul.mubr.bf16.gmra.mrb[0].mxu0 %v790
        %v1044 = vpop.f32.mrb[0].mxu0
        %v1045 = vadd.f32 0.0, %v1044
        %v1046 = vpop.f32.mrb[0].mxu0
        %v1047 = vpop.f32.mrb[0].mxu0
        %v1048 = vadd.f32 0.0, %v1047
        %v1049 = vpop.f32.mrb[0].mxu0
        %1050 = vmatprep.mubr.bf16.mxu0 %v793
        %1051 = vmatmul.mubr.bf16.gmra.mrb[0].mxu0 %v792
        %v1052 = vpop.f32.mrb[0].mxu0
        %v1053 = vadd.f32 0.0, %v1052
        %v1054 = vpop.f32.mrb[0].mxu0
        %v1055 = vpop.f32.mrb[0].mxu0
        %v1056 = vadd.f32 0.0, %v1055
        %v1057 = vpop.f32.mrb[0].mxu0
        %1058 = vmatprep.mubr.bf16.mxu0 %v795
        %1059 = vmatmul.mubr.bf16.gmra.mrb[0].mxu0 %v794
        %v1060 = vpop.f32.mrb[0].mxu0
        %v1061 = vadd.f32 0.0, %v1060
        %v1062 = vpop.f32.mrb[0].mxu0
        %v1063 = vpop.f32.mrb[0].mxu0
        %v1064 = vadd.f32 0.0, %v1063
        %v1065 = vpop.f32.mrb[0].mxu0
        %1066 = vmatprep.mubr.bf16.mxu0 %v797
        %1067 = vmatmul.mubr.bf16.gmra.mrb[0].mxu0 %v796
        %v1068 = vpop.f32.mrb[0].mxu0
        %v1069 = vadd.f32 0.0, %v1068
        %v1070 = vpop.f32.mrb[0].mxu0
        %v1071 = vpop.f32.mrb[0].mxu0
        %v1072 = vadd.f32 0.0, %v1071
        %v1073 = vpop.f32.mrb[0].mxu0
        %1074 = vmatprep.mubr.bf16.mxu0 %v799
        %1075 = vmatmul.mubr.bf16.gmra.mrb[0].mxu0 %v798
        %v1076 = vpop.f32.mrb[0].mxu0
        %v1077 = vadd.f32 0.0, %v1076
        %v1078 = vpop.f32.mrb[0].mxu0
        %v1079 = vpop.f32.mrb[0].mxu0
        %v1080 = vadd.f32 0.0, %v1079
        %v1081 = vpop.f32.mrb[0].mxu0
        %1082 = vmatprep.mubr.bf16.mxu0 %v801
        %1083 = vmatmul.mubr.bf16.gmra.mrb[0].mxu0 %v800
        %v1084 = vpop.f32.mrb[0].mxu0
        %v1085 = vadd.f32 0.0, %v1084
        %v1086 = vpop.f32.mrb[0].mxu0
        %v1087 = vpop.f32.mrb[0].mxu0
        %v1088 = vadd.f32 0.0, %v1087
        %v1089 = vpop.f32.mrb[0].mxu0
        %1090 = vdwg.mxu0
        %v1091 = vadd.f32 %v578, %v965
        %v1092 = vadd.f32 %v579, %v968
        %v1093 = vadd.f32 %v580, %v973
        %v1094 = vadd.f32 %v581, %v976
        %v1095 = vadd.f32 %v582, %v981
        %v1096 = vadd.f32 %v583, %v984
        %v1097 = vadd.f32 %v584, %v989
        %v1098 = vadd.f32 %v585, %v992
        %v1099 = vadd.f32 %v586, %v997
        %v1100 = vadd.f32 %v587, %v1000
        %v1101 = vadd.f32 %v588, %v1005
        %v1102 = vadd.f32 %v589, %v1008
        %v1103 = vadd.f32 %v590, %v1013
        %v1104 = vadd.f32 %v591, %v1016
        %v1105 = vadd.f32 %v592, %v1021
        %v1106 = vadd.f32 %v593, %v1024
        %v1107 = vadd.f32 %v594, %v1029
        %v1108 = vadd.f32 %v595, %v1032
        %v1109 = vadd.f32 %v596, %v1037
        %v1110 = vadd.f32 %v597, %v1040
        %v1111 = vadd.f32 %v598, %v1045
        %v1112 = vadd.f32 %v599, %v1048
        %v1113 = vadd.f32 %v600, %v1053
        %v1114 = vadd.f32 %v601, %v1056
        %v1115 = vadd.f32 %v602, %v1061
        %v1116 = vadd.f32 %v603, %v1064
        %v1117 = vadd.f32 %v604, %v1069
        %v1118 = vadd.f32 %v605, %v1072
        %v1119 = vadd.f32 %v606, %v1077
        %v1120 = vadd.f32 %v607, %v1080
        %v1121 = vadd.f32 %v608, %v1085
        %v1122 = vadd.f32 %v609, %v1088
        %1123 = vst [vmem:[#allocation2] sm:$0xff] %v1091
        %1124 = vst [vmem:[#allocation2 + $0x8] sm:$0xff] %v1092
        %1125 = vst [vmem:[#allocation2 + $0x10] sm:$0xff] %v1093
        %1126 = vst [vmem:[#allocation2 + $0x18] sm:$0xff] %v1094
        %1127 = vst [vmem:[#allocation2 + $0x20] sm:$0xff] %v1095
        %1128 = vst [vmem:[#allocation2 + $0x28] sm:$0xff] %v1096
        %1129 = vst [vmem:[#allocation2 + $0x30] sm:$0xff] %v1097
        %1130 = vst [vmem:[#allocation2 + $0x38] sm:$0xff] %v1098
        %1131 = vst [vmem:[#allocation2 + $0x40] sm:$0xff] %v1099
        %1132 = vst [vmem:[#allocation2 + $0x48] sm:$0xff] %v1100
        %1133 = vst [vmem:[#allocation2 + $0x50] sm:$0xff] %v1101
        %1134 = vst [vmem:[#allocation2 + $0x58] sm:$0xff] %v1102
        %1135 = vst [vmem:[#allocation2 + $0x60] sm:$0xff] %v1103
        %1136 = vst [vmem:[#allocation2 + $0x68] sm:$0xff] %v1104
        %1137 = vst [vmem:[#allocation2 + $0x70] sm:$0xff] %v1105
        %1138 = vst [vmem:[#allocation2 + $0x78] sm:$0xff] %v1106
        %1139 = vst [vmem:[#allocation2 + $0x80] sm:$0xff] %v1107
        %1140 = vst [vmem:[#allocation2 + $0x88] sm:$0xff] %v1108
        %1141 = vst [vmem:[#allocation2 + $0x90] sm:$0xff] %v1109
        %1142 = vst [vmem:[#allocation2 + $0x98] sm:$0xff] %v1110
        %1143 = vst [vmem:[#allocation2 + $0xa0] sm:$0xff] %v1111
        %1144 = vst [vmem:[#allocation2 + $0xa8] sm:$0xff] %v1112
        %1145 = vst [vmem:[#allocation2 + $0xb0] sm:$0xff] %v1113
        %1146 = vst [vmem:[#allocation2 + $0xb8] sm:$0xff] %v1114
        %1147 = vst [vmem:[#allocation2 + $0xc0] sm:$0xff] %v1115
        %1148 = vst [vmem:[#allocation2 + $0xc8] sm:$0xff] %v1116
        %1149 = vst [vmem:[#allocation2 + $0xd0] sm:$0xff] %v1117
        %1150 = vst [vmem:[#allocation2 + $0xd8] sm:$0xff] %v1118
        %1151 = vst [vmem:[#allocation2 + $0xe0] sm:$0xff] %v1119
        %1152 = vst [vmem:[#allocation2 + $0xe8] sm:$0xff] %v1120
        %1153 = vst [vmem:[#allocation2 + $0xf0] sm:$0xff] %v1121
        %1154 = vst [vmem:[#allocation2 + $0xf8] sm:$0xff] %v1122
        %p1155 = scmp.eq.s32.totalorder %s24, 1
        // Predicated region
        $region99: #{gnn_forward.3} parent=85 // pred_check
          %p1156 = pneg %p1155
        $region100: #{gnn_forward.3} parent=85 // pred_check_branch
          %1158 = sbr.rel (%p1156) target = $region102
        $region101: #{gnn_forward.3} parent=85 // pred_region
          %v1159 = vld [vmem:[%s527] sm:$0xf]
          %v1160 = vld [vmem:[%s527 + $0x4] sm:$0xf]
          %v1161 = vld [vmem:[%s527 + $0x8] sm:$0xf]
          %v1162 = vld [vmem:[%s527 + $0xc] sm:$0xf]
          %v1163 = vld [vmem:[%s527 + $0x10] sm:$0xf]
          %v1164 = vld [vmem:[%s527 + $0x14] sm:$0xf]
          %v1165 = vld [vmem:[%s527 + $0x18] sm:$0xf]
          %v1166 = vld [vmem:[%s527 + $0x1c] sm:$0xf]
          %v1167 = vld [vmem:[%s527 + $0x20] sm:$0xf]
          %v1168 = vld [vmem:[%s527 + $0x24] sm:$0xf]
          %v1169 = vld [vmem:[%s527 + $0x28] sm:$0xf]
          %v1170 = vld [vmem:[%s527 + $0x2c] sm:$0xf]
          %v1171 = vld [vmem:[%s527 + $0x30] sm:$0xf]
          %v1172 = vld [vmem:[%s527 + $0x34] sm:$0xf]
          %v1173 = vld [vmem:[%s527 + $0x38] sm:$0xf]
          %v1174 = vld [vmem:[%s527 + $0x3c] sm:$0xf]
          %v1175 = vld [vmem:[%s527 + $0x40] sm:$0xf]
          %v1176 = vld [vmem:[%s527 + $0x44] sm:$0xf]
          %v1177 = vld [vmem:[%s527 + $0x48] sm:$0xf]
          %v1178 = vld [vmem:[%s527 + $0x4c] sm:$0xf]
          %v1179 = vld [vmem:[%s527 + $0x50] sm:$0xf]
          %v1180 = vld [vmem:[%s527 + $0x54] sm:$0xf]
          %v1181 = vld [vmem:[%s527 + $0x58] sm:$0xf]
          %v1182 = vld [vmem:[%s527 + $0x5c] sm:$0xf]
          %v1183 = vld [vmem:[%s527 + $0x60] sm:$0xf]
          %v1184 = vld [vmem:[%s527 + $0x64] sm:$0xf]
          %v1185 = vld [vmem:[%s527 + $0x68] sm:$0xf]
          %v1186 = vld [vmem:[%s527 + $0x6c] sm:$0xf]
          %v1187 = vld [vmem:[%s527 + $0x70] sm:$0xf]
          %v1188 = vld [vmem:[%s527 + $0x74] sm:$0xf]
          %v1189 = vld [vmem:[%s527 + $0x78] sm:$0xf]
          %v1190 = vld [vmem:[%s527 + $0x7c] sm:$0xf]
          %v1191 = vunpack.c.l.bf16 %v1159
          %v1192 = vunpack.c.l.bf16 %v1160
          %v1193 = vunpack.c.l.bf16 %v1161
          %v1194 = vunpack.c.l.bf16 %v1162
          %v1195 = vunpack.c.l.bf16 %v1163
          %v1196 = vunpack.c.l.bf16 %v1164
          %v1197 = vunpack.c.l.bf16 %v1165
          %v1198 = vunpack.c.l.bf16 %v1166
          %v1199 = vunpack.c.l.bf16 %v1167
          %v1200 = vunpack.c.l.bf16 %v1168
          %v1201 = vunpack.c.l.bf16 %v1169
          %v1202 = vunpack.c.l.bf16 %v1170
          %v1203 = vunpack.c.l.bf16 %v1171
          %v1204 = vunpack.c.l.bf16 %v1172
          %v1205 = vunpack.c.l.bf16 %v1173
          %v1206 = vunpack.c.l.bf16 %v1174
          %v1207 = vunpack.c.l.bf16 %v1175
          %v1208 = vunpack.c.l.bf16 %v1176
          %v1209 = vunpack.c.l.bf16 %v1177
          %v1210 = vunpack.c.l.bf16 %v1178
          %v1211 = vunpack.c.l.bf16 %v1179
          %v1212 = vunpack.c.l.bf16 %v1180
          %v1213 = vunpack.c.l.bf16 %v1181
          %v1214 = vunpack.c.l.bf16 %v1182
          %v1215 = vunpack.c.l.bf16 %v1183
          %v1216 = vunpack.c.l.bf16 %v1184
          %v1217 = vunpack.c.l.bf16 %v1185
          %v1218 = vunpack.c.l.bf16 %v1186
          %v1219 = vunpack.c.l.bf16 %v1187
          %v1220 = vunpack.c.l.bf16 %v1188
          %v1221 = vunpack.c.l.bf16 %v1189
          %v1222 = vunpack.c.l.bf16 %v1190
          %v1223 = vld [vmem:[#allocation2] sm:$0xff]
          %v1224 = vld [vmem:[#allocation2 + $0x8] sm:$0xff]
          %v1225 = vld [vmem:[#allocation2 + $0x10] sm:$0xff]
          %v1226 = vld [vmem:[#allocation2 + $0x18] sm:$0xff]
          %v1227 = vld [vmem:[#allocation2 + $0x20] sm:$0xff]
          %v1228 = vld [vmem:[#allocation2 + $0x28] sm:$0xff]
          %v1229 = vld [vmem:[#allocation2 + $0x30] sm:$0xff]
          %v1230 = vld [vmem:[#allocation2 + $0x38] sm:$0xff]
          %v1231 = vld [vmem:[#allocation2 + $0x40] sm:$0xff]
          %v1232 = vld [vmem:[#allocation2 + $0x48] sm:$0xff]
          %v1233 = vld [vmem:[#allocation2 + $0x50] sm:$0xff]
          %v1234 = vld [vmem:[#allocation2 + $0x58] sm:$0xff]
          %v1235 = vld [vmem:[#allocation2 + $0x60] sm:$0xff]
          %v1236 = vld [vmem:[#allocation2 + $0x68] sm:$0xff]
          %v1237 = vld [vmem:[#allocation2 + $0x70] sm:$0xff]
          %v1238 = vld [vmem:[#allocation2 + $0x78] sm:$0xff]
          %v1239 = vld [vmem:[#allocation2 + $0x80] sm:$0xff]
          %v1240 = vld [vmem:[#allocation2 + $0x88] sm:$0xff]
          %v1241 = vld [vmem:[#allocation2 + $0x90] sm:$0xff]
          %v1242 = vld [vmem:[#allocation2 + $0x98] sm:$0xff]
          %v1243 = vld [vmem:[#allocation2 + $0xa0] sm:$0xff]
          %v1244 = vld [vmem:[#allocation2 + $0xa8] sm:$0xff]
          %v1245 = vld [vmem:[#allocation2 + $0xb0] sm:$0xff]
          %v1246 = vld [vmem:[#allocation2 + $0xb8] sm:$0xff]
          %v1247 = vld [vmem:[#allocation2 + $0xc0] sm:$0xff]
          %v1248 = vld [vmem:[#allocation2 + $0xc8] sm:$0xff]
          %v1249 = vld [vmem:[#allocation2 + $0xd0] sm:$0xff]
          %v1250 = vld [vmem:[#allocation2 + $0xd8] sm:$0xff]
          %v1251 = vld [vmem:[#allocation2 + $0xe0] sm:$0xff]
          %v1252 = vld [vmem:[#allocation2 + $0xe8] sm:$0xff]
          %v1253 = vld [vmem:[#allocation2 + $0xf0] sm:$0xff]
          %v1254 = vld [vmem:[#allocation2 + $0xf8] sm:$0xff]
          %v1255 = vadd.f32 %v1191, %v1223
          %v1256 = vadd.f32 %v1192, %v1224
          %v1257 = vadd.f32 %v1193, %v1225
          %v1258 = vadd.f32 %v1194, %v1226
          %v1259 = vadd.f32 %v1195, %v1227
          %v1260 = vadd.f32 %v1196, %v1228
          %v1261 = vadd.f32 %v1197, %v1229
          %v1262 = vadd.f32 %v1198, %v1230
          %v1263 = vadd.f32 %v1199, %v1231
          %v1264 = vadd.f32 %v1200, %v1232
          %v1265 = vadd.f32 %v1201, %v1233
          %v1266 = vadd.f32 %v1202, %v1234
          %v1267 = vadd.f32 %v1203, %v1235
          %v1268 = vadd.f32 %v1204, %v1236
          %v1269 = vadd.f32 %v1205, %v1237
          %v1270 = vadd.f32 %v1206, %v1238
          %v1271 = vadd.f32 %v1207, %v1239
          %v1272 = vadd.f32 %v1208, %v1240
          %v1273 = vadd.f32 %v1209, %v1241
          %v1274 = vadd.f32 %v1210, %v1242
          %v1275 = vadd.f32 %v1211, %v1243
          %v1276 = vadd.f32 %v1212, %v1244
          %v1277 = vadd.f32 %v1213, %v1245
          %v1278 = vadd.f32 %v1214, %v1246
          %v1279 = vadd.f32 %v1215, %v1247
          %v1280 = vadd.f32 %v1216, %v1248
          %v1281 = vadd.f32 %v1217, %v1249
          %v1282 = vadd.f32 %v1218, %v1250
          %v1283 = vadd.f32 %v1219, %v1251
          %v1284 = vadd.f32 %v1220, %v1252
          %v1285 = vadd.f32 %v1221, %v1253
          %v1286 = vadd.f32 %v1222, %v1254
          %v1287 = vpack.c.bf16 %v1256, %v1255
          %v1288 = vpack.c.bf16 %v1258, %v1257
          %v1289 = vpack.c.bf16 %v1260, %v1259
          %v1290 = vpack.c.bf16 %v1262, %v1261
          %v1291 = vpack.c.bf16 %v1264, %v1263
          %v1292 = vpack.c.bf16 %v1266, %v1265
          %v1293 = vpack.c.bf16 %v1268, %v1267
          %v1294 = vpack.c.bf16 %v1270, %v1269
          %v1295 = vpack.c.bf16 %v1272, %v1271
          %v1296 = vpack.c.bf16 %v1274, %v1273
          %v1297 = vpack.c.bf16 %v1276, %v1275
          %v1298 = vpack.c.bf16 %v1278, %v1277
          %v1299 = vpack.c.bf16 %v1280, %v1279
          %v1300 = vpack.c.bf16 %v1282, %v1281
          %v1301 = vpack.c.bf16 %v1284, %v1283
          %v1302 = vpack.c.bf16 %v1286, %v1285
          %v1303 = vld [vmem:[%s3] sm:$0xf]
          %v1304 = vld [vmem:[%s3 + $0x4] sm:$0xf]
          %v1305 = vld [vmem:[%s3 + $0x8] sm:$0xf]
          %v1306 = vld [vmem:[%s3 + $0xc] sm:$0xf]
          %v1307 = vld [vmem:[%s3 + $0x10] sm:$0xf]
          %v1308 = vld [vmem:[%s3 + $0x14] sm:$0xf]
          %v1309 = vld [vmem:[%s3 + $0x18] sm:$0xf]
          %v1310 = vld [vmem:[%s3 + $0x1c] sm:$0xf]
          %v1311 = vld [vmem:[%s3 + $0x20] sm:$0xf]
          %v1312 = vld [vmem:[%s3 + $0x24] sm:$0xf]
          %v1313 = vld [vmem:[%s3 + $0x28] sm:$0xf]
          %v1314 = vld [vmem:[%s3 + $0x2c] sm:$0xf]
          %v1315 = vld [vmem:[%s3 + $0x30] sm:$0xf]
          %v1316 = vld [vmem:[%s3 + $0x34] sm:$0xf]
          %v1317 = vld [vmem:[%s3 + $0x38] sm:$0xf]
          %v1318 = vld [vmem:[%s3 + $0x3c] sm:$0xf]
          %v1319 = vld [vmem:[%s4] sm:$0x1]
          %v1321 = vlaneseq
          %v1322 = vshrl.u32 %v1321, 7
          %v1323 = vsub.s32 0, %v1322
          %v1324 = vrot.slane %v1319, %v1323
          %v1342 = vunpack.c.l.b16 %v1303
          %v1343 = vunpack.c.l.b16 %v1304
          %v1344 = vunpack.c.l.b16 %v1305
          %v1345 = vunpack.c.l.b16 %v1306
          %v1346 = vunpack.c.l.b16 %v1307
          %v1347 = vunpack.c.l.b16 %v1308
          %v1348 = vunpack.c.l.b16 %v1309
          %v1349 = vunpack.c.l.b16 %v1310
          %v1350 = vunpack.c.l.b16 %v1311
          %v1351 = vunpack.c.l.b16 %v1312
          %v1352 = vunpack.c.l.b16 %v1313
          %v1353 = vunpack.c.l.b16 %v1314
          %v1354 = vunpack.c.l.b16 %v1315
          %v1355 = vunpack.c.l.b16 %v1316
          %v1356 = vunpack.c.l.b16 %v1317
          %v1357 = vunpack.c.l.b16 %v1318
          %v1358 = vpack.c.b16 %v1343, %v1342
          %v1359 = vpack.c.b16 %v1345, %v1344
          %v1360 = vpack.c.b16 %v1347, %v1346
          %v1361 = vpack.c.b16 %v1349, %v1348
          %v1362 = vpack.c.b16 %v1351, %v1350
          %v1363 = vpack.c.b16 %v1353, %v1352
          %v1364 = vpack.c.b16 %v1355, %v1354
          %v1365 = vpack.c.b16 %v1357, %v1356
          %1374 = vmatprep.subr.bf16.mxu0 0
          %1375 = vmatpush1.bf16.msra.mxu0 %v1358
          %1376 = vmatprep.subr.bf16.mxu0 0
          %1377 = vmatpush1.bf16.msra.mxu0 %v1359
          %1378 = vmatprep.subr.bf16.mxu0 0
          %1379 = vmatpush1.bf16.msra.mxu0 %v1360
          %1380 = vmatprep.subr.bf16.mxu0 0
          %1381 = vmatpush1.bf16.msra.mxu0 %v1361
          %1382 = vmatprep.subr.bf16.mxu0 0
          %1383 = vmatpush1.bf16.msra.mxu0 %v1362
          %1384 = vmatprep.subr.bf16.mxu0 0
          %1385 = vmatpush1.bf16.msra.mxu0 %v1363
          %1386 = vmatprep.subr.bf16.mxu0 0
          %1387 = vmatpush1.bf16.msra.mxu0 %v1364
          %1388 = vmatprep.subr.bf16.mxu0 0
          %1389 = vmatpush1.bf16.msra.mxu0 %v1365
          %1390 = vmatprep.subr.bf16.mxu0 0
          %1391 = vmatpush1.bf16.msra.mxu0 0
          %1392 = vmatprep.subr.bf16.mxu0 0
          %1393 = vmatpush1.bf16.msra.mxu0 0
          %1394 = vmatprep.subr.bf16.mxu0 0
          %1395 = vmatpush1.bf16.msra.mxu0 0
          %1396 = vmatprep.subr.bf16.mxu0 0
          %1397 = vmatpush1.bf16.msra.mxu0 0
          %1398 = vmatprep.subr.bf16.mxu0 0
          %1399 = vmatpush1.bf16.msra.mxu0 0
          %1400 = vmatprep.subr.bf16.mxu0 0
          %1401 = vmatpush1.bf16.msra.mxu0 0
          %1402 = vmatprep.subr.bf16.mxu0 0
          %1403 = vmatpush1.bf16.msra.mxu0 0
          %1404 = vmatprep.subr.bf16.mxu0 0
          %1405 = vmatpush1.bf16.msra.mxu0 0
          %1406 = vmatprep.mubr.bf16.mxu0 0
          %1407 = vmatmul.mubr.bf16.gmra.mrb[0].mxu0 %v1287
          %v1408 = vpop.f32.mrb[0].mxu0
          %v1409 = vadd.f32 %v1324, %v1408
          %v1410 = vpop.f32.mrb[0].mxu0
          %v1411 = vpop.f32.mrb[0].mxu0
          %v1412 = vadd.f32 %v1324, %v1411
          %v1413 = vpop.f32.mrb[0].mxu0
          %1414 = vmatprep.mubr.bf16.mxu0 0
          %1415 = vmatmul.mubr.bf16.gmra.mrb[0].mxu0 %v1288
          %v1416 = vpop.f32.mrb[0].mxu0
          %v1417 = vadd.f32 %v1324, %v1416
          %v1418 = vpop.f32.mrb[0].mxu0
          %v1419 = vpop.f32.mrb[0].mxu0
          %v1420 = vadd.f32 %v1324, %v1419
          %v1421 = vpop.f32.mrb[0].mxu0
          %1422 = vmatprep.mubr.bf16.mxu0 0
          %1423 = vmatmul.mubr.bf16.gmra.mrb[0].mxu0 %v1289
          %v1424 = vpop.f32.mrb[0].mxu0
          %v1425 = vadd.f32 %v1324, %v1424
          %v1426 = vpop.f32.mrb[0].mxu0
          %v1427 = vpop.f32.mrb[0].mxu0
          %v1428 = vadd.f32 %v1324, %v1427
          %v1429 = vpop.f32.mrb[0].mxu0
          %1430 = vmatprep.mubr.bf16.mxu0 0
          %1431 = vmatmul.mubr.bf16.gmra.mrb[0].mxu0 %v1290
          %v1432 = vpop.f32.mrb[0].mxu0
          %v1433 = vadd.f32 %v1324, %v1432
          %v1434 = vpop.f32.mrb[0].mxu0
          %v1435 = vpop.f32.mrb[0].mxu0
          %v1436 = vadd.f32 %v1324, %v1435
          %v1437 = vpop.f32.mrb[0].mxu0
          %1438 = vmatprep.mubr.bf16.mxu0 0
          %1439 = vmatmul.mubr.bf16.gmra.mrb[0].mxu0 %v1291
          %v1440 = vpop.f32.mrb[0].mxu0
          %v1441 = vadd.f32 %v1324, %v1440
          %v1442 = vpop.f32.mrb[0].mxu0
          %v1443 = vpop.f32.mrb[0].mxu0
          %v1444 = vadd.f32 %v1324, %v1443
          %v1445 = vpop.f32.mrb[0].mxu0
          %1446 = vmatprep.mubr.bf16.mxu0 0
          %1447 = vmatmul.mubr.bf16.gmra.mrb[0].mxu0 %v1292
          %v1448 = vpop.f32.mrb[0].mxu0
          %v1449 = vadd.f32 %v1324, %v1448
          %v1450 = vpop.f32.mrb[0].mxu0
          %v1451 = vpop.f32.mrb[0].mxu0
          %v1452 = vadd.f32 %v1324, %v1451
          %v1453 = vpop.f32.mrb[0].mxu0
          %1454 = vmatprep.mubr.bf16.mxu0 0
          %1455 = vmatmul.mubr.bf16.gmra.mrb[0].mxu0 %v1293
          %v1456 = vpop.f32.mrb[0].mxu0
          %v1457 = vadd.f32 %v1324, %v1456
          %v1458 = vpop.f32.mrb[0].mxu0
          %v1459 = vpop.f32.mrb[0].mxu0
          %v1460 = vadd.f32 %v1324, %v1459
          %v1461 = vpop.f32.mrb[0].mxu0
          %1462 = vmatprep.mubr.bf16.mxu0 0
          %1463 = vmatmul.mubr.bf16.gmra.mrb[0].mxu0 %v1294
          %v1464 = vpop.f32.mrb[0].mxu0
          %v1465 = vadd.f32 %v1324, %v1464
          %v1466 = vpop.f32.mrb[0].mxu0
          %v1467 = vpop.f32.mrb[0].mxu0
          %v1468 = vadd.f32 %v1324, %v1467
          %v1469 = vpop.f32.mrb[0].mxu0
          %1470 = vmatprep.mubr.bf16.mxu0 0
          %1471 = vmatmul.mubr.bf16.gmra.mrb[0].mxu0 %v1295
          %v1472 = vpop.f32.mrb[0].mxu0
          %v1473 = vadd.f32 %v1324, %v1472
          %v1474 = vpop.f32.mrb[0].mxu0
          %v1475 = vpop.f32.mrb[0].mxu0
          %v1476 = vadd.f32 %v1324, %v1475
          %v1477 = vpop.f32.mrb[0].mxu0
          %1478 = vmatprep.mubr.bf16.mxu0 0
          %1479 = vmatmul.mubr.bf16.gmra.mrb[0].mxu0 %v1296
          %v1480 = vpop.f32.mrb[0].mxu0
          %v1481 = vadd.f32 %v1324, %v1480
          %v1482 = vpop.f32.mrb[0].mxu0
          %v1483 = vpop.f32.mrb[0].mxu0
          %v1484 = vadd.f32 %v1324, %v1483
          %v1485 = vpop.f32.mrb[0].mxu0
          %1486 = vmatprep.mubr.bf16.mxu0 0
          %1487 = vmatmul.mubr.bf16.gmra.mrb[0].mxu0 %v1297
          %v1488 = vpop.f32.mrb[0].mxu0
          %v1489 = vadd.f32 %v1324, %v1488
          %v1490 = vpop.f32.mrb[0].mxu0
          %v1491 = vpop.f32.mrb[0].mxu0
          %v1492 = vadd.f32 %v1324, %v1491
          %v1493 = vpop.f32.mrb[0].mxu0
          %1494 = vmatprep.mubr.bf16.mxu0 0
          %1495 = vmatmul.mubr.bf16.gmra.mrb[0].mxu0 %v1298
          %v1496 = vpop.f32.mrb[0].mxu0
          %v1497 = vadd.f32 %v1324, %v1496
          %v1498 = vpop.f32.mrb[0].mxu0
          %v1499 = vpop.f32.mrb[0].mxu0
          %v1500 = vadd.f32 %v1324, %v1499
          %v1501 = vpop.f32.mrb[0].mxu0
          %1502 = vmatprep.mubr.bf16.mxu0 0
          %1503 = vmatmul.mubr.bf16.gmra.mrb[0].mxu0 %v1299
          %v1504 = vpop.f32.mrb[0].mxu0
          %v1505 = vadd.f32 %v1324, %v1504
          %v1506 = vpop.f32.mrb[0].mxu0
          %v1507 = vpop.f32.mrb[0].mxu0
          %v1508 = vadd.f32 %v1324, %v1507
          %v1509 = vpop.f32.mrb[0].mxu0
          %1510 = vmatprep.mubr.bf16.mxu0 0
          %1511 = vmatmul.mubr.bf16.gmra.mrb[0].mxu0 %v1300
          %v1512 = vpop.f32.mrb[0].mxu0
          %v1513 = vadd.f32 %v1324, %v1512
          %v1514 = vpop.f32.mrb[0].mxu0
          %v1515 = vpop.f32.mrb[0].mxu0
          %v1516 = vadd.f32 %v1324, %v1515
          %v1517 = vpop.f32.mrb[0].mxu0
          %1518 = vmatprep.mubr.bf16.mxu0 0
          %1519 = vmatmul.mubr.bf16.gmra.mrb[0].mxu0 %v1301
          %v1520 = vpop.f32.mrb[0].mxu0
          %v1521 = vadd.f32 %v1324, %v1520
          %v1522 = vpop.f32.mrb[0].mxu0
          %v1523 = vpop.f32.mrb[0].mxu0
          %v1524 = vadd.f32 %v1324, %v1523
          %v1525 = vpop.f32.mrb[0].mxu0
          %1526 = vmatprep.mubr.bf16.mxu0 0
          %1527 = vmatmul.mubr.bf16.gmra.mrb[0].mxu0 %v1302
          %v1528 = vpop.f32.mrb[0].mxu0
          %v1529 = vadd.f32 %v1324, %v1528
          %v1530 = vpop.f32.mrb[0].mxu0
          %v1531 = vpop.f32.mrb[0].mxu0
          %v1532 = vadd.f32 %v1324, %v1531
          %v1533 = vpop.f32.mrb[0].mxu0
          %1534 = vdwg.mxu0
          %vm1535 = vcmp.gt.f32.partialorder %v1409, 0.0
          %vm1536 = vcmp.gt.f32.partialorder %v1412, 0.0
          %vm1537 = vcmp.gt.f32.partialorder %v1417, 0.0
          %vm1538 = vcmp.gt.f32.partialorder %v1420, 0.0
          %vm1539 = vcmp.gt.f32.partialorder %v1425, 0.0
          %vm1540 = vcmp.gt.f32.partialorder %v1428, 0.0
          %vm1541 = vcmp.gt.f32.partialorder %v1433, 0.0
          %vm1542 = vcmp.gt.f32.partialorder %v1436, 0.0
          %vm1543 = vcmp.gt.f32.partialorder %v1441, 0.0
          %vm1544 = vcmp.gt.f32.partialorder %v1444, 0.0
          %vm1545 = vcmp.gt.f32.partialorder %v1449, 0.0
          %vm1546 = vcmp.gt.f32.partialorder %v1452, 0.0
          %vm1547 = vcmp.gt.f32.partialorder %v1457, 0.0
          %vm1548 = vcmp.gt.f32.partialorder %v1460, 0.0
          %vm1549 = vcmp.gt.f32.partialorder %v1465, 0.0
          %vm1550 = vcmp.gt.f32.partialorder %v1468, 0.0
          %vm1551 = vcmp.gt.f32.partialorder %v1473, 0.0
          %vm1552 = vcmp.gt.f32.partialorder %v1476, 0.0
          %vm1553 = vcmp.gt.f32.partialorder %v1481, 0.0
          %vm1554 = vcmp.gt.f32.partialorder %v1484, 0.0
          %vm1555 = vcmp.gt.f32.partialorder %v1489, 0.0
          %vm1556 = vcmp.gt.f32.partialorder %v1492, 0.0
          %vm1557 = vcmp.gt.f32.partialorder %v1497, 0.0
          %vm1558 = vcmp.gt.f32.partialorder %v1500, 0.0
          %vm1559 = vcmp.gt.f32.partialorder %v1505, 0.0
          %vm1560 = vcmp.gt.f32.partialorder %v1508, 0.0
          %vm1561 = vcmp.gt.f32.partialorder %v1513, 0.0
          %vm1562 = vcmp.gt.f32.partialorder %v1516, 0.0
          %vm1563 = vcmp.gt.f32.partialorder %v1521, 0.0
          %vm1564 = vcmp.gt.f32.partialorder %v1524, 0.0
          %vm1565 = vcmp.gt.f32.partialorder %v1529, 0.0
          %vm1566 = vcmp.gt.f32.partialorder %v1532, 0.0
          %v1567 = vmul.f32 %v1409, 0.01
          %v1568 = vmul.f32 %v1412, 0.01
          %v1569 = vmul.f32 %v1417, 0.01
          %v1570 = vmul.f32 %v1420, 0.01
          %v1571 = vmul.f32 %v1425, 0.01
          %v1572 = vmul.f32 %v1428, 0.01
          %v1573 = vmul.f32 %v1433, 0.01
          %v1574 = vmul.f32 %v1436, 0.01
          %v1575 = vmul.f32 %v1441, 0.01
          %v1576 = vmul.f32 %v1444, 0.01
          %v1577 = vmul.f32 %v1449, 0.01
          %v1578 = vmul.f32 %v1452, 0.01
          %v1579 = vmul.f32 %v1457, 0.01
          %v1580 = vmul.f32 %v1460, 0.01
          %v1581 = vmul.f32 %v1465, 0.01
          %v1582 = vmul.f32 %v1468, 0.01
          %v1583 = vmul.f32 %v1473, 0.01
          %v1584 = vmul.f32 %v1476, 0.01
          %v1585 = vmul.f32 %v1481, 0.01
          %v1586 = vmul.f32 %v1484, 0.01
          %v1587 = vmul.f32 %v1489, 0.01
          %v1588 = vmul.f32 %v1492, 0.01
          %v1589 = vmul.f32 %v1497, 0.01
          %v1590 = vmul.f32 %v1500, 0.01
          %v1591 = vmul.f32 %v1505, 0.01
          %v1592 = vmul.f32 %v1508, 0.01
          %v1593 = vmul.f32 %v1513, 0.01
          %v1594 = vmul.f32 %v1516, 0.01
          %v1595 = vmul.f32 %v1521, 0.01
          %v1596 = vmul.f32 %v1524, 0.01
          %v1597 = vmul.f32 %v1529, 0.01
          %v1598 = vmul.f32 %v1532, 0.01
          %v1599 = vsel %vm1535, %v1409, %v1567
          %v1600 = vsel %vm1536, %v1412, %v1568
          %v1601 = vsel %vm1537, %v1417, %v1569
          %v1602 = vsel %vm1538, %v1420, %v1570
          %v1603 = vsel %vm1539, %v1425, %v1571
          %v1604 = vsel %vm1540, %v1428, %v1572
          %v1605 = vsel %vm1541, %v1433, %v1573
          %v1606 = vsel %vm1542, %v1436, %v1574
          %v1607 = vsel %vm1543, %v1441, %v1575
          %v1608 = vsel %vm1544, %v1444, %v1576
          %v1609 = vsel %vm1545, %v1449, %v1577
          %v1610 = vsel %vm1546, %v1452, %v1578
          %v1611 = vsel %vm1547, %v1457, %v1579
          %v1612 = vsel %vm1548, %v1460, %v1580
          %v1613 = vsel %vm1549, %v1465, %v1581
          %v1614 = vsel %vm1550, %v1468, %v1582
          %v1615 = vsel %vm1551, %v1473, %v1583
          %v1616 = vsel %vm1552, %v1476, %v1584
          %v1617 = vsel %vm1553, %v1481, %v1585
          %v1618 = vsel %vm1554, %v1484, %v1586
          %v1619 = vsel %vm1555, %v1489, %v1587
          %v1620 = vsel %vm1556, %v1492, %v1588
          %v1621 = vsel %vm1557, %v1497, %v1589
          %v1622 = vsel %vm1558, %v1500, %v1590
          %v1623 = vsel %vm1559, %v1505, %v1591
          %v1624 = vsel %vm1560, %v1508, %v1592
          %v1625 = vsel %vm1561, %v1513, %v1593
          %v1626 = vsel %vm1562, %v1516, %v1594
          %v1627 = vsel %vm1563, %v1521, %v1595
          %v1628 = vsel %vm1564, %v1524, %v1596
          %v1629 = vsel %vm1565, %v1529, %v1597
          %v1630 = vsel %vm1566, %v1532, %v1598
          %v1631 = vld [vmem:[#allocation3] sm:$0xff]
          %v1632 = vld [vmem:[%s533] sm:$0xff]
          %v1633 = vunpack.c.l.bf16 %v1632
          %v1634 = vunpack.c.h.bf16 %v1632
          %1635 = vmatprep.subr.mxu0 0.0
          %1636 = vmatpush1.msra.mxu0 %v1599
          %1637 = vmatprep.subr.mxu0 0.0
          %1638 = vmatpush1.msra.mxu0 %v1600
          %1639 = vmatprep.subr.mxu0 0.0
          %1640 = vmatpush1.msra.mxu0 %v1601
          %1641 = vmatprep.subr.mxu0 0.0
          %1642 = vmatpush1.msra.mxu0 %v1602
          %1643 = vmatprep.subr.mxu0 0.0
          %1644 = vmatpush1.msra.mxu0 %v1603
          %1645 = vmatprep.subr.mxu0 0.0
          %1646 = vmatpush1.msra.mxu0 %v1604
          %1647 = vmatprep.subr.mxu0 0.0
          %1648 = vmatpush1.msra.mxu0 %v1605
          %1649 = vmatprep.subr.mxu0 0.0
          %1650 = vmatpush1.msra.mxu0 %v1606
          %1651 = vmatprep.subr.mxu0 0.0
          %1652 = vmatpush1.msra.mxu0 %v1607
          %1653 = vmatprep.subr.mxu0 0.0
          %1654 = vmatpush1.msra.mxu0 %v1608
          %1655 = vmatprep.subr.mxu0 0.0
          %1656 = vmatpush1.msra.mxu0 %v1609
          %1657 = vmatprep.subr.mxu0 0.0
          %1658 = vmatpush1.msra.mxu0 %v1610
          %1659 = vmatprep.subr.mxu0 0.0
          %1660 = vmatpush1.msra.mxu0 %v1611
          %1661 = vmatprep.subr.mxu0 0.0
          %1662 = vmatpush1.msra.mxu0 %v1612
          %1663 = vmatprep.subr.mxu0 0.0
          %1664 = vmatpush1.msra.mxu0 %v1613
          %1665 = vmatprep.subr.mxu0 0.0
          %1666 = vmatpush1.msra.mxu0 %v1614
          %1667 = vmatprep.subr.mxu0 0.0
          %1668 = vmatpush1.msra.mxu0 %v1615
          %1669 = vmatprep.subr.mxu0 0.0
          %1670 = vmatpush1.msra.mxu0 %v1616
          %1671 = vmatprep.subr.mxu0 0.0
          %1672 = vmatpush1.msra.mxu0 %v1617
          %1673 = vmatprep.subr.mxu0 0.0
          %1674 = vmatpush1.msra.mxu0 %v1618
          %1675 = vmatprep.subr.mxu0 0.0
          %1676 = vmatpush1.msra.mxu0 %v1619
          %1677 = vmatprep.subr.mxu0 0.0
          %1678 = vmatpush1.msra.mxu0 %v1620
          %1679 = vmatprep.subr.mxu0 0.0
          %1680 = vmatpush1.msra.mxu0 %v1621
          %1681 = vmatprep.subr.mxu0 0.0
          %1682 = vmatpush1.msra.mxu0 %v1622
          %1683 = vmatprep.subr.mxu0 0.0
          %1684 = vmatpush1.msra.mxu0 %v1623
          %1685 = vmatprep.subr.mxu0 0.0
          %1686 = vmatpush1.msra.mxu0 %v1624
          %1687 = vmatprep.subr.mxu0 0.0
          %1688 = vmatpush1.msra.mxu0 %v1625
          %1689 = vmatprep.subr.mxu0 0.0
          %1690 = vmatpush1.msra.mxu0 %v1626
          %1691 = vmatprep.subr.mxu0 0.0
          %1692 = vmatpush1.msra.mxu0 %v1627
          %1693 = vmatprep.subr.mxu0 0.0
          %1694 = vmatpush1.msra.mxu0 %v1628
          %1695 = vmatprep.subr.mxu0 0.0
          %1696 = vmatpush1.msra.mxu0 %v1629
          %1697 = vmatprep.subr.mxu0 0.0
          %1698 = vmatpush1.msra.mxu0 %v1630
          %1699 = vmatprep.mubr.f32.mxu0 %v1634
          %1700 = vmatmul.mubr.f32.gmra.mrb[0].mxu0 %v1633
          %v1701 = vpop.f32.mrb[0].mxu0
          %v1702 = vadd.f32 0.0, %v1701
          %v1703 = vpop.f32.mrb[0].mxu0
          %1704 = vdwg.mxu0
          %v1705 = vadd.f32 %v1631, %v1702
          %1706 = vst [vmem:[#allocation3] sm:$0xff] %v1705
        $region102: #{gnn_forward.3} parent=85 // pred_fallthru
          _
        %p1707 = scmp.eq.s32.totalorder %s23, 1
        %p1708 = pnand %p1707, %p1155
        %p1709 = pneg %p1708
        // Predicated region
        $region103: #{gnn_forward.3} parent=85 // pred_check
          _
        $region104: #{gnn_forward.3} parent=85 // pred_check_branch
          %1711 = sbr.rel (%p1708) target = $region106
        $region105: #{gnn_forward.3} parent=85 // pred_region
          %v1712 = vld [vmem:[#allocation3] sm:$0xff]
          %v1713 = vpack.c.bf16 %v1712, %v1712
          %v1714 = vld [vmem:[%s6] sm:$0xf]
          %v1715 = vld [vmem:[%s6 + $0x4] sm:$0xf]
          %v1716 = vld [vmem:[%s6 + $0x8] sm:$0xf]
          %v1717 = vld [vmem:[%s6 + $0xc] sm:$0xf]
          %v1718 = vld [vmem:[%s6 + $0x10] sm:$0xf]
          %v1719 = vld [vmem:[%s6 + $0x14] sm:$0xf]
          %v1720 = vld [vmem:[%s6 + $0x18] sm:$0xf]
          %v1721 = vld [vmem:[%s6 + $0x1c] sm:$0xf]
          %v1722 = vld [vmem:[%s6 + $0x20] sm:$0xf]
          %v1723 = vld [vmem:[%s6 + $0x24] sm:$0xf]
          %v1724 = vld [vmem:[%s6 + $0x28] sm:$0xf]
          %v1725 = vld [vmem:[%s6 + $0x2c] sm:$0xf]
          %v1726 = vld [vmem:[%s6 + $0x30] sm:$0xf]
          %v1727 = vld [vmem:[%s6 + $0x34] sm:$0xf]
          %v1728 = vld [vmem:[%s6 + $0x38] sm:$0xf]
          %v1729 = vld [vmem:[%s6 + $0x3c] sm:$0xf]
          %v1730 = vld [vmem:[%s7] sm:$0x1]
          %v1732 = vlaneseq
          %v1733 = vshrl.u32 %v1732, 7
          %v1734 = vsub.s32 0, %v1733
          %v1735 = vrot.slane %v1730, %v1734
          %v1753 = vunpack.c.l.b16 %v1714
          %v1754 = vunpack.c.l.b16 %v1715
          %v1755 = vunpack.c.l.b16 %v1716
          %v1756 = vunpack.c.l.b16 %v1717
          %v1757 = vunpack.c.l.b16 %v1718
          %v1758 = vunpack.c.l.b16 %v1719
          %v1759 = vunpack.c.l.b16 %v1720
          %v1760 = vunpack.c.l.b16 %v1721
          %v1761 = vunpack.c.l.b16 %v1722
          %v1762 = vunpack.c.l.b16 %v1723
          %v1763 = vunpack.c.l.b16 %v1724
          %v1764 = vunpack.c.l.b16 %v1725
          %v1765 = vunpack.c.l.b16 %v1726
          %v1766 = vunpack.c.l.b16 %v1727
          %v1767 = vunpack.c.l.b16 %v1728
          %v1768 = vunpack.c.l.b16 %v1729
          %v1769 = vpack.c.b16 %v1754, %v1753
          %v1770 = vpack.c.b16 %v1756, %v1755
          %v1771 = vpack.c.b16 %v1758, %v1757
          %v1772 = vpack.c.b16 %v1760, %v1759
          %v1773 = vpack.c.b16 %v1762, %v1761
          %v1774 = vpack.c.b16 %v1764, %v1763
          %v1775 = vpack.c.b16 %v1766, %v1765
          %v1776 = vpack.c.b16 %v1768, %v1767
          %1785 = vmatprep.subr.bf16.mxu0 0
          %1786 = vmatpush1.bf16.msra.mxu0 %v1769
          %1787 = vmatprep.subr.bf16.mxu0 0
          %1788 = vmatpush1.bf16.msra.mxu0 %v1770
          %1789 = vmatprep.subr.bf16.mxu0 0
          %1790 = vmatpush1.bf16.msra.mxu0 %v1771
          %1791 = vmatprep.subr.bf16.mxu0 0
          %1792 = vmatpush1.bf16.msra.mxu0 %v1772
          %1793 = vmatprep.subr.bf16.mxu0 0
          %1794 = vmatpush1.bf16.msra.mxu0 %v1773
          %1795 = vmatprep.subr.bf16.mxu0 0
          %1796 = vmatpush1.bf16.msra.mxu0 %v1774
          %1797 = vmatprep.subr.bf16.mxu0 0
          %1798 = vmatpush1.bf16.msra.mxu0 %v1775
          %1799 = vmatprep.subr.bf16.mxu0 0
          %1800 = vmatpush1.bf16.msra.mxu0 %v1776
          %1801 = vmatprep.subr.bf16.mxu0 0
          %1802 = vmatpush1.bf16.msra.mxu0 0
          %1803 = vmatprep.subr.bf16.mxu0 0
          %1804 = vmatpush1.bf16.msra.mxu0 0
          %1805 = vmatprep.subr.bf16.mxu0 0
          %1806 = vmatpush1.bf16.msra.mxu0 0
          %1807 = vmatprep.subr.bf16.mxu0 0
          %1808 = vmatpush1.bf16.msra.mxu0 0
          %1809 = vmatprep.subr.bf16.mxu0 0
          %1810 = vmatpush1.bf16.msra.mxu0 0
          %1811 = vmatprep.subr.bf16.mxu0 0
          %1812 = vmatpush1.bf16.msra.mxu0 0
          %1813 = vmatprep.subr.bf16.mxu0 0
          %1814 = vmatpush1.bf16.msra.mxu0 0
          %1815 = vmatprep.subr.bf16.mxu0 0
          %1816 = vmatpush1.bf16.msra.mxu0 0
          %1817 = vmatprep.mubr.bf16.mxu0 0
          %1818 = vmatmul.mubr.bf16.gmra.mrb[0].mxu0 %v1713
          %v1819 = vpop.f32.mrb[0].mxu0
          %v1820 = vadd.f32 %v1735, %v1819
          %v1821 = vpop.f32.mrb[0].mxu0
          %v1822 = vpop.f32.mrb[0].mxu0
          %v1823 = vpop.f32.mrb[0].mxu0
          %1824 = vdwg.mxu0
          %1825 = vst [vmem:[%s8] sm:$0xff] %v1820
        $region106: #{gnn_forward.3} parent=85 // pred_fallthru
          _
        // Predicated region
        $region107: #{gnn_forward.3} parent=85 // pred_check
          %p1826 = pneg %p234
        $region108: #{gnn_forward.3} parent=85 // pred_check_branch
          %1828 = sbr.rel (%p1826) target = $region110
        $region109: #{gnn_forward.3} parent=85 // pred_region
          _
        $region110: #{gnn_forward.3} parent=85 // pred_fallthru
          _
        // Predicated region
        $region111: #{gnn_forward.3} parent=85 // pred_check
          %p1829 = pneg %p234
        $region112: #{gnn_forward.3} parent=85 // pred_check_branch
          %1831 = sbr.rel (%p1829) target = $region114
        $region113: #{gnn_forward.3} parent=85 // pred_region
          _
        $region114: #{gnn_forward.3} parent=85 // pred_fallthru
          _
      $region86: #{gnn_forward.3} parent=5 // pred_fallthru
        _
      %p1832 = scmp.le.s32.totalorder 2, %s14
      // Predicated region
      $region115: #{gnn_forward.3} parent=5 // pred_check
        %p1833 = pneg %p1832
      $region116: #{gnn_forward.3} parent=5 // pred_check_branch
        %1835 = sbr.rel (%p1833) target = $region118
      $region117: #{gnn_forward.3} parent=5 // pred_region
        %s1836 = ssub.s32 %s14, 2
      $region118: #{gnn_forward.3} parent=5 // pred_fallthru
        _
    $region6: #{gnn_forward.3} parent=1 // loop_footer
      %s18 = sadd.s32 1, %s14
    $region7: #{gnn_forward.3} parent=1 // loop_footer_branch
      %13 = sbr.rel target = $region3
    $region8: #{gnn_forward.3} parent=1 // loop_exit
      _

</llo_original>
